<compile_context>
chip_gen: v7x
topology: tpu7x:2x2x1
jax: 0.10.0
libtpu: 0.0.40
codegen_flags: <defaults>
</compile_context>

<pallas_src>
import functools

import jax
import jax.numpy as jnp
from jax.experimental import pallas as pl
from jax.experimental.pallas import tpu as pltpu

TN = 2048                    # lane tile for the memory-bound pointwise layers
HEAD_TN = 256                # lane tile for the fused fc1->GELU->fc2 head (vreg pressure)
MODE_TN = 512                # lane tile (modes) for the spectral-mix kernel
VMEM_LIMIT = 32 * 1024 * 1024  # explicit (v5e scoped default is only 16 MiB)

# Matmul operand dtype (accumulation stays f32 via preferred_element_type) and
# inter-layer activation storage dtype.  bf16 halves HBM traffic on the pointwise
# layers and feeds the bf16 MXU at native rate on v6e/v7x.
MXU_DTYPE = jnp.bfloat16
ACT_DTYPE = jnp.bfloat16


def _mxu(x):
    return x.astype(MXU_DTYPE) if x.dtype != MXU_DTYPE else x


def _gelu(x):
    # tanh-approx GELU: the transcendental runs on the EUP slot (the exact-erf
    # F.gelu lowers to a long VPU polynomial); max deviation ~1e-3 from exact GELU.
    # TODO(synk): switch to jax.lax.erf if bit-exact F.gelu numerics are required.
    c = 0.7978845608028654  # sqrt(2/pi)
    return 0.5 * x * (1.0 + jnp.tanh(c * (x + 0.044715 * x * x * x)))


def _lane_tile(n, tn_max):
    """128-aligned lane tile <= tn_max whose grid length is even and >= 2 whenever
    n > 128 (keeps both v7x TensorCores busy with balanced blocks)."""
    if n <= 128:
        return n
    groups = -(-n // 128)                 # number of 128-lane groups
    max_groups = max(1, tn_max // 128)
    steps = -(-groups // max_groups)
    steps = max(2, steps)
    if steps % 2:
        steps += 1
    tile_groups = -(-groups // steps)
    return tile_groups * 128


# ----------------------------------------------------------------------------
# Pallas kernel 1: fused pointwise linear on a channels-first (C, N) view.
#   y = act(W^T(cout,cin) @ X(cin, tn) + b [+ add])
# N (spatial) sits in lanes -> lane-dense stores and VPU work.
# Used for fc0 and the w0..w3 1x1 convs (with the spectral branch added in).
# ----------------------------------------------------------------------------
def _pointwise_kernel(*refs, cin, act, has_add):
    if has_add:
        x_ref, wt_ref, b_ref, a_ref, o_ref = refs
    else:
        x_ref, wt_ref, b_ref, o_ref = refs
    x = x_ref[...]                 # (cin, tn)
    wt = wt_ref[...]               # (cout, cin)
    if cin == 1:
        # degenerate K=1 lift: rank-1 broadcast multiply on the VPU
        y = (wt * x).astype(jnp.float32)          # (cout,1)*(1,tn) -> (cout,tn)
    else:
        y = jnp.dot(_mxu(wt), _mxu(x), preferred_element_type=jnp.float32)
    y = y + b_ref[...]             # (cout,1) lane-broadcast bias (f32)
    if has_add:
        y = y + a_ref[...]         # bf16 add promotes to f32
    if act:
        y = _gelu(y)
    o_ref[...] = y.astype(o_ref.dtype)


def pointwise_cf(x_cf, wt, b, add_cf=None, act=False,
                 out_dtype=jnp.float32, tn_max=TN):
    """y = act(wt @ x + b [+ add]) on a channels-first (C, N) view."""
    cin, n = x_cf.shape
    cout = wt.shape[0]
    tn = _lane_tile(n, tn_max)
    grid = (pl.cdiv(n, tn),)       # partial last block handled by Pallas masking
    in_specs = [
        pl.BlockSpec((cin, tn), lambda i: (0, i)),
        pl.BlockSpec((cout, cin), lambda i: (0, 0)),
        pl.BlockSpec((cout, 1), lambda i: (0, 0)),
    ]
    args = [x_cf, wt, b.reshape(cout, 1)]
    if add_cf is not None:
        in_specs.append(pl.BlockSpec((cout, tn), lambda i: (0, i)))
        args.append(add_cf)
    kernel = functools.partial(
        _pointwise_kernel, cin=cin, act=act, has_add=add_cf is not None
    )
    return pl.pallas_call(
        kernel,
        grid=grid,
        in_specs=in_specs,
        out_specs=pl.BlockSpec((cout, tn), lambda i: (0, i)),
        out_shape=jax.ShapeDtypeStruct((cout, n), out_dtype),
        compiler_params=pltpu.CompilerParams(
            dimension_semantics=("parallel",),
            vmem_limit_bytes=VMEM_LIMIT),
    )(*args)


# ----------------------------------------------------------------------------
# Pallas kernel 2: fused projection head  fc2(gelu(fc1(x))) [+ residual]
# The (128, tn) fc1 activation stays in VMEM/vregs (no HBM round trip);
# tn is kept small (HEAD_TN) so the f32 intermediate does not spill.
# ----------------------------------------------------------------------------
def _head_kernel(*refs, has_res):
    if has_res:
        x_ref, w1t_ref, b1_ref, w2t_ref, b2_ref, r_ref, o_ref = refs
    else:
        x_ref, w1t_ref, b1_ref, w2t_ref, b2_ref, o_ref = refs
    x = x_ref[...]                                                    # (width, tn)
    y = jnp.dot(_mxu(w1t_ref[...]), _mxu(x), preferred_element_type=jnp.float32)
    y = _gelu(y + b1_ref[...])                                        # (128, tn) live
    z = jnp.dot(_mxu(w2t_ref[...]), _mxu(y), preferred_element_type=jnp.float32)
    z = z + b2_ref[...]                                               # (1, tn)
    if has_res:
        z = z + r_ref[...]
    o_ref[...] = z.astype(o_ref.dtype)


def head_fused(x_cf, w1t, b1, w2t, b2, res_cf=None, tn_max=HEAD_TN):
    cin, n = x_cf.shape
    h1 = w1t.shape[0]              # 128
    tn = _lane_tile(n, tn_max)
    grid = (pl.cdiv(n, tn),)
    in_specs = [
        pl.BlockSpec((cin, tn), lambda i: (0, i)),
        pl.BlockSpec((h1, cin), lambda i: (0, 0)),
        pl.BlockSpec((h1, 1), lambda i: (0, 0)),
        pl.BlockSpec((1, h1), lambda i: (0, 0)),
        pl.BlockSpec((1, 1), lambda i: (0, 0)),
    ]
    args = [x_cf, w1t, b1.reshape(h1, 1), w2t, b2.reshape(1, 1)]
    if res_cf is not None:
        in_specs.append(pl.BlockSpec((1, tn), lambda i: (0, i)))
        args.append(res_cf)
    kernel = functools.partial(_head_kernel, has_res=res_cf is not None)
    return pl.pallas_call(
        kernel,
        grid=grid,
        in_specs=in_specs,
        out_specs=pl.BlockSpec((1, tn), lambda i: (0, i)),
        out_shape=jax.ShapeDtypeStruct((1, n), jnp.float32),
        compiler_params=pltpu.CompilerParams(
            dimension_semantics=("parallel",),
            vmem_limit_bytes=VMEM_LIMIT),
    )(*args)


# ----------------------------------------------------------------------------
# Pallas kernel 3: complex mode mixing (compl_mul2d) on split real/imag planes.
# Lane-dense layout: modes M (= 2*modes1*modes2, both corners stacked) in lanes.
#   x: (Cin, B, M), w: (Cin, Cout, M)  ->  out: (Cout, B, M)
# The Cin contraction is an unrolled VPU multiply-add loop (plain 4-mult complex
# product); the MXU cannot help here (per-mode matmuls with B rows are tiny).
# ----------------------------------------------------------------------------
def _mode_mix_kernel(xr_ref, xi_ref, wr_ref, wi_ref, or_ref, oi_ref, *, cin):
    acc_r = jnp.zeros(or_ref.shape, jnp.float32)
    acc_i = jnp.zeros(oi_ref.shape, jnp.float32)
    for i in range(cin):                      # static unrolled VPU contraction
        xr = xr_ref[i][None, :, :]            # (1, B, mt)
        xi = xi_ref[i][None, :, :]
        wr = wr_ref[i][:, None, :]            # (cout, 1, mt)
        wi = wi_ref[i][:, None, :]
        acc_r = acc_r + xr * wr - xi * wi
        acc_i = acc_i + xr * wi + xi * wr
    or_ref[...] = acc_r
    oi_ref[...] = acc_i


def mode_mix(xr, xi, wr, wi):
    cin, B, M = xr.shape
    cout = wr.shape[1]
    mt = min(_lane_tile(M, MODE_TN), M)
    grid = (pl.cdiv(M, mt),)
    spec_x = pl.BlockSpec((cin, B, mt), lambda i: (0, 0, i))
    spec_w = pl.BlockSpec((cin, cout, mt), lambda i: (0, 0, i))
    spec_o = pl.BlockSpec((cout, B, mt), lambda i: (0, 0, i))
    out_sds = jax.ShapeDtypeStruct((cout, B, M), jnp.float32)
    kernel = functools.partial(_mode_mix_kernel, cin=cin)
    return pl.pallas_call(
        kernel,
        grid=grid,
        in_specs=[spec_x, spec_x, spec_w, spec_w],
        out_specs=[spec_o, spec_o],
        out_shape=[out_sds, out_sds],
        compiler_params=pltpu.CompilerParams(
            dimension_semantics=("parallel",),
            vmem_limit_bytes=VMEM_LIMIT),
    )(xr, xi, wr, wi)


def spectral_conv2d(h_cf, conv_p, m1, m2):
    # h_cf: (Cin, B, Hp, Wp) channels-first (possibly bf16)
    C, B, Hp, Wp = h_cf.shape
    cout = conv_p["wr"].shape[1]
    Wf = Wp // 2 + 1
    x_ft = jnp.fft.rfftn(h_cf.astype(jnp.float32), axes=(2, 3))        # (C,B,Hp,Wf) c64
    # corner slice is already in kernel order (modes last) -> reshape only, no transpose
    corners = jnp.concatenate(
        [x_ft[:, :, :m1, :m2], x_ft[:, :, Hp - m1:, :m2]], axis=2)     # (C,B,2*m1,m2)
    M = 2 * m1 * m2
    xs = corners.reshape(C, B, M)
    or_, oi = mode_mix(jnp.real(xs), jnp.imag(xs), conv_p["wr"], conv_p["wi"])
    o = jax.lax.complex(or_, oi).reshape(cout, B, 2 * m1, m2)
    # assemble the (Cout,B,Hp,Wf) frequency tensor with concat + pad instead of
    # zeros + scatter (avoids the extra full-buffer pass). Requires Hp >= 2*m1.
    mid = jnp.zeros((cout, B, Hp - 2 * m1, m2), jnp.complex64)
    col = jnp.concatenate([o[:, :, :m1, :], mid, o[:, :, m1:, :]], axis=2)
    out_ft = jnp.pad(col, ((0, 0), (0, 0), (0, 0), (0, Wf - m2)))
    return jnp.fft.irfftn(out_ft, s=(Hp, Wp), axes=(2, 3))             # (Cout,B,Hp,Wp) f32


# ----------------------------------------------------------------------------
# Full TemperatureFNO2d forward (activations channels-first: (C, B, H, W))
# ----------------------------------------------------------------------------
def fno_forward(x, params, *, modes1, modes2, padding, if_res):
    B, S1, S2, _ = x.shape
    width = params["fc0_wt"].shape[0]

    # residual branch: low-pass-filtered copy of the input (exactly as in PyTorch:
    # only the joint high-H/high-W frequency block is zeroed)
    x_ft = jnp.fft.rfftn(x, axes=(1, 2))
    x_ft = x_ft.at[:, modes1:, modes2:, :].set(0.0)
    x_in = jnp.fft.irfftn(x_ft, s=(S1, S2), axes=(1, 2))               # (B,S1,S2,1)

    # lift: fc0 (Linear 1 -> width) on a lane-dense (1, N) view
    n0 = B * S1 * S2
    h = pointwise_cf(x.reshape(1, n0), params["fc0_wt"], params["fc0_b"],
                     out_dtype=ACT_DTYPE)
    h = h.reshape(width, B, S1, S2)

    # F.pad([0, p, 0, p]) on NCHW pads H (bottom) and W (right)
    h = jnp.pad(h, ((0, 0), (0, 0), (0, padding), (0, padding)))
    Hp, Wp = S1 + padding, S2 + padding
    n = B * Hp * Wp

    for k in range(4):
        x1 = spectral_conv2d(h, params[f"conv{k}"], modes1, modes2)
        h = pointwise_cf(
            h.reshape(width, n),
            params[f"w{k}_wt"], params[f"w{k}_b"],
            add_cf=x1.astype(ACT_DTYPE).reshape(width, n),
            act=(k < 3),
            out_dtype=ACT_DTYPE,
        ).reshape(width, B, Hp, Wp)

    # crop padding, then fused fc1 -> GELU -> fc2 (+ residual)
    h = h[:, :, :S1, :S2].reshape(width, n0)
    res = x_in.reshape(1, n0) if if_res else None
    out = head_fused(h, params["fc1_wt"], params["fc1_b"],
                     params["fc2_wt"], params["fc2_b"], res_cf=res)
    return out.reshape(B, S1, S2, 1)


# ----------------------------------------------------------------------------
# deterministic parameter init (shapes match the PyTorch module __init__,
# stored pre-arranged for the channels-first / modes-last kernels)
# ----------------------------------------------------------------------------
def init_params(key, width, m1, m2):
    keys = jax.random.split(key, 64)
    ki = iter(keys)
    u = lambda shp, lo, hi: jax.random.uniform(next(ki), shp, jnp.float32, lo, hi)

    params = {
        "fc0_wt": u((width, 1), -1.0, 1.0),                      # Linear(1,width).weight
        "fc0_b": u((width,), -1.0, 1.0),
        "fc1_wt": u((128, width), -1.0 / width**0.5, 1.0 / width**0.5),
        "fc1_b": u((128,), -1.0 / width**0.5, 1.0 / width**0.5),
        "fc2_wt": u((1, 128), -1.0 / 128**0.5, 1.0 / 128**0.5),
        "fc2_b": u((1,), -1.0 / 128**0.5, 1.0 / 128**0.5),
    }
    scale = 1.0 / (width * width)
    M = 2 * m1 * m2
    for k in range(4):
        # spectral weights: complex (Cin, Cout, m1, m2) per corner -> real/imag
        # planes, corners stacked along the mode-1 axis and flattened to
        # (Cin, Cout, M) so the mode axis lands in lanes inside the kernel.
        def spec():
            return scale * u((width, width, m1, m2), 0.0, 1.0)

        w1r, w1i, w2r, w2i = spec(), spec(), spec(), spec()
        params[f"conv{k}"] = {
            "wr": jnp.concatenate([w1r, w2r], axis=2).reshape(width, width, M),
            "wi": jnp.concatenate([w1i, w2i], axis=2).reshape(width, width, M),
        }
        bnd = 1.0 / width**0.5
        params[f"w{k}_wt"] = u((width, width), -bnd, bnd)        # (Cout, Cin) 1x1-conv
        params[f"w{k}_b"] = u((width,), -bnd, bnd)
    return params


if __name__ == "__main__":
    B, S, width, m1, m2 = 2, 16, 8, 4, 4
    key = jax.random.PRNGKey(0)
    kx, kp = jax.random.split(key)
    x = jax.random.normal(kx, (B, S, S, 1), jnp.float32)
    params = init_params(kp, width, m1, m2)

    fwd = jax.jit(
        functools.partial(fno_forward, modes1=m1, modes2=m2, padding=9, if_res=True)
    )
    out = fwd(x, params)
    jax.block_until_ready(out)
    assert out.shape == (B, S, S, 1) and out.dtype == jnp.float32
    assert bool(jnp.all(jnp.isfinite(out)))
    print("KERNEL_OK")
</pallas_src>

<mosaic_0001>
module attributes {stable_mosaic.version = 11 : i64} {
  func.func @_pointwise_kernel(%arg0: i32, %arg1: memref<1x256xf32, #tpu.memory_space<vmem>>, %arg2: memref<8x1xf32, #tpu.memory_space<vmem>>, %arg3: memref<8x1xf32, #tpu.memory_space<vmem>>, %arg4: memref<8x256xbf16, #tpu.memory_space<vmem>>) attributes {dimension_semantics = [#tpu.dimension_semantics<parallel>], iteration_bounds = array<i64: 2>, scalar_prefetch = 0 : i64, scratch_operands = 0 : i64, tpu.core_type = #tpu.core_type<tc>, window_params = [{transform_indices = @transform_0, window_bounds = array<i64: 1, 256>}, {pipeline_mode = #tpu.pipeline_mode<synchronous>, transform_indices = @transform_1, window_bounds = array<i64: 8, 1>}, {pipeline_mode = #tpu.pipeline_mode<synchronous>, transform_indices = @transform_2, window_bounds = array<i64: 8, 1>}, {transform_indices = @transform_3, window_bounds = array<i64: 8, 256>}]} {
    %c0 = arith.constant 0 : index
    %c0_0 = arith.constant 0 : index
    %0 = vector.load %arg1[%c0, %c0_0] : memref<1x256xf32, #tpu.memory_space<vmem>>, vector<1x256xf32>
    %c0_1 = arith.constant 0 : index
    %c0_2 = arith.constant 0 : index
    %1 = vector.load %arg2[%c0_1, %c0_2] : memref<8x1xf32, #tpu.memory_space<vmem>>, vector<8x1xf32>
    %2 = vector.broadcast %1 : vector<8x1xf32> to vector<8x256xf32>
    %3 = vector.broadcast %0 : vector<1x256xf32> to vector<8x256xf32>
    %4 = arith.mulf %2, %3 : vector<8x256xf32>
    %c0_3 = arith.constant 0 : index
    %c0_4 = arith.constant 0 : index
    %5 = vector.load %arg3[%c0_3, %c0_4] : memref<8x1xf32, #tpu.memory_space<vmem>>, vector<8x1xf32>
    %6 = vector.broadcast %5 : vector<8x1xf32> to vector<8x256xf32>
    %7 = arith.addf %4, %6 : vector<8x256xf32>
    %8 = arith.truncf %7 : vector<8x256xf32> to vector<8x256xbf16>
    %c0_5 = arith.constant 0 : index
    %c0_6 = arith.constant 0 : index
    %9 = vector.load %arg4[%c0_5, %c0_6] : memref<8x256xbf16, #tpu.memory_space<vmem>>, vector<8x256xbf16>
    tpu.vector_store %arg4[%c0_5, %c0_6], %8 {strides = array<i32>} : memref<8x256xbf16, #tpu.memory_space<vmem>>, vector<8x256xbf16>,
    return
  }
  func.func @transform_0(%arg0: i32) -> (i32, i32) {
    %c0_i32 = arith.constant 0 : i32
    %c0_i32_0 = arith.constant 0 : i32
    return %c0_i32, %arg0 : i32, i32
  }
  func.func @transform_1(%arg0: i32) -> (i32, i32) {
    %c0_i32 = arith.constant 0 : i32
    %c0_i32_0 = arith.constant 0 : i32
    %c0_i32_1 = arith.constant 0 : i32
    return %c0_i32, %c0_i32_0 : i32, i32
  }
  func.func @transform_2(%arg0: i32) -> (i32, i32) {
    %c0_i32 = arith.constant 0 : i32
    %c0_i32_0 = arith.constant 0 : i32
    %c0_i32_1 = arith.constant 0 : i32
    return %c0_i32, %c0_i32_0 : i32, i32
  }
  func.func @transform_3(%arg0: i32) -> (i32, i32) {
    %c0_i32 = arith.constant 0 : i32
    %c0_i32_0 = arith.constant 0 : i32
    return %c0_i32, %arg0 : i32, i32
  }
}

module attributes {stable_mosaic.version = 11 : i64} {
  func.func @_mode_mix_kernel(%arg0: i32, %arg1: memref<8x2x32xf32, #tpu.memory_space<vmem>>, %arg2: memref<8x2x32xf32, #tpu.memory_space<vmem>>, %arg3: memref<8x8x32xf32, #tpu.memory_space<vmem>>, %arg4: memref<8x8x32xf32, #tpu.memory_space<vmem>>, %arg5: memref<8x2x32xf32, #tpu.memory_space<vmem>>, %arg6: memref<8x2x32xf32, #tpu.memory_space<vmem>>) attributes {dimension_semantics = [#tpu.dimension_semantics<parallel>], iteration_bounds = array<i64: 1>, scalar_prefetch = 0 : i64, scratch_operands = 0 : i64, tpu.core_type = #tpu.core_type<tc>, window_params = [{transform_indices = @transform_0, window_bounds = array<i64: 8, 2, 32>}, {transform_indices = @transform_1, window_bounds = array<i64: 8, 2, 32>}, {transform_indices = @transform_2, window_bounds = array<i64: 8, 8, 32>}, {transform_indices = @transform_3, window_bounds = array<i64: 8, 8, 32>}, {transform_indices = @transform_4, window_bounds = array<i64: 8, 2, 32>}, {transform_indices = @transform_5, window_bounds = array<i64: 8, 2, 32>}]} {
    %cst = arith.constant 0.000000e+00 : f32
    %0 = vector.broadcast %cst : f32 to vector<8x2x32xf32>
    %cst_0 = arith.constant 0.000000e+00 : f32
    %1 = vector.broadcast %cst_0 : f32 to vector<8x2x32xf32>
    %c0 = arith.constant 0 : index
    %c0_1 = arith.constant 0 : index
    %c0_2 = arith.constant 0 : index
    %2 = vector.load %arg1[%c0, %c0_1, %c0_2] : memref<8x2x32xf32, #tpu.memory_space<vmem>>, vector<1x2x32xf32>
    %3 = vector.shape_cast %2 : vector<1x2x32xf32> to vector<2x32xf32>
    %4 = vector.shape_cast %3 : vector<2x32xf32> to vector<1x2x32xf32>
    %c0_3 = arith.constant 0 : index
    %c0_4 = arith.constant 0 : index
    %c0_5 = arith.constant 0 : index
    %5 = vector.load %arg2[%c0_3, %c0_4, %c0_5] : memref<8x2x32xf32, #tpu.memory_space<vmem>>, vector<1x2x32xf32>
    %6 = vector.shape_cast %5 : vector<1x2x32xf32> to vector<2x32xf32>
    %7 = vector.shape_cast %6 : vector<2x32xf32> to vector<1x2x32xf32>
    %c0_6 = arith.constant 0 : index
    %c0_7 = arith.constant 0 : index
    %c0_8 = arith.constant 0 : index
    %8 = vector.load %arg3[%c0_6, %c0_7, %c0_8] : memref<8x8x32xf32, #tpu.memory_space<vmem>>, vector<1x8x32xf32>
    %9 = vector.shape_cast %8 : vector<1x8x32xf32> to vector<8x32xf32>
    %10 = vector.shape_cast %9 : vector<8x32xf32> to vector<8x1x32xf32>
    %c0_9 = arith.constant 0 : index
    %c0_10 = arith.constant 0 : index
    %c0_11 = arith.constant 0 : index
    %11 = vector.load %arg4[%c0_9, %c0_10, %c0_11] : memref<8x8x32xf32, #tpu.memory_space<vmem>>, vector<1x8x32xf32>
    %12 = vector.shape_cast %11 : vector<1x8x32xf32> to vector<8x32xf32>
    %13 = vector.shape_cast %12 : vector<8x32xf32> to vector<8x1x32xf32>
    %14 = vector.broadcast %4 : vector<1x2x32xf32> to vector<8x2x32xf32>
    %15 = vector.broadcast %10 : vector<8x1x32xf32> to vector<8x2x32xf32>
    %16 = arith.mulf %14, %15 : vector<8x2x32xf32>
    %17 = arith.addf %0, %16 : vector<8x2x32xf32>
    %18 = vector.broadcast %7 : vector<1x2x32xf32> to vector<8x2x32xf32>
    %19 = vector.broadcast %13 : vector<8x1x32xf32> to vector<8x2x32xf32>
    %20 = arith.mulf %18, %19 : vector<8x2x32xf32>
    %21 = arith.subf %17, %20 : vector<8x2x32xf32>
    %22 = vector.broadcast %4 : vector<1x2x32xf32> to vector<8x2x32xf32>
    %23 = vector.broadcast %13 : vector<8x1x32xf32> to vector<8x2x32xf32>
    %24 = arith.mulf %22, %23 : vector<8x2x32xf32>
    %25 = arith.addf %1, %24 : vector<8x2x32xf32>
    %26 = vector.broadcast %7 : vector<1x2x32xf32> to vector<8x2x32xf32>
    %27 = vector.broadcast %10 : vector<8x1x32xf32> to vector<8x2x32xf32>
    %28 = arith.mulf %26, %27 : vector<8x2x32xf32>
    %29 = arith.addf %25, %28 : vector<8x2x32xf32>
    %c1 = arith.constant 1 : index
    %c0_12 = arith.constant 0 : index
    %c0_13 = arith.constant 0 : index
    %30 = vector.load %arg1[%c1, %c0_12, %c0_13] : memref<8x2x32xf32, #tpu.memory_space<vmem>>, vector<1x2x32xf32>
    %31 = vector.shape_cast %30 : vector<1x2x32xf32> to vector<2x32xf32>
    %32 = vector.shape_cast %31 : vector<2x32xf32> to vector<1x2x32xf32>
    %c1_14 = arith.constant 1 : index
    %c0_15 = arith.constant 0 : index
    %c0_16 = arith.constant 0 : index
    %33 = vector.load %arg2[%c1_14, %c0_15, %c0_16] : memref<8x2x32xf32, #tpu.memory_space<vmem>>, vector<1x2x32xf32>
    %34 = vector.shape_cast %33 : vector<1x2x32xf32> to vector<2x32xf32>
    %35 = vector.shape_cast %34 : vector<2x32xf32> to vector<1x2x32xf32>
    %c1_17 = arith.constant 1 : index
    %c0_18 = arith.constant 0 : index
    %c0_19 = arith.constant 0 : index
    %36 = vector.load %arg3[%c1_17, %c0_18, %c0_19] : memref<8x8x32xf32, #tpu.memory_space<vmem>>, vector<1x8x32xf32>
    %37 = vector.shape_cast %36 : vector<1x8x32xf32> to vector<8x32xf32>
    %38 = vector.shape_cast %37 : vector<8x32xf32> to vector<8x1x32xf32>
    %c1_20 = arith.constant 1 : index
    %c0_21 = arith.constant 0 : index
    %c0_22 = arith.constant 0 : index
    %39 = vector.load %arg4[%c1_20, %c0_21, %c0_22] : memref<8x8x32xf32, #tpu.memory_space<vmem>>, vector<1x8x32xf32>
    %40 = vector.shape_cast %39 : vector<1x8x32xf32> to vector<8x32xf32>
    %41 = vector.shape_cast %40 : vector<8x32xf32> to vector<8x1x32xf32>
    %42 = vector.broadcast %32 : vector<1x2x32xf32> to vector<8x2x32xf32>
    %43 = vector.broadcast %38 : vector<8x1x32xf32> to vector<8x2x32xf32>
    %44 = arith.mulf %42, %43 : vector<8x2x32xf32>
    %45 = arith.addf %21, %44 : vector<8x2x32xf32>
    %46 = vector.broadcast %35 : vector<1x2x32xf32> to vector<8x2x32xf32>
    %47 = vector.broadcast %41 : vector<8x1x32xf32> to vector<8x2x32xf32>
    %48 = arith.mulf %46, %47 : vector<8x2x32xf32>
    %49 = arith.subf %45, %48 : vector<8x2x32xf32>
    %50 = vector.broadcast %32 : vector<1x2x32xf32> to vector<8x2x32xf32>
    %51 = vector.broadcast %41 : vector<8x1x32xf32> to vector<8x2x32xf32>
    %52 = arith.mulf %50, %51 : vector<8x2x32xf32>
    %53 = arith.addf %29, %52 : vector<8x2x32xf32>
    %54 = vector.broadcast %35 : vector<1x2x32xf32> to vector<8x2x32xf32>
    %55 = vector.broadcast %38 : vector<8x1x32xf32> to vector<8x2x32xf32>
    %56 = arith.mulf %54, %55 : vector<8x2x32xf32>
    %57 = arith.addf %53, %56 : vector<8x2x32xf32>
    %c2 = arith.constant 2 : index
    %c0_23 = arith.constant 0 : index
    %c0_24 = arith.constant 0 : index
    %58 = vector.load %arg1[%c2, %c0_23, %c0_24] : memref<8x2x32xf32, #tpu.memory_space<vmem>>, vector<1x2x32xf32>
    %59 = vector.shape_cast %58 : vector<1x2x32xf32> to vector<2x32xf32>
    %60 = vector.shape_cast %59 : vector<2x32xf32> to vector<1x2x32xf32>
    %c2_25 = arith.constant 2 : index
    %c0_26 = arith.constant 0 : index
    %c0_27 = arith.constant 0 : index
    %61 = vector.load %arg2[%c2_25, %c0_26, %c0_27] : memref<8x2x32xf32, #tpu.memory_space<vmem>>, vector<1x2x32xf32>
    %62 = vector.shape_cast %61 : vector<1x2x32xf32> to vector<2x32xf32>
    %63 = vector.shape_cast %62 : vector<2x32xf32> to vector<1x2x32xf32>
    %c2_28 = arith.constant 2 : index
    %c0_29 = arith.constant 0 : index
    %c0_30 = arith.constant 0 : index
    %64 = vector.load %arg3[%c2_28, %c0_29, %c0_30] : memref<8x8x32xf32, #tpu.memory_space<vmem>>, vector<1x8x32xf32>
    %65 = vector.shape_cast %64 : vector<1x8x32xf32> to vector<8x32xf32>
    %66 = vector.shape_cast %65 : vector<8x32xf32> to vector<8x1x32xf32>
    %c2_31 = arith.constant 2 : index
    %c0_32 = arith.constant 0 : index
    %c0_33 = arith.constant 0 : index
    %67 = vector.load %arg4[%c2_31, %c0_32, %c0_33] : memref<8x8x32xf32, #tpu.memory_space<vmem>>, vector<1x8x32xf32>
    %68 = vector.shape_cast %67 : vector<1x8x32xf32> to vector<8x32xf32>
    %69 = vector.shape_cast %68 : vector<8x32xf32> to vector<8x1x32xf32>
    %70 = vector.broadcast %60 : vector<1x2x32xf32> to vector<8x2x32xf32>
    %71 = vector.broadcast %66 : vector<8x1x32xf32> to vector<8x2x32xf32>
    %72 = arith.mulf %70, %71 : vector<8x2x32xf32>
    %73 = arith.addf %49, %72 : vector<8x2x32xf32>
    %74 = vector.broadcast %63 : vector<1x2x32xf32> to vector<8x2x32xf32>
    %75 = vector.broadcast %69 : vector<8x1x32xf32> to vector<8x2x32xf32>
    %76 = arith.mulf %74, %75 : vector<8x2x32xf32>
    %77 = arith.subf %73, %76 : vector<8x2x32xf32>
    %78 = vector.broadcast %60 : vector<1x2x32xf32> to vector<8x2x32xf32>
    %79 = vector.broadcast %69 : vector<8x1x32xf32> to vector<8x2x32xf32>
    %80 = arith.mulf %78, %79 : vector<8x2x32xf32>
    %81 = arith.addf %57, %80 : vector<8x2x32xf32>
    %82 = vector.broadcast %63 : vector<1x2x32xf32> to vector<8x2x32xf32>
    %83 = vector.broadcast %66 : vector<8x1x32xf32> to vector<8x2x32xf32>
    %84 = arith.mulf %82, %83 : vector<8x2x32xf32>
    %85 = arith.addf %81, %84 : vector<8x2x32xf32>
    %c3 = arith.constant 3 : index
    %c0_34 = arith.constant 0 : index
    %c0_35 = arith.constant 0 : index
    %86 = vector.load %arg1[%c3, %c0_34, %c0_35] : memref<8x2x32xf32, #tpu.memory_space<vmem>>, vector<1x2x32xf32>
    %87 = vector.shape_cast %86 : vector<1x2x32xf32> to vector<2x32xf32>
    %88 = vector.shape_cast %87 : vector<2x32xf32> to vector<1x2x32xf32>
    %c3_36 = arith.constant 3 : index
    %c0_37 = arith.constant 0 : index
    %c0_38 = arith.constant 0 : index
    %89 = vector.load %arg2[%c3_36, %c0_37, %c0_38] : memref<8x2x32xf32, #tpu.memory_space<vmem>>, vector<1x2x32xf32>
    %90 = vector.shape_cast %89 : vector<1x2x32xf32> to vector<2x32xf32>
    %91 = vector.shape_cast %90 : vector<2x32xf32> to vector<1x2x32xf32>
    %c3_39 = arith.constant 3 : index
    %c0_40 = arith.constant 0 : index
    %c0_41 = arith.constant 0 : index
    %92 = vector.load %arg3[%c3_39, %c0_40, %c0_41] : memref<8x8x32xf32, #tpu.memory_space<vmem>>, vector<1x8x32xf32>
    %93 = vector.shape_cast %92 : vector<1x8x32xf32> to vector<8x32xf32>
    %94 = vector.shape_cast %93 : vector<8x32xf32> to vector<8x1x32xf32>
    %c3_42 = arith.constant 3 : index
    %c0_43 = arith.constant 0 : index
    %c0_44 = arith.constant 0 : index
    %95 = vector.load %arg4[%c3_42, %c0_43, %c0_44] : memref<8x8x32xf32, #tpu.memory_space<vmem>>, vector<1x8x32xf32>
    %96 = vector.shape_cast %95 : vector<1x8x32xf32> to vector<8x32xf32>
    %97 = vector.shape_cast %96 : vector<8x32xf32> to vector<8x1x32xf32>
    %98 = vector.broadcast %88 : vector<1x2x32xf32> to vector<8x2x32xf32>
    %99 = vector.broadcast %94 : vector<8x1x32xf32> to vector<8x2x32xf32>
    %100 = arith.mulf %98, %99 : vector<8x2x32xf32>
    %101 = arith.addf %77, %100 : vector<8x2x32xf32>
    %102 = vector.broadcast %91 : vector<1x2x32xf32> to vector<8x2x32xf32>
    %103 = vector.broadcast %97 : vector<8x1x32xf32> to vector<8x2x32xf32>
    %104 = arith.mulf %102, %103 : vector<8x2x32xf32>
    %105 = arith.subf %101, %104 : vector<8x2x32xf32>
    %106 = vector.broadcast %88 : vector<1x2x32xf32> to vector<8x2x32xf32>
    %107 = vector.broadcast %97 : vector<8x1x32xf32> to vector<8x2x32xf32>
    %108 = arith.mulf %106, %107 : vector<8x2x32xf32>
    %109 = arith.addf %85, %108 : vector<8x2x32xf32>
    %110 = vector.broadcast %91 : vector<1x2x32xf32> to vector<8x2x32xf32>
    %111 = vector.broadcast %94 : vector<8x1x32xf32> to vector<8x2x32xf32>
    %112 = arith.mulf %110, %111 : vector<8x2x32xf32>
    %113 = arith.addf %109, %112 : vector<8x2x32xf32>
    %c4 = arith.constant 4 : index
    %c0_45 = arith.constant 0 : index
    %c0_46 = arith.constant 0 : index
    %114 = vector.load %arg1[%c4, %c0_45, %c0_46] : memref<8x2x32xf32, #tpu.memory_space<vmem>>, vector<1x2x32xf32>
    %115 = vector.shape_cast %114 : vector<1x2x32xf32> to vector<2x32xf32>
    %116 = vector.shape_cast %115 : vector<2x32xf32> to vector<1x2x32xf32>
    %c4_47 = arith.constant 4 : index
    %c0_48 = arith.constant 0 : index
    %c0_49 = arith.constant 0 : index
    %117 = vector.load %arg2[%c4_47, %c0_48, %c0_49] : memref<8x2x32xf32, #tpu.memory_space<vmem>>, vector<1x2x32xf32>
    %118 = vector.shape_cast %117 : vector<1x2x32xf32> to vector<2x32xf32>
    %119 = vector.shape_cast %118 : vector<2x32xf32> to vector<1x2x32xf32>
    %c4_50 = arith.constant 4 : index
    %c0_51 = arith.constant 0 : index
    %c0_52 = arith.constant 0 : index
    %120 = vector.load %arg3[%c4_50, %c0_51, %c0_52] : memref<8x8x32xf32, #tpu.memory_space<vmem>>, vector<1x8x32xf32>
    %121 = vector.shape_cast %120 : vector<1x8x32xf32> to vector<8x32xf32>
    %122 = vector.shape_cast %121 : vector<8x32xf32> to vector<8x1x32xf32>
    %c4_53 = arith.constant 4 : index
    %c0_54 = arith.constant 0 : index
    %c0_55 = arith.constant 0 : index
    %123 = vector.load %arg4[%c4_53, %c0_54, %c0_55] : memref<8x8x32xf32, #tpu.memory_space<vmem>>, vector<1x8x32xf32>
    %124 = vector.shape_cast %123 : vector<1x8x32xf32> to vector<8x32xf32>
    %125 = vector.shape_cast %124 : vector<8x32xf32> to vector<8x1x32xf32>
    %126 = vector.broadcast %116 : vector<1x2x32xf32> to vector<8x2x32xf32>
    %127 = vector.broadcast %122 : vector<8x1x32xf32> to vector<8x2x32xf32>
    %128 = arith.mulf %126, %127 : vector<8x2x32xf32>
    %129 = arith.addf %105, %128 : vector<8x2x32xf32>
    %130 = vector.broadcast %119 : vector<1x2x32xf32> to vector<8x2x32xf32>
    %131 = vector.broadcast %125 : vector<8x1x32xf32> to vector<8x2x32xf32>
    %132 = arith.mulf %130, %131 : vector<8x2x32xf32>
    %133 = arith.subf %129, %132 : vector<8x2x32xf32>
    %134 = vector.broadcast %116 : vector<1x2x32xf32> to vector<8x2x32xf32>
    %135 = vector.broadcast %125 : vector<8x1x32xf32> to vector<8x2x32xf32>
    %136 = arith.mulf %134, %135 : vector<8x2x32xf32>
    %137 = arith.addf %113, %136 : vector<8x2x32xf32>
    %138 = vector.broadcast %119 : vector<1x2x32xf32> to vector<8x2x32xf32>
    %139 = vector.broadcast %122 : vector<8x1x32xf32> to vector<8x2x32xf32>
    %140 = arith.mulf %138, %139 : vector<8x2x32xf32>
    %141 = arith.addf %137, %140 : vector<8x2x32xf32>
    %c5 = arith.constant 5 : index
    %c0_56 = arith.constant 0 : index
    %c0_57 = arith.constant 0 : index
    %142 = vector.load %arg1[%c5, %c0_56, %c0_57] : memref<8x2x32xf32, #tpu.memory_space<vmem>>, vector<1x2x32xf32>
    %143 = vector.shape_cast %142 : vector<1x2x32xf32> to vector<2x32xf32>
    %144 = vector.shape_cast %143 : vector<2x32xf32> to vector<1x2x32xf32>
    %c5_58 = arith.constant 5 : index
    %c0_59 = arith.constant 0 : index
    %c0_60 = arith.constant 0 : index
    %145 = vector.load %arg2[%c5_58, %c0_59, %c0_60] : memref<8x2x32xf32, #tpu.memory_space<vmem>>, vector<1x2x32xf32>
    %146 = vector.shape_cast %145 : vector<1x2x32xf32> to vector<2x32xf32>
    %147 = vector.shape_cast %146 : vector<2x32xf32> to vector<1x2x32xf32>
    %c5_61 = arith.constant 5 : index
    %c0_62 = arith.constant 0 : index
    %c0_63 = arith.constant 0 : index
    %148 = vector.load %arg3[%c5_61, %c0_62, %c0_63] : memref<8x8x32xf32, #tpu.memory_space<vmem>>, vector<1x8x32xf32>
    %149 = vector.shape_cast %148 : vector<1x8x32xf32> to vector<8x32xf32>
    %150 = vector.shape_cast %149 : vector<8x32xf32> to vector<8x1x32xf32>
    %c5_64 = arith.constant 5 : index
    %c0_65 = arith.constant 0 : index
    %c0_66 = arith.constant 0 : index
    %151 = vector.load %arg4[%c5_64, %c0_65, %c0_66] : memref<8x8x32xf32, #tpu.memory_space<vmem>>, vector<1x8x32xf32>
    %152 = vector.shape_cast %151 : vector<1x8x32xf32> to vector<8x32xf32>
    %153 = vector.shape_cast %152 : vector<8x32xf32> to vector<8x1x32xf32>
    %154 = vector.broadcast %144 : vector<1x2x32xf32> to vector<8x2x32xf32>
    %155 = vector.broadcast %150 : vector<8x1x32xf32> to vector<8x2x32xf32>
    %156 = arith.mulf %154, %155 : vector<8x2x32xf32>
    %157 = arith.addf %133, %156 : vector<8x2x32xf32>
    %158 = vector.broadcast %147 : vector<1x2x32xf32> to vector<8x2x32xf32>
    %159 = vector.broadcast %153 : vector<8x1x32xf32> to vector<8x2x32xf32>
    %160 = arith.mulf %158, %159 : vector<8x2x32xf32>
    %161 = arith.subf %157, %160 : vector<8x2x32xf32>
    %162 = vector.broadcast %144 : vector<1x2x32xf32> to vector<8x2x32xf32>
    %163 = vector.broadcast %153 : vector<8x1x32xf32> to vector<8x2x32xf32>
    %164 = arith.mulf %162, %163 : vector<8x2x32xf32>
    %165 = arith.addf %141, %164 : vector<8x2x32xf32>
    %166 = vector.broadcast %147 : vector<1x2x32xf32> to vector<8x2x32xf32>
    %167 = vector.broadcast %150 : vector<8x1x32xf32> to vector<8x2x32xf32>
    %168 = arith.mulf %166, %167 : vector<8x2x32xf32>
    %169 = arith.addf %165, %168 : vector<8x2x32xf32>
    %c6 = arith.constant 6 : index
    %c0_67 = arith.constant 0 : index
    %c0_68 = arith.constant 0 : index
    %170 = vector.load %arg1[%c6, %c0_67, %c0_68] : memref<8x2x32xf32, #tpu.memory_space<vmem>>, vector<1x2x32xf32>
    %171 = vector.shape_cast %170 : vector<1x2x32xf32> to vector<2x32xf32>
    %172 = vector.shape_cast %171 : vector<2x32xf32> to vector<1x2x32xf32>
    %c6_69 = arith.constant 6 : index
    %c0_70 = arith.constant 0 : index
    %c0_71 = arith.constant 0 : index
    %173 = vector.load %arg2[%c6_69, %c0_70, %c0_71] : memref<8x2x32xf32, #tpu.memory_space<vmem>>, vector<1x2x32xf32>
    %174 = vector.shape_cast %173 : vector<1x2x32xf32> to vector<2x32xf32>
    %175 = vector.shape_cast %174 : vector<2x32xf32> to vector<1x2x32xf32>
    %c6_72 = arith.constant 6 : index
    %c0_73 = arith.constant 0 : index
    %c0_74 = arith.constant 0 : index
    %176 = vector.load %arg3[%c6_72, %c0_73, %c0_74] : memref<8x8x32xf32, #tpu.memory_space<vmem>>, vector<1x8x32xf32>
    %177 = vector.shape_cast %176 : vector<1x8x32xf32> to vector<8x32xf32>
    %178 = vector.shape_cast %177 : vector<8x32xf32> to vector<8x1x32xf32>
    %c6_75 = arith.constant 6 : index
    %c0_76 = arith.constant 0 : index
    %c0_77 = arith.constant 0 : index
    %179 = vector.load %arg4[%c6_75, %c0_76, %c0_77] : memref<8x8x32xf32, #tpu.memory_space<vmem>>, vector<1x8x32xf32>
    %180 = vector.shape_cast %179 : vector<1x8x32xf32> to vector<8x32xf32>
    %181 = vector.shape_cast %180 : vector<8x32xf32> to vector<8x1x32xf32>
    %182 = vector.broadcast %172 : vector<1x2x32xf32> to vector<8x2x32xf32>
    %183 = vector.broadcast %178 : vector<8x1x32xf32> to vector<8x2x32xf32>
    %184 = arith.mulf %182, %183 : vector<8x2x32xf32>
    %185 = arith.addf %161, %184 : vector<8x2x32xf32>
    %186 = vector.broadcast %175 : vector<1x2x32xf32> to vector<8x2x32xf32>
    %187 = vector.broadcast %181 : vector<8x1x32xf32> to vector<8x2x32xf32>
    %188 = arith.mulf %186, %187 : vector<8x2x32xf32>
    %189 = arith.subf %185, %188 : vector<8x2x32xf32>
    %190 = vector.broadcast %172 : vector<1x2x32xf32> to vector<8x2x32xf32>
    %191 = vector.broadcast %181 : vector<8x1x32xf32> to vector<8x2x32xf32>
    %192 = arith.mulf %190, %191 : vector<8x2x32xf32>
    %193 = arith.addf %169, %192 : vector<8x2x32xf32>
    %194 = vector.broadcast %175 : vector<1x2x32xf32> to vector<8x2x32xf32>
    %195 = vector.broadcast %178 : vector<8x1x32xf32> to vector<8x2x32xf32>
    %196 = arith.mulf %194, %195 : vector<8x2x32xf32>
    %197 = arith.addf %193, %196 : vector<8x2x32xf32>
    %c7 = arith.constant 7 : index
    %c0_78 = arith.constant 0 : index
    %c0_79 = arith.constant 0 : index
    %198 = vector.load %arg1[%c7, %c0_78, %c0_79] : memref<8x2x32xf32, #tpu.memory_space<vmem>>, vector<1x2x32xf32>
    %199 = vector.shape_cast %198 : vector<1x2x32xf32> to vector<2x32xf32>
    %200 = vector.shape_cast %199 : vector<2x32xf32> to vector<1x2x32xf32>
    %c7_80 = arith.constant 7 : index
    %c0_81 = arith.constant 0 : index
    %c0_82 = arith.constant 0 : index
    %201 = vector.load %arg2[%c7_80, %c0_81, %c0_82] : memref<8x2x32xf32, #tpu.memory_space<vmem>>, vector<1x2x32xf32>
    %202 = vector.shape_cast %201 : vector<1x2x32xf32> to vector<2x32xf32>
    %203 = vector.shape_cast %202 : vector<2x32xf32> to vector<1x2x32xf32>
    %c7_83 = arith.constant 7 : index
    %c0_84 = arith.constant 0 : index
    %c0_85 = arith.constant 0 : index
    %204 = vector.load %arg3[%c7_83, %c0_84, %c0_85] : memref<8x8x32xf32, #tpu.memory_space<vmem>>, vector<1x8x32xf32>
    %205 = vector.shape_cast %204 : vector<1x8x32xf32> to vector<8x32xf32>
    %206 = vector.shape_cast %205 : vector<8x32xf32> to vector<8x1x32xf32>
    %c7_86 = arith.constant 7 : index
    %c0_87 = arith.constant 0 : index
    %c0_88 = arith.constant 0 : index
    %207 = vector.load %arg4[%c7_86, %c0_87, %c0_88] : memref<8x8x32xf32, #tpu.memory_space<vmem>>, vector<1x8x32xf32>
    %208 = vector.shape_cast %207 : vector<1x8x32xf32> to vector<8x32xf32>
    %209 = vector.shape_cast %208 : vector<8x32xf32> to vector<8x1x32xf32>
    %210 = vector.broadcast %200 : vector<1x2x32xf32> to vector<8x2x32xf32>
    %211 = vector.broadcast %206 : vector<8x1x32xf32> to vector<8x2x32xf32>
    %212 = arith.mulf %210, %211 : vector<8x2x32xf32>
    %213 = arith.addf %189, %212 : vector<8x2x32xf32>
    %214 = vector.broadcast %203 : vector<1x2x32xf32> to vector<8x2x32xf32>
    %215 = vector.broadcast %209 : vector<8x1x32xf32> to vector<8x2x32xf32>
    %216 = arith.mulf %214, %215 : vector<8x2x32xf32>
    %217 = arith.subf %213, %216 : vector<8x2x32xf32>
    %218 = vector.broadcast %200 : vector<1x2x32xf32> to vector<8x2x32xf32>
    %219 = vector.broadcast %209 : vector<8x1x32xf32> to vector<8x2x32xf32>
    %220 = arith.mulf %218, %219 : vector<8x2x32xf32>
    %221 = arith.addf %197, %220 : vector<8x2x32xf32>
    %222 = vector.broadcast %203 : vector<1x2x32xf32> to vector<8x2x32xf32>
    %223 = vector.broadcast %206 : vector<8x1x32xf32> to vector<8x2x32xf32>
    %224 = arith.mulf %222, %223 : vector<8x2x32xf32>
    %225 = arith.addf %221, %224 : vector<8x2x32xf32>
    %c0_89 = arith.constant 0 : index
    %c0_90 = arith.constant 0 : index
    %c0_91 = arith.constant 0 : index
    %226 = vector.load %arg5[%c0_89, %c0_90, %c0_91] : memref<8x2x32xf32, #tpu.memory_space<vmem>>, vector<8x2x32xf32>
    tpu.vector_store %arg5[%c0_89, %c0_90, %c0_91], %217 {strides = array<i32>} : memref<8x2x32xf32, #tpu.memory_space<vmem>>, vector<8x2x32xf32>,
    %c0_92 = arith.constant 0 : index
    %c0_93 = arith.constant 0 : index
    %c0_94 = arith.constant 0 : index
    %227 = vector.load %arg6[%c0_92, %c0_93, %c0_94] : memref<8x2x32xf32, #tpu.memory_space<vmem>>, vector<8x2x32xf32>
    tpu.vector_store %arg6[%c0_92, %c0_93, %c0_94], %225 {strides = array<i32>} : memref<8x2x32xf32, #tpu.memory_space<vmem>>, vector<8x2x32xf32>,
    return
  }
  func.func @transform_0(%arg0: i32) -> (i32, i32, i32) {
    %c0_i32 = arith.constant 0 : i32
    %c0_i32_0 = arith.constant 0 : i32
    %c0_i32_1 = arith.constant 0 : i32
    return %c0_i32, %c0_i32_0, %arg0 : i32, i32, i32
  }
  func.func @transform_1(%arg0: i32) -> (i32, i32, i32) {
    %c0_i32 = arith.constant 0 : i32
    %c0_i32_0 = arith.constant 0 : i32
    %c0_i32_1 = arith.constant 0 : i32
    return %c0_i32, %c0_i32_0, %arg0 : i32, i32, i32
  }
  func.func @transform_2(%arg0: i32) -> (i32, i32, i32) {
    %c0_i32 = arith.constant 0 : i32
    %c0_i32_0 = arith.constant 0 : i32
    %c0_i32_1 = arith.constant 0 : i32
    return %c0_i32, %c0_i32_0, %arg0 : i32, i32, i32
  }
  func.func @transform_3(%arg0: i32) -> (i32, i32, i32) {
    %c0_i32 = arith.constant 0 : i32
    %c0_i32_0 = arith.constant 0 : i32
    %c0_i32_1 = arith.constant 0 : i32
    return %c0_i32, %c0_i32_0, %arg0 : i32, i32, i32
  }
  func.func @transform_4(%arg0: i32) -> (i32, i32, i32) {
    %c0_i32 = arith.constant 0 : i32
    %c0_i32_0 = arith.constant 0 : i32
    %c0_i32_1 = arith.constant 0 : i32
    return %c0_i32, %c0_i32_0, %arg0 : i32, i32, i32
  }
  func.func @transform_5(%arg0: i32) -> (i32, i32, i32) {
    %c0_i32 = arith.constant 0 : i32
    %c0_i32_0 = arith.constant 0 : i32
    %c0_i32_1 = arith.constant 0 : i32
    return %c0_i32, %c0_i32_0, %arg0 : i32, i32, i32
  }
}

module attributes {stable_mosaic.version = 11 : i64} {
  func.func @_pointwise_kernel(%arg0: i32, %arg1: memref<8x640xbf16, #tpu.memory_space<vmem>>, %arg2: memref<8x8xf32, #tpu.memory_space<vmem>>, %arg3: memref<8x1xf32, #tpu.memory_space<vmem>>, %arg4: memref<8x640xbf16, #tpu.memory_space<vmem>>, %arg5: memref<8x640xbf16, #tpu.memory_space<vmem>>) attributes {dimension_semantics = [#tpu.dimension_semantics<parallel>], iteration_bounds = array<i64: 2>, scalar_prefetch = 0 : i64, scratch_operands = 0 : i64, tpu.core_type = #tpu.core_type<tc>, window_params = [{transform_indices = @transform_0, window_bounds = array<i64: 8, 640>}, {pipeline_mode = #tpu.pipeline_mode<synchronous>, transform_indices = @transform_1, window_bounds = array<i64: 8, 8>}, {pipeline_mode = #tpu.pipeline_mode<synchronous>, transform_indices = @transform_2, window_bounds = array<i64: 8, 1>}, {transform_indices = @transform_3, window_bounds = array<i64: 8, 640>}, {transform_indices = @transform_4, window_bounds = array<i64: 8, 640>}]} {
    %c0 = arith.constant 0 : index
    %c0_0 = arith.constant 0 : index
    %0 = vector.load %arg1[%c0, %c0_0] : memref<8x640xbf16, #tpu.memory_space<vmem>>, vector<8x640xbf16>
    %c0_1 = arith.constant 0 : index
    %c0_2 = arith.constant 0 : index
    %1 = vector.load %arg2[%c0_1, %c0_2] : memref<8x8xf32, #tpu.memory_space<vmem>>, vector<8x8xf32>
    %2 = arith.truncf %1 : vector<8x8xf32> to vector<8x8xbf16>
    %cst = arith.constant dense<0.000000e+00> : vector<8x640xf32>
    %3 = tpu.matmul %2, %0, %cst {dimension_numbers = #tpu.dot_dimension_numbers<[1], [0], [0], [1], [0, 0, 1, 1], [], []>} : vector<8x8xbf16>, vector<8x640xbf16>, vector<8x640xf32> -> vector<8x640xf32>
    %c0_3 = arith.constant 0 : index
    %c0_4 = arith.constant 0 : index
    %4 = vector.load %arg3[%c0_3, %c0_4] : memref<8x1xf32, #tpu.memory_space<vmem>>, vector<8x1xf32>
    %5 = vector.broadcast %4 : vector<8x1xf32> to vector<8x640xf32>
    %6 = arith.addf %3, %5 : vector<8x640xf32>
    %c0_5 = arith.constant 0 : index
    %c0_6 = arith.constant 0 : index
    %7 = vector.load %arg4[%c0_5, %c0_6] : memref<8x640xbf16, #tpu.memory_space<vmem>>, vector<8x640xbf16>
    %8 = arith.extf %7 : vector<8x640xbf16> to vector<8x640xf32>
    %9 = arith.addf %6, %8 : vector<8x640xf32>
    %cst_7 = arith.constant 5.000000e-01 : f32
    %10 = vector.broadcast %cst_7 : f32 to vector<8x640xf32>
    %11 = arith.mulf %10, %9 : vector<8x640xf32>
    %cst_8 = arith.constant 4.471500e-02 : f32
    %12 = vector.broadcast %cst_8 : f32 to vector<8x640xf32>
    %13 = arith.mulf %12, %9 : vector<8x640xf32>
    %14 = arith.mulf %13, %9 : vector<8x640xf32>
    %15 = arith.mulf %14, %9 : vector<8x640xf32>
    %16 = arith.addf %9, %15 : vector<8x640xf32>
    %cst_9 = arith.constant 0.797884583 : f32
    %17 = vector.broadcast %cst_9 : f32 to vector<8x640xf32>
    %18 = arith.mulf %17, %16 : vector<8x640xf32>
    %19 = math.tanh %18 : vector<8x640xf32>
    %cst_10 = arith.constant 1.000000e+00 : f32
    %20 = vector.broadcast %cst_10 : f32 to vector<8x640xf32>
    %21 = arith.addf %20, %19 : vector<8x640xf32>
    %22 = arith.mulf %11, %21 : vector<8x640xf32>
    %23 = arith.truncf %22 : vector<8x640xf32> to vector<8x640xbf16>
    %c0_11 = arith.constant 0 : index
    %c0_12 = arith.constant 0 : index
    %24 = vector.load %arg5[%c0_11, %c0_12] : memref<8x640xbf16, #tpu.memory_space<vmem>>, vector<8x640xbf16>
    tpu.vector_store %arg5[%c0_11, %c0_12], %23 {strides = array<i32>} : memref<8x640xbf16, #tpu.memory_space<vmem>>, vector<8x640xbf16>,
    return
  }
  func.func @transform_0(%arg0: i32) -> (i32, i32) {
    %c0_i32 = arith.constant 0 : i32
    %c0_i32_0 = arith.constant 0 : i32
    return %c0_i32, %arg0 : i32, i32
  }
  func.func @transform_1(%arg0: i32) -> (i32, i32) {
    %c0_i32 = arith.constant 0 : i32
    %c0_i32_0 = arith.constant 0 : i32
    %c0_i32_1 = arith.constant 0 : i32
    return %c0_i32, %c0_i32_0 : i32, i32
  }
  func.func @transform_2(%arg0: i32) -> (i32, i32) {
    %c0_i32 = arith.constant 0 : i32
    %c0_i32_0 = arith.constant 0 : i32
    %c0_i32_1 = arith.constant 0 : i32
    return %c0_i32, %c0_i32_0 : i32, i32
  }
  func.func @transform_3(%arg0: i32) -> (i32, i32) {
    %c0_i32 = arith.constant 0 : i32
    %c0_i32_0 = arith.constant 0 : i32
    return %c0_i32, %arg0 : i32, i32
  }
  func.func @transform_4(%arg0: i32) -> (i32, i32) {
    %c0_i32 = arith.constant 0 : i32
    %c0_i32_0 = arith.constant 0 : i32
    return %c0_i32, %arg0 : i32, i32
  }
}

module attributes {stable_mosaic.version = 11 : i64} {
  func.func @_pointwise_kernel(%arg0: i32, %arg1: memref<8x640xbf16, #tpu.memory_space<vmem>>, %arg2: memref<8x8xf32, #tpu.memory_space<vmem>>, %arg3: memref<8x1xf32, #tpu.memory_space<vmem>>, %arg4: memref<8x640xbf16, #tpu.memory_space<vmem>>, %arg5: memref<8x640xbf16, #tpu.memory_space<vmem>>) attributes {dimension_semantics = [#tpu.dimension_semantics<parallel>], iteration_bounds = array<i64: 2>, scalar_prefetch = 0 : i64, scratch_operands = 0 : i64, tpu.core_type = #tpu.core_type<tc>, window_params = [{transform_indices = @transform_0, window_bounds = array<i64: 8, 640>}, {pipeline_mode = #tpu.pipeline_mode<synchronous>, transform_indices = @transform_1, window_bounds = array<i64: 8, 8>}, {pipeline_mode = #tpu.pipeline_mode<synchronous>, transform_indices = @transform_2, window_bounds = array<i64: 8, 1>}, {transform_indices = @transform_3, window_bounds = array<i64: 8, 640>}, {transform_indices = @transform_4, window_bounds = array<i64: 8, 640>}]} {
    %c0 = arith.constant 0 : index
    %c0_0 = arith.constant 0 : index
    %0 = vector.load %arg1[%c0, %c0_0] : memref<8x640xbf16, #tpu.memory_space<vmem>>, vector<8x640xbf16>
    %c0_1 = arith.constant 0 : index
    %c0_2 = arith.constant 0 : index
    %1 = vector.load %arg2[%c0_1, %c0_2] : memref<8x8xf32, #tpu.memory_space<vmem>>, vector<8x8xf32>
    %2 = arith.truncf %1 : vector<8x8xf32> to vector<8x8xbf16>
    %cst = arith.constant dense<0.000000e+00> : vector<8x640xf32>
    %3 = tpu.matmul %2, %0, %cst {dimension_numbers = #tpu.dot_dimension_numbers<[1], [0], [0], [1], [0, 0, 1, 1], [], []>} : vector<8x8xbf16>, vector<8x640xbf16>, vector<8x640xf32> -> vector<8x640xf32>
    %c0_3 = arith.constant 0 : index
    %c0_4 = arith.constant 0 : index
    %4 = vector.load %arg3[%c0_3, %c0_4] : memref<8x1xf32, #tpu.memory_space<vmem>>, vector<8x1xf32>
    %5 = vector.broadcast %4 : vector<8x1xf32> to vector<8x640xf32>
    %6 = arith.addf %3, %5 : vector<8x640xf32>
    %c0_5 = arith.constant 0 : index
    %c0_6 = arith.constant 0 : index
    %7 = vector.load %arg4[%c0_5, %c0_6] : memref<8x640xbf16, #tpu.memory_space<vmem>>, vector<8x640xbf16>
    %8 = arith.extf %7 : vector<8x640xbf16> to vector<8x640xf32>
    %9 = arith.addf %6, %8 : vector<8x640xf32>
    %10 = arith.truncf %9 : vector<8x640xf32> to vector<8x640xbf16>
    %c0_7 = arith.constant 0 : index
    %c0_8 = arith.constant 0 : index
    %11 = vector.load %arg5[%c0_7, %c0_8] : memref<8x640xbf16, #tpu.memory_space<vmem>>, vector<8x640xbf16>
    tpu.vector_store %arg5[%c0_7, %c0_8], %10 {strides = array<i32>} : memref<8x640xbf16, #tpu.memory_space<vmem>>, vector<8x640xbf16>,
    return
  }
  func.func @transform_0(%arg0: i32) -> (i32, i32) {
    %c0_i32 = arith.constant 0 : i32
    %c0_i32_0 = arith.constant 0 : i32
    return %c0_i32, %arg0 : i32, i32
  }
  func.func @transform_1(%arg0: i32) -> (i32, i32) {
    %c0_i32 = arith.constant 0 : i32
    %c0_i32_0 = arith.constant 0 : i32
    %c0_i32_1 = arith.constant 0 : i32
    return %c0_i32, %c0_i32_0 : i32, i32
  }
  func.func @transform_2(%arg0: i32) -> (i32, i32) {
    %c0_i32 = arith.constant 0 : i32
    %c0_i32_0 = arith.constant 0 : i32
    %c0_i32_1 = arith.constant 0 : i32
    return %c0_i32, %c0_i32_0 : i32, i32
  }
  func.func @transform_3(%arg0: i32) -> (i32, i32) {
    %c0_i32 = arith.constant 0 : i32
    %c0_i32_0 = arith.constant 0 : i32
    return %c0_i32, %arg0 : i32, i32
  }
  func.func @transform_4(%arg0: i32) -> (i32, i32) {
    %c0_i32 = arith.constant 0 : i32
    %c0_i32_0 = arith.constant 0 : i32
    return %c0_i32, %arg0 : i32, i32
  }
}

module attributes {stable_mosaic.version = 11 : i64} {
  func.func @_head_kernel(%arg0: i32, %arg1: memref<8x256xbf16, #tpu.memory_space<vmem>>, %arg2: memref<128x8xf32, #tpu.memory_space<vmem>>, %arg3: memref<128x1xf32, #tpu.memory_space<vmem>>, %arg4: memref<1x128xf32, #tpu.memory_space<vmem>>, %arg5: memref<1x1xf32, #tpu.memory_space<vmem>>, %arg6: memref<1x256xf32, #tpu.memory_space<vmem>>, %arg7: memref<1x256xf32, #tpu.memory_space<vmem>>) attributes {dimension_semantics = [#tpu.dimension_semantics<parallel>], iteration_bounds = array<i64: 2>, scalar_prefetch = 0 : i64, scratch_operands = 0 : i64, tpu.core_type = #tpu.core_type<tc>, window_params = [{transform_indices = @transform_0, window_bounds = array<i64: 8, 256>}, {pipeline_mode = #tpu.pipeline_mode<synchronous>, transform_indices = @transform_1, window_bounds = array<i64: 128, 8>}, {pipeline_mode = #tpu.pipeline_mode<synchronous>, transform_indices = @transform_2, window_bounds = array<i64: 128, 1>}, {pipeline_mode = #tpu.pipeline_mode<synchronous>, transform_indices = @transform_3, window_bounds = array<i64: 1, 128>}, {pipeline_mode = #tpu.pipeline_mode<synchronous>, transform_indices = @transform_4, window_bounds = array<i64: 1, 1>}, {transform_indices = @transform_5, window_bounds = array<i64: 1, 256>}, {transform_indices = @transform_6, window_bounds = array<i64: 1, 256>}]} {
    %c0 = arith.constant 0 : index
    %c0_0 = arith.constant 0 : index
    %0 = vector.load %arg1[%c0, %c0_0] : memref<8x256xbf16, #tpu.memory_space<vmem>>, vector<8x256xbf16>
    %c0_1 = arith.constant 0 : index
    %c0_2 = arith.constant 0 : index
    %1 = vector.load %arg2[%c0_1, %c0_2] : memref<128x8xf32, #tpu.memory_space<vmem>>, vector<128x8xf32>
    %2 = arith.truncf %1 : vector<128x8xf32> to vector<128x8xbf16>
    %cst = arith.constant dense<0.000000e+00> : vector<128x256xf32>
    %3 = tpu.matmul %2, %0, %cst {dimension_numbers = #tpu.dot_dimension_numbers<[1], [0], [0], [1], [0, 0, 1, 1], [], []>} : vector<128x8xbf16>, vector<8x256xbf16>, vector<128x256xf32> -> vector<128x256xf32>
    %c0_3 = arith.constant 0 : index
    %c0_4 = arith.constant 0 : index
    %4 = vector.load %arg3[%c0_3, %c0_4] : memref<128x1xf32, #tpu.memory_space<vmem>>, vector<128x1xf32>
    %5 = vector.broadcast %4 : vector<128x1xf32> to vector<128x256xf32>
    %6 = arith.addf %3, %5 : vector<128x256xf32>
    %cst_5 = arith.constant 5.000000e-01 : f32
    %7 = vector.broadcast %cst_5 : f32 to vector<128x256xf32>
    %8 = arith.mulf %7, %6 : vector<128x256xf32>
    %cst_6 = arith.constant 4.471500e-02 : f32
    %9 = vector.broadcast %cst_6 : f32 to vector<128x256xf32>
    %10 = arith.mulf %9, %6 : vector<128x256xf32>
    %11 = arith.mulf %10, %6 : vector<128x256xf32>
    %12 = arith.mulf %11, %6 : vector<128x256xf32>
    %13 = arith.addf %6, %12 : vector<128x256xf32>
    %cst_7 = arith.constant 0.797884583 : f32
    %14 = vector.broadcast %cst_7 : f32 to vector<128x256xf32>
    %15 = arith.mulf %14, %13 : vector<128x256xf32>
    %16 = math.tanh %15 : vector<128x256xf32>
    %cst_8 = arith.constant 1.000000e+00 : f32
    %17 = vector.broadcast %cst_8 : f32 to vector<128x256xf32>
    %18 = arith.addf %17, %16 : vector<128x256xf32>
    %19 = arith.mulf %8, %18 : vector<128x256xf32>
    %c0_9 = arith.constant 0 : index
    %c0_10 = arith.constant 0 : index
    %20 = vector.load %arg4[%c0_9, %c0_10] : memref<1x128xf32, #tpu.memory_space<vmem>>, vector<1x128xf32>
    %21 = arith.truncf %20 : vector<1x128xf32> to vector<1x128xbf16>
    %22 = arith.truncf %19 : vector<128x256xf32> to vector<128x256xbf16>
    %cst_11 = arith.constant dense<0.000000e+00> : vector<1x256xf32>
    %23 = tpu.matmul %21, %22, %cst_11 {dimension_numbers = #tpu.dot_dimension_numbers<[1], [0], [0], [1], [0, 0, 1, 1], [], []>} : vector<1x128xbf16>, vector<128x256xbf16>, vector<1x256xf32> -> vector<1x256xf32>
    %c0_12 = arith.constant 0 : index
    %c0_13 = arith.constant 0 : index
    %24 = vector.load %arg5[%c0_12, %c0_13] : memref<1x1xf32, #tpu.memory_space<vmem>>, vector<1x1xf32>
    %25 = vector.broadcast %24 : vector<1x1xf32> to vector<1x256xf32>
    %26 = arith.addf %23, %25 : vector<1x256xf32>
    %c0_14 = arith.constant 0 : index
    %c0_15 = arith.constant 0 : index
    %27 = vector.load %arg6[%c0_14, %c0_15] : memref<1x256xf32, #tpu.memory_space<vmem>>, vector<1x256xf32>
    %28 = arith.addf %26, %27 : vector<1x256xf32>
    %c0_16 = arith.constant 0 : index
    %c0_17 = arith.constant 0 : index
    %29 = vector.load %arg7[%c0_16, %c0_17] : memref<1x256xf32, #tpu.memory_space<vmem>>, vector<1x256xf32>
    tpu.vector_store %arg7[%c0_16, %c0_17], %28 {strides = array<i32>} : memref<1x256xf32, #tpu.memory_space<vmem>>, vector<1x256xf32>,
    return
  }
  func.func @transform_0(%arg0: i32) -> (i32, i32) {
    %c0_i32 = arith.constant 0 : i32
    %c0_i32_0 = arith.constant 0 : i32
    return %c0_i32, %arg0 : i32, i32
  }
  func.func @transform_1(%arg0: i32) -> (i32, i32) {
    %c0_i32 = arith.constant 0 : i32
    %c0_i32_0 = arith.constant 0 : i32
    %c0_i32_1 = arith.constant 0 : i32
    return %c0_i32, %c0_i32_0 : i32, i32
  }
  func.func @transform_2(%arg0: i32) -> (i32, i32) {
    %c0_i32 = arith.constant 0 : i32
    %c0_i32_0 = arith.constant 0 : i32
    %c0_i32_1 = arith.constant 0 : i32
    return %c0_i32, %c0_i32_0 : i32, i32
  }
  func.func @transform_3(%arg0: i32) -> (i32, i32) {
    %c0_i32 = arith.constant 0 : i32
    %c0_i32_0 = arith.constant 0 : i32
    %c0_i32_1 = arith.constant 0 : i32
    return %c0_i32, %c0_i32_0 : i32, i32
  }
  func.func @transform_4(%arg0: i32) -> (i32, i32) {
    %c0_i32 = arith.constant 0 : i32
    %c0_i32_0 = arith.constant 0 : i32
    %c0_i32_1 = arith.constant 0 : i32
    return %c0_i32, %c0_i32_0 : i32, i32
  }
  func.func @transform_5(%arg0: i32) -> (i32, i32) {
    %c0_i32 = arith.constant 0 : i32
    %c0_i32_0 = arith.constant 0 : i32
    return %c0_i32, %arg0 : i32, i32
  }
  func.func @transform_6(%arg0: i32) -> (i32, i32) {
    %c0_i32 = arith.constant 0 : i32
    %c0_i32_0 = arith.constant 0 : i32
    return %c0_i32, %arg0 : i32, i32
  }
}

</mosaic_0001>

<llo_original>
// kernel: fno_forward.10
$region0: #{fno_forward.10}
  #allocation0 [shape = 'u32[]', space=smem, size = 0x4, offset = 0x4, fixed_abs, tag = 'smem constant byte address 0x4 - core index']
  #allocation1 [shape = 'u32[144,128]{1,0:T(1,128)}', space=vmem, size = 0x12000, scoped, tag = 'internal scratch']
  %s0 = inlined_call_operand.vmem [shape: f32[1,512], index: 0, kind: input, shape index: {}]
  %s1 = inlined_call_operand.vmem [shape: f32[8,1], index: 1, kind: input, shape index: {}]
  %s2 = inlined_call_operand.vmem [shape: f32[8,1], index: 2, kind: input, shape index: {}]
  %s3 = inlined_call_operand.vmem [shape: bf16[8,512], index: 3, kind: output, shape index: {}]
  %s4 = sld [smem:[#allocation0]]
  $region45: #{fno_forward.10} parent=0
    _
  %s6 = ssub.s32 1, %s4
  %s7 = scalar_select 0, %s6, %s4
  loop: start=0, step=1, limit=4
  $region2: #{fno_forward.10} parent=0 // loop_pre_header
    _
  $region3: #{fno_forward.10} parent=0 // loop_header
    %s9 = sphi 0, %s13
    %p10 = scmp.ge.s32.totalorder %s9, 4
    %s19 = sphi 0, %s21
    %s22 = sphi 0, %s19
    %s23 = sphi 0, %s22
    %s39 = sphi 0, %s23
    %s43 = sphi 0, %s43
    %s45 = sphi 0, %s43
    %s46 = sphi 0, %s45
    %s60 = sphi 0, %s46
    %s64 = sphi 0, %s64
    %s66 = sphi 0, %s64
    %s67 = sphi 0, %s66
    %s81 = sphi 0, %s67
    %s87 = sphi 0, %s89
    %s90 = sphi 0, %s87
    %s91 = sphi 0, %s90
    %s107 = sphi 0, %s91
  $region4: #{fno_forward.10} parent=0 // loop_header_branch
    %12 = sbr.rel (%p10) target = $region8
  $region5: #{fno_forward.10} parent=0 // loop_body
    %s14 = ssub.s32 %s9, 1
    %s15 = ssub.s32 %s9, 2
    %s16 = sadd.s32 %s9, 1
    %s17 = ssub.s32 %s9, %s16
    %p18 = scmp.eq.s32.totalorder %s17, 0
    %s20 = sadd.s32 %s19, 1
    %s21 = scalar_select %p18, %s19, %s20
    %p24 = pneg %p18
    %p25 = scmp.eq.s32.totalorder %s9, 1
    %p26 = por %p24, %p25
    %p27 = scmp.ne.s32.totalorder %s19, %s22
    %p28 = scmp.eq.s32.totalorder %s9, 0
    %p29 = por %p27, %p28
    %p30 = scmp.ne.s32.totalorder %s19, %s22
    %p31 = scmp.eq.s32.totalorder %s14, 1
    %p32 = por %p30, %p31
    %p33 = scmp.ne.s32.totalorder %s22, %s23
    %p34 = scmp.eq.s32.totalorder %s14, 0
    %p35 = por %p33, %p34
    %p36 = scmp.ne.s32.totalorder %s22, %s23
    %p37 = scmp.eq.s32.totalorder %s15, 1
    %p38 = por %p36, %p37
    %p40 = scmp.ne.s32.totalorder %s23, %s39
    %p41 = scmp.eq.s32.totalorder %s15, 0
    %p42 = por %p40, %p41
    %s44 = sadd.s32 %s43, 1
    %p47 = scmp.eq.s32.totalorder %s9, 1
    %p48 = scmp.ne.s32.totalorder %s43, %s45
    %p49 = scmp.eq.s32.totalorder %s9, 0
    %p50 = por %p48, %p49
    %p51 = scmp.ne.s32.totalorder %s43, %s45
    %p52 = scmp.eq.s32.totalorder %s14, 1
    %p53 = por %p51, %p52
    %p54 = scmp.ne.s32.totalorder %s45, %s46
    %p55 = scmp.eq.s32.totalorder %s14, 0
    %p56 = por %p54, %p55
    %p57 = scmp.ne.s32.totalorder %s45, %s46
    %p58 = scmp.eq.s32.totalorder %s15, 1
    %p59 = por %p57, %p58
    %p61 = scmp.ne.s32.totalorder %s46, %s60
    %p62 = scmp.eq.s32.totalorder %s15, 0
    %p63 = por %p61, %p62
    %s65 = sadd.s32 %s64, 1
    %p68 = scmp.eq.s32.totalorder %s9, 1
    %p69 = scmp.ne.s32.totalorder %s64, %s66
    %p70 = scmp.eq.s32.totalorder %s9, 0
    %p71 = por %p69, %p70
    %p72 = scmp.ne.s32.totalorder %s64, %s66
    %p73 = scmp.eq.s32.totalorder %s14, 1
    %p74 = por %p72, %p73
    %p75 = scmp.ne.s32.totalorder %s66, %s67
    %p76 = scmp.eq.s32.totalorder %s14, 0
    %p77 = por %p75, %p76
    %p78 = scmp.ne.s32.totalorder %s66, %s67
    %p79 = scmp.eq.s32.totalorder %s15, 1
    %p80 = por %p78, %p79
    %p82 = scmp.ne.s32.totalorder %s67, %s81
    %p83 = scmp.eq.s32.totalorder %s15, 0
    %p84 = por %p82, %p83
    %s85 = ssub.s32 %s9, %s16
    %p86 = scmp.eq.s32.totalorder %s85, 0
    %s88 = sadd.s32 %s87, 1
    %s89 = scalar_select %p86, %s87, %s88
    %p92 = pneg %p86
    %p93 = scmp.eq.s32.totalorder %s9, 1
    %p94 = por %p92, %p93
    %p95 = scmp.ne.s32.totalorder %s87, %s90
    %p96 = scmp.eq.s32.totalorder %s9, 0
    %p97 = por %p95, %p96
    %p98 = scmp.ne.s32.totalorder %s87, %s90
    %p99 = scmp.eq.s32.totalorder %s14, 1
    %p100 = por %p98, %p99
    %p101 = scmp.ne.s32.totalorder %s90, %s91
    %p102 = scmp.eq.s32.totalorder %s14, 0
    %p103 = por %p101, %p102
    %p104 = scmp.ne.s32.totalorder %s90, %s91
    %p105 = scmp.eq.s32.totalorder %s15, 1
    %p106 = por %p104, %p105
    %p108 = scmp.ne.s32.totalorder %s91, %s107
    %p109 = scmp.eq.s32.totalorder %s15, 0
    %p110 = por %p108, %p109
    %p111 = scmp.le.s32.totalorder 1, %s9
    %p112 = scmp.lt.s32.totalorder %s9, 3
    %p113 = pnand %p111, %p112
    %p114 = pneg %p113
    // Predicated region
    $region9: #{fno_forward.10} parent=5 // pred_check
      _
    $region10: #{fno_forward.10} parent=5 // pred_check_branch
      %116 = sbr.rel (%p113) target = $region12
    $region11: #{fno_forward.10} parent=5 // pred_region
      %s117 = ssub.s32 %s9, 1
      // Predicated region
      $region13: #{fno_forward.10} parent=11 // pred_check
        %p118 = pneg %p56
      $region14: #{fno_forward.10} parent=11 // pred_check_branch
        %120 = sbr.rel (%p118) target = $region16
      $region15: #{fno_forward.10} parent=11 // pred_region
        _
      $region16: #{fno_forward.10} parent=11 // pred_fallthru
        _
      // Predicated region
      $region17: #{fno_forward.10} parent=11 // pred_check
        %p121 = pneg %p77
      $region18: #{fno_forward.10} parent=11 // pred_check_branch
        %123 = sbr.rel (%p121) target = $region20
      $region19: #{fno_forward.10} parent=11 // pred_region
        _
      $region20: #{fno_forward.10} parent=11 // pred_fallthru
        _
    $region12: #{fno_forward.10} parent=5 // pred_fallthru
      _
    %p124 = scmp.lt.s32.totalorder %s9, 2
    // Predicated region
    $region21: #{fno_forward.10} parent=5 // pred_check
      %p125 = pneg %p124
    $region22: #{fno_forward.10} parent=5 // pred_check_branch
      %127 = sbr.rel (%p125) target = $region24
    $region23: #{fno_forward.10} parent=5 // pred_region
      // Predicated region
      $region25: #{fno_forward.10} parent=23 // pred_check
        %p128 = pneg %p29
      $region26: #{fno_forward.10} parent=23 // pred_check_branch
        %130 = sbr.rel (%p128) target = $region28
      $region27: #{fno_forward.10} parent=23 // pred_region
        %s131 = smul.u32 2, %s9
        %p132 = scmp.lt.s32.totalorder %s131, 3
        %s133 = scalar_select %p132, %s131, 3
        %s134 = scalar_lea.vmem %s0, %s133
        %s135 = smul.u32 2, %s9
      $region28: #{fno_forward.10} parent=23 // pred_fallthru
        _
    $region24: #{fno_forward.10} parent=5 // pred_fallthru
      _
    %p136 = scmp.le.s32.totalorder 1, %s9
    %p137 = scmp.lt.s32.totalorder %s9, 3
    %p138 = pnand %p136, %p137
    %p139 = pneg %p138
    // Predicated region
    $region29: #{fno_forward.10} parent=5 // pred_check
      _
    $region30: #{fno_forward.10} parent=5 // pred_check_branch
      %141 = sbr.rel (%p138) target = $region32
    $region31: #{fno_forward.10} parent=5 // pred_region
      %s142 = ssub.s32 %s9, 1
      %s143 = smul.u32 2, %s14
      %p144 = scmp.lt.s32.totalorder %s143, 3
      %s145 = scalar_select %p144, %s143, 3
      %s146 = scalar_lea.vmem %s0, %s145
      %p147 = pneg %p35
      %p148 = pneg %p32
      %p149 = pneg %p56
      %p150 = pneg %p53
      %p151 = pneg %p77
      %p152 = pneg %p74
      %p153 = pneg %p103
      %p154 = pneg %p100
      %s155 = smul.u32 2, %s14
      %p156 = scmp.lt.s32.totalorder %s155, 3
      %s157 = scalar_select %p156, %s155, 3
      %s158 = smul.addr %s157, 4
      %s159 = scalar_lea.vmem %s3, %s158
      %s160 = smul.u32 2, %s14
      %p161 = scmp.lt.s32.totalorder %s160, 3
      %s162 = scalar_select %p161, %s160, 3
      %s163 = scalar_lea.vmem %s0, %s162
      %s164 = smul.u32 2, %s14
      %s165 = smul.u32 2, %s14
      %p166 = scmp.lt.s32.totalorder %s165, 3
      %s167 = scalar_select %p166, %s165, 3
      %s168 = smul.addr %s167, 4
      %s169 = scalar_lea.vmem %s3, %s168
      %s170 = smul.u32 2, %s14
      %v171 = vld [vmem:[%s163] sm:$0x3]
      %v172 = vld [vmem:[%s1] sm:$0xff]
      %174 = vset.pattern.permute.xlu0 0
      %175 = vperm.xlu0 %174, %v172
      %v176 = vpop.permute.xlu0 %175
      %v179 = vlaneseq
      %v180 = vshrl.u32 %v179, 7
      %v181 = vsub.s32 0, %v180
      %v182 = vrot.slane %v171, %v181
      %v183 = vlaneseq
      %v184 = vshrl.u32 %v183, 7
      %v185 = vsub.s32 1, %v184
      %v186 = vrot.slane %v171, %v185
      %v189 = vmul.f32 %v176, %v182
      %v190 = vmul.f32 %v176, %v186
      %v191 = vld [vmem:[%s2] sm:$0xff]
      %193 = vset.pattern.permute.xlu0 0
      %194 = vperm.xlu0 %193, %v191
      %v195 = vpop.permute.xlu0 %194
      %v197 = vadd.f32 %v189, %v195
      %v198 = vadd.f32 %v190, %v195
      %v199 = vpack.c.bf16 %v197, %v197
      %v200 = vpack.c.bf16 %v198, %v198
      %v203 = vunpack.c.l.b16 %v199
      %v204 = vunpack.c.l.b16 %v200
      %v205 = vpack.c.b16 %v204, %v203
      %207 = vst [vmem:[%s169] sm:$0xff] %v205
      %s208 = smul.u32 2, %s14
      %p209 = scmp.lt.s32.totalorder %s208, 3
      %s210 = scalar_select %p209, %s208, 3
      %s211 = smul.addr %s210, 4
      %s212 = scalar_lea.vmem %s3, %s211
      // Predicated region
      $region33: #{fno_forward.10} parent=31 // pred_check
        %p213 = pneg %p100
      $region34: #{fno_forward.10} parent=31 // pred_check_branch
        %215 = sbr.rel (%p213) target = $region36
      $region35: #{fno_forward.10} parent=31 // pred_region
        %s216 = smul.u32 2, %s14
      $region36: #{fno_forward.10} parent=31 // pred_fallthru
        _
    $region32: #{fno_forward.10} parent=5 // pred_fallthru
      _
    %p217 = scmp.le.s32.totalorder 2, %s9
    // Predicated region
    $region37: #{fno_forward.10} parent=5 // pred_check
      %p218 = pneg %p217
    $region38: #{fno_forward.10} parent=5 // pred_check_branch
      %220 = sbr.rel (%p218) target = $region40
    $region39: #{fno_forward.10} parent=5 // pred_region
      %s221 = ssub.s32 %s9, 2
      // Predicated region
      $region41: #{fno_forward.10} parent=39 // pred_check
        %p222 = pneg %p106
      $region42: #{fno_forward.10} parent=39 // pred_check_branch
        %224 = sbr.rel (%p222) target = $region44
      $region43: #{fno_forward.10} parent=39 // pred_region
        %s225 = smul.u32 2, %s15
        %p226 = scmp.lt.s32.totalorder %s225, 3
        %s227 = scalar_select %p226, %s225, 3
        %s228 = smul.addr %s227, 4
        %s229 = scalar_lea.vmem %s3, %s228
      $region44: #{fno_forward.10} parent=39 // pred_fallthru
        _
    $region40: #{fno_forward.10} parent=5 // pred_fallthru
      _
  $region6: #{fno_forward.10} parent=0 // loop_footer
    %s13 = sadd.s32 1, %s9
  $region7: #{fno_forward.10} parent=0 // loop_footer_branch
    %8 = sbr.rel target = $region3
  $region8: #{fno_forward.10} parent=0 // loop_exit
    _

// kernel: reverse.11
$region0: #{reverse.11}
  %s0 = inlined_call_operand.vmem [shape: f32[8,2,25,12], index: 0, kind: input, shape index: {}]
  %s1 = inlined_call_operand.vmem [shape: f32[8,2,25,12], index: 1, kind: output, shape index: {}]
  $region1: #{reverse.11} parent=0
    #allocation0 [shape = 'u8[196608]{0}', space=vmem, size = 0x30000, scoped, tag = 'operand span for operand 0']
    #allocation1 [shape = 'u8[131072]{0}', space=vmem, size = 0x20000, scoped, tag = 'operand span for operand 1']
    %s2 = scalar_lea.vmem [#allocation0], 8
    // Predicated region
    $region2: #{reverse.11} parent=1 // pred_check
      _
    $region3: #{reverse.11} parent=1 // pred_check_branch
      %4 = sbr.rel (0) target = $region5
    $region4: #{reverse.11} parent=1 // pred_region
      // Predicated region
      $region6: #{reverse.11} parent=4 // pred_check
        _
      $region7: #{reverse.11} parent=4 // pred_check_branch
        %6 = sbr.rel (0) target = $region9
      $region8: #{reverse.11} parent=4 // pred_region
        // Predicated region
        $region21: #{reverse.11} parent=8 // pred_check
          _
        $region22: #{reverse.11} parent=8 // pred_check_branch
          %83 = sbr.rel (0) target = $region24
        $region23: #{reverse.11} parent=8 // pred_region
          loop: start=0, step=1, limit=1
          $region25: #{reverse.11} parent=23 // loop_pre_header
            _
          $region26: #{reverse.11} parent=23 // loop_header
            %s85 = sphi 0, %s89
            %p86 = scmp.ge.s32.totalorder %s85, 1
            %s90 = sphi %s0, %s0
            %s91 = sphi %s2, %s2
          $region27: #{reverse.11} parent=23 // loop_header_branch
            %88 = sbr.rel (%p86) target = $region31
          $region28: #{reverse.11} parent=23 // loop_body
            %v92 = vld [vmem:[%s90] sm:$0xff]
            %93 = vst [vmem:[%s91] sm:$0xff] %v92
            %v94 = vld [vmem:[%s90 + $0x8] sm:$0xff]
            %95 = vst [vmem:[%s91 + $0x8] sm:$0xff] %v94
            %v96 = vld [vmem:[%s90 + $0x10] sm:$0xff]
            %97 = vst [vmem:[%s91 + $0x18] sm:$0xff] %v96
            %v98 = vld [vmem:[%s90 + $0x18] sm:$0xff]
            %99 = vst [vmem:[%s91 + $0x20] sm:$0xff] %v98
            %v100 = vld [vmem:[%s90 + $0x20] sm:$0xff]
            %101 = vst [vmem:[%s91 + $0x30] sm:$0xff] %v100
            %v102 = vld [vmem:[%s90 + $0x28] sm:$0xff]
            %103 = vst [vmem:[%s91 + $0x38] sm:$0xff] %v102
            %v104 = vld [vmem:[%s90 + $0x30] sm:$0xff]
            %105 = vst [vmem:[%s91 + $0x48] sm:$0xff] %v104
            %v106 = vld [vmem:[%s90 + $0x38] sm:$0xff]
            %107 = vst [vmem:[%s91 + $0x50] sm:$0xff] %v106
            %v108 = vld [vmem:[%s90 + $0x40] sm:$0xff]
            %109 = vst [vmem:[%s91 + $0x60] sm:$0xff] %v108
            %v110 = vld [vmem:[%s90 + $0x48] sm:$0xff]
            %111 = vst [vmem:[%s91 + $0x68] sm:$0xff] %v110
            %v112 = vld [vmem:[%s90 + $0x50] sm:$0xff]
            %113 = vst [vmem:[%s91 + $0x78] sm:$0xff] %v112
            %v114 = vld [vmem:[%s90 + $0x58] sm:$0xff]
            %115 = vst [vmem:[%s91 + $0x80] sm:$0xff] %v114
            %v116 = vld [vmem:[%s90 + $0x60] sm:$0xff]
            %117 = vst [vmem:[%s91 + $0x90] sm:$0xff] %v116
            %v118 = vld [vmem:[%s90 + $0x68] sm:$0xff]
            %119 = vst [vmem:[%s91 + $0x98] sm:$0xff] %v118
            %v120 = vld [vmem:[%s90 + $0x70] sm:$0xff]
            %121 = vst [vmem:[%s91 + $0xa8] sm:$0xff] %v120
            %v122 = vld [vmem:[%s90 + $0x78] sm:$0xff]
            %123 = vst [vmem:[%s91 + $0xb0] sm:$0xff] %v122
            %v124 = vld [vmem:[%s90 + $0x80] sm:$0xff]
            %125 = vst [vmem:[%s91 + $0xc0] sm:$0xff] %v124
            %v126 = vld [vmem:[%s90 + $0x88] sm:$0xff]
            %127 = vst [vmem:[%s91 + $0xc8] sm:$0xff] %v126
            %v128 = vld [vmem:[%s90 + $0x90] sm:$0xff]
            %129 = vst [vmem:[%s91 + $0xd8] sm:$0xff] %v128
            %v130 = vld [vmem:[%s90 + $0x98] sm:$0xff]
            %131 = vst [vmem:[%s91 + $0xe0] sm:$0xff] %v130
            %v132 = vld [vmem:[%s90 + $0xa0] sm:$0xff]
            %133 = vst [vmem:[%s91 + $0xf0] sm:$0xff] %v132
            %v134 = vld [vmem:[%s90 + $0xa8] sm:$0xff]
            %135 = vst [vmem:[%s91 + $0xf8] sm:$0xff] %v134
            %v136 = vld [vmem:[%s90 + $0xb0] sm:$0xff]
            %137 = vst [vmem:[%s91 + $0x108] sm:$0xff] %v136
            %v138 = vld [vmem:[%s90 + $0xb8] sm:$0xff]
            %139 = vst [vmem:[%s91 + $0x110] sm:$0xff] %v138
            %v140 = vld [vmem:[%s90 + $0xc0] sm:$0xff]
            %141 = vst [vmem:[%s91 + $0x120] sm:$0xff] %v140
            %v142 = vld [vmem:[%s90 + $0xc8] sm:$0xff]
            %143 = vst [vmem:[%s91 + $0x128] sm:$0xff] %v142
            %v144 = vld [vmem:[%s90 + $0xd0] sm:$0xff]
            %145 = vst [vmem:[%s91 + $0x138] sm:$0xff] %v144
            %v146 = vld [vmem:[%s90 + $0xd8] sm:$0xff]
            %147 = vst [vmem:[%s91 + $0x140] sm:$0xff] %v146
            %v148 = vld [vmem:[%s90 + $0xe0] sm:$0xff]
            %149 = vst [vmem:[%s91 + $0x150] sm:$0xff] %v148
            %v150 = vld [vmem:[%s90 + $0xe8] sm:$0xff]
            %151 = vst [vmem:[%s91 + $0x158] sm:$0xff] %v150
            %v152 = vld [vmem:[%s90 + $0xf0] sm:$0xff]
            %153 = vst [vmem:[%s91 + $0x168] sm:$0xff] %v152
            %v154 = vld [vmem:[%s90 + $0xf8] sm:$0xff]
            %155 = vst [vmem:[%s91 + $0x170] sm:$0xff] %v154
          $region29: #{reverse.11} parent=23 // loop_footer
            %s89 = sadd.s32 1, %s85
          $region30: #{reverse.11} parent=23 // loop_footer_branch
            %84 = sbr.rel target = $region26
          $region31: #{reverse.11} parent=23 // loop_exit
            _
        $region24: #{reverse.11} parent=8 // pred_fallthru
          _
        // Predicated region
        $region32: #{reverse.11} parent=8 // pred_check
          _
        $region33: #{reverse.11} parent=8 // pred_check_branch
          %157 = sbr.rel target = $region35
        $region34: #{reverse.11} parent=8 // pred_region
          _
        $region35: #{reverse.11} parent=8 // pred_fallthru
          _
      $region9: #{reverse.11} parent=4 // pred_fallthru
        _
      // Predicated region
      $region10: #{reverse.11} parent=4 // pred_check
        _
      $region11: #{reverse.11} parent=4 // pred_check_branch
        %8 = sbr.rel target = $region13
      $region12: #{reverse.11} parent=4 // pred_region
        loop: start=0, step=1, limit=1
        $region14: #{reverse.11} parent=12 // loop_pre_header
          _
        $region15: #{reverse.11} parent=12 // loop_header
          %s11 = sphi 0, %s15
          %p12 = scmp.ge.s32.totalorder %s11, 1
          %s16 = sphi %s0, %s0
          %s17 = sphi %s2, %s2
        $region16: #{reverse.11} parent=12 // loop_header_branch
          %14 = sbr.rel (%p12) target = $region20
        $region17: #{reverse.11} parent=12 // loop_body
          %v18 = vld [vmem:[%s16] sm:$0xff]
          %19 = vst [vmem:[%s17] sm:$0xff] %v18
          %v20 = vld [vmem:[%s16 + $0x8] sm:$0xff]
          %21 = vst [vmem:[%s17 + $0x8] sm:$0xff] %v20
          %v22 = vld [vmem:[%s16 + $0x10] sm:$0xff]
          %23 = vst [vmem:[%s17 + $0x18] sm:$0xff] %v22
          %v24 = vld [vmem:[%s16 + $0x18] sm:$0xff]
          %25 = vst [vmem:[%s17 + $0x20] sm:$0xff] %v24
          %v26 = vld [vmem:[%s16 + $0x20] sm:$0xff]
          %27 = vst [vmem:[%s17 + $0x30] sm:$0xff] %v26
          %v28 = vld [vmem:[%s16 + $0x28] sm:$0xff]
          %29 = vst [vmem:[%s17 + $0x38] sm:$0xff] %v28
          %v30 = vld [vmem:[%s16 + $0x30] sm:$0xff]
          %31 = vst [vmem:[%s17 + $0x48] sm:$0xff] %v30
          %v32 = vld [vmem:[%s16 + $0x38] sm:$0xff]
          %33 = vst [vmem:[%s17 + $0x50] sm:$0xff] %v32
          %v34 = vld [vmem:[%s16 + $0x40] sm:$0xff]
          %35 = vst [vmem:[%s17 + $0x60] sm:$0xff] %v34
          %v36 = vld [vmem:[%s16 + $0x48] sm:$0xff]
          %37 = vst [vmem:[%s17 + $0x68] sm:$0xff] %v36
          %v38 = vld [vmem:[%s16 + $0x50] sm:$0xff]
          %39 = vst [vmem:[%s17 + $0x78] sm:$0xff] %v38
          %v40 = vld [vmem:[%s16 + $0x58] sm:$0xff]
          %41 = vst [vmem:[%s17 + $0x80] sm:$0xff] %v40
          %v42 = vld [vmem:[%s16 + $0x60] sm:$0xff]
          %43 = vst [vmem:[%s17 + $0x90] sm:$0xff] %v42
          %v44 = vld [vmem:[%s16 + $0x68] sm:$0xff]
          %45 = vst [vmem:[%s17 + $0x98] sm:$0xff] %v44
          %v46 = vld [vmem:[%s16 + $0x70] sm:$0xff]
          %47 = vst [vmem:[%s17 + $0xa8] sm:$0xff] %v46
          %v48 = vld [vmem:[%s16 + $0x78] sm:$0xff]
          %49 = vst [vmem:[%s17 + $0xb0] sm:$0xff] %v48
          %v50 = vld [vmem:[%s16 + $0x80] sm:$0xff]
          %51 = vst [vmem:[%s17 + $0xc0] sm:$0xff] %v50
          %v52 = vld [vmem:[%s16 + $0x88] sm:$0xff]
          %53 = vst [vmem:[%s17 + $0xc8] sm:$0xff] %v52
          %v54 = vld [vmem:[%s16 + $0x90] sm:$0xff]
          %55 = vst [vmem:[%s17 + $0xd8] sm:$0xff] %v54
          %v56 = vld [vmem:[%s16 + $0x98] sm:$0xff]
          %57 = vst [vmem:[%s17 + $0xe0] sm:$0xff] %v56
          %v58 = vld [vmem:[%s16 + $0xa0] sm:$0xff]
          %59 = vst [vmem:[%s17 + $0xf0] sm:$0xff] %v58
          %v60 = vld [vmem:[%s16 + $0xa8] sm:$0xff]
          %61 = vst [vmem:[%s17 + $0xf8] sm:$0xff] %v60
          %v62 = vld [vmem:[%s16 + $0xb0] sm:$0xff]
          %63 = vst [vmem:[%s17 + $0x108] sm:$0xff] %v62
          %v64 = vld [vmem:[%s16 + $0xb8] sm:$0xff]
          %65 = vst [vmem:[%s17 + $0x110] sm:$0xff] %v64
          %v66 = vld [vmem:[%s16 + $0xc0] sm:$0xff]
          %67 = vst [vmem:[%s17 + $0x120] sm:$0xff] %v66
          %v68 = vld [vmem:[%s16 + $0xc8] sm:$0xff]
          %69 = vst [vmem:[%s17 + $0x128] sm:$0xff] %v68
          %v70 = vld [vmem:[%s16 + $0xd0] sm:$0xff]
          %71 = vst [vmem:[%s17 + $0x138] sm:$0xff] %v70
          %v72 = vld [vmem:[%s16 + $0xd8] sm:$0xff]
          %73 = vst [vmem:[%s17 + $0x140] sm:$0xff] %v72
          %v74 = vld [vmem:[%s16 + $0xe0] sm:$0xff]
          %75 = vst [vmem:[%s17 + $0x150] sm:$0xff] %v74
          %v76 = vld [vmem:[%s16 + $0xe8] sm:$0xff]
          %77 = vst [vmem:[%s17 + $0x158] sm:$0xff] %v76
          %v78 = vld [vmem:[%s16 + $0xf0] sm:$0xff]
          %79 = vst [vmem:[%s17 + $0x168] sm:$0xff] %v78
          %v80 = vld [vmem:[%s16 + $0xf8] sm:$0xff]
          %81 = vst [vmem:[%s17 + $0x170] sm:$0xff] %v80
        $region18: #{reverse.11} parent=12 // loop_footer
          %s15 = sadd.s32 1, %s11
        $region19: #{reverse.11} parent=12 // loop_footer_branch
          %10 = sbr.rel target = $region15
        $region20: #{reverse.11} parent=12 // loop_exit
          _
      $region13: #{reverse.11} parent=4 // pred_fallthru
        _
    $region5: #{reverse.11} parent=1 // pred_fallthru
      _
    %158 = vnop
    %s159 = scalar_lea.vmem [#allocation0], 8
    %s160 = scalar_lea.vmem %s159, 7 [#allocation0]
    %v161 = vld [vmem:[%s160] ss:$-1 sm:$0xff]
    %v162 = vrot.slane %v161, 4
    %163 = vst [vmem:[#allocation1] sm:$0xff] %v162
    %s164 = scalar_lea.vmem [#allocation0], 16
    %s165 = scalar_lea.vmem %s164, 7 [#allocation0]
    %v166 = vld [vmem:[%s165] ss:$-1 sm:$0xff]
    %v167 = vrot.slane %v166, 4
    %v168 = vlaneseq
    %v169 = vshrl.u32 %v168, 7
    %vm170 = vcmp.lt.s32.totalorder %v169, 4
    %171 = vst.msk [vmem:[#allocation1] sm:$0xff] %vm170, %v167
    %s172 = scalar_lea.vmem [#allocation1], 8
    %s173 = scalar_lea.vmem [#allocation0], 7
    %v174 = vld [vmem:[%s173] ss:$-1 sm:$0xff]
    %v175 = vrot.slane %v174, 4
    %176 = vst [vmem:[%s172] sm:$0xff] %v175
    %s177 = scalar_lea.vmem [#allocation0], 8
    %s178 = scalar_lea.vmem %s177, 7 [#allocation0]
    %v179 = vld [vmem:[%s178] ss:$-1 sm:$0xff]
    %v180 = vrot.slane %v179, 4
    %v181 = vlaneseq
    %v182 = vshrl.u32 %v181, 7
    %vm183 = vcmp.lt.s32.totalorder %v182, 4
    %184 = vst.msk [vmem:[%s172] sm:$0xff] %vm183, %v180
    %s185 = scalar_lea.vmem [#allocation1], 16
    %s186 = scalar_lea.vmem [#allocation0], 24
    %s187 = scalar_lea.vmem %s186, 8 [#allocation0]
    %s188 = scalar_lea.vmem %s187, 7 [#allocation0]
    %v189 = vld [vmem:[%s188] ss:$-1 sm:$0xff]
    %v190 = vrot.slane %v189, 4
    %191 = vst [vmem:[%s185] sm:$0xff] %v190
    %s192 = scalar_lea.vmem %s186, 16 [#allocation0]
    %s193 = scalar_lea.vmem %s192, 7 [#allocation0]
    %v194 = vld [vmem:[%s193] ss:$-1 sm:$0xff]
    %v195 = vrot.slane %v194, 4
    %v196 = vlaneseq
    %v197 = vshrl.u32 %v196, 7
    %vm198 = vcmp.lt.s32.totalorder %v197, 4
    %199 = vst.msk [vmem:[%s185] sm:$0xff] %vm198, %v195
    %s200 = scalar_lea.vmem %s185, 8 [#allocation1]
    %s201 = scalar_lea.vmem %s186, 7 [#allocation0]
    %v202 = vld [vmem:[%s201] ss:$-1 sm:$0xff]
    %v203 = vrot.slane %v202, 4
    %204 = vst [vmem:[%s200] sm:$0xff] %v203
    %s205 = scalar_lea.vmem %s186, 8 [#allocation0]
    %s206 = scalar_lea.vmem %s205, 7 [#allocation0]
    %v207 = vld [vmem:[%s206] ss:$-1 sm:$0xff]
    %v208 = vrot.slane %v207, 4
    %v209 = vlaneseq
    %v210 = vshrl.u32 %v209, 7
    %vm211 = vcmp.lt.s32.totalorder %v210, 4
    %212 = vst.msk [vmem:[%s200] sm:$0xff] %vm211, %v208
    %s213 = scalar_lea.vmem [#allocation1], 32
    %s214 = scalar_lea.vmem [#allocation0], 48
    %s215 = scalar_lea.vmem %s214, 8 [#allocation0]
    %s216 = scalar_lea.vmem %s215, 7 [#allocation0]
    %v217 = vld [vmem:[%s216] ss:$-1 sm:$0xff]
    %v218 = vrot.slane %v217, 4
    %219 = vst [vmem:[%s213] sm:$0xff] %v218
    %s220 = scalar_lea.vmem %s214, 16 [#allocation0]
    %s221 = scalar_lea.vmem %s220, 7 [#allocation0]
    %v222 = vld [vmem:[%s221] ss:$-1 sm:$0xff]
    %v223 = vrot.slane %v222, 4
    %v224 = vlaneseq
    %v225 = vshrl.u32 %v224, 7
    %vm226 = vcmp.lt.s32.totalorder %v225, 4
    %227 = vst.msk [vmem:[%s213] sm:$0xff] %vm226, %v223
    %s228 = scalar_lea.vmem %s213, 8 [#allocation1]
    %s229 = scalar_lea.vmem %s214, 7 [#allocation0]
    %v230 = vld [vmem:[%s229] ss:$-1 sm:$0xff]
    %v231 = vrot.slane %v230, 4
    %232 = vst [vmem:[%s228] sm:$0xff] %v231
    %s233 = scalar_lea.vmem %s214, 8 [#allocation0]
    %s234 = scalar_lea.vmem %s233, 7 [#allocation0]
    %v235 = vld [vmem:[%s234] ss:$-1 sm:$0xff]
    %v236 = vrot.slane %v235, 4
    %v237 = vlaneseq
    %v238 = vshrl.u32 %v237, 7
    %vm239 = vcmp.lt.s32.totalorder %v238, 4
    %240 = vst.msk [vmem:[%s228] sm:$0xff] %vm239, %v236
    %s241 = scalar_lea.vmem [#allocation1], 48
    %s242 = scalar_lea.vmem [#allocation0], 72
    %s243 = scalar_lea.vmem %s242, 8 [#allocation0]
    %s244 = scalar_lea.vmem %s243, 7 [#allocation0]
    %v245 = vld [vmem:[%s244] ss:$-1 sm:$0xff]
    %v246 = vrot.slane %v245, 4
    %247 = vst [vmem:[%s241] sm:$0xff] %v246
    %s248 = scalar_lea.vmem %s242, 16 [#allocation0]
    %s249 = scalar_lea.vmem %s248, 7 [#allocation0]
    %v250 = vld [vmem:[%s249] ss:$-1 sm:$0xff]
    %v251 = vrot.slane %v250, 4
    %v252 = vlaneseq
    %v253 = vshrl.u32 %v252, 7
    %vm254 = vcmp.lt.s32.totalorder %v253, 4
    %255 = vst.msk [vmem:[%s241] sm:$0xff] %vm254, %v251
    %s256 = scalar_lea.vmem %s241, 8 [#allocation1]
    %s257 = scalar_lea.vmem %s242, 7 [#allocation0]
    %v258 = vld [vmem:[%s257] ss:$-1 sm:$0xff]
    %v259 = vrot.slane %v258, 4
    %260 = vst [vmem:[%s256] sm:$0xff] %v259
    %s261 = scalar_lea.vmem %s242, 8 [#allocation0]
    %s262 = scalar_lea.vmem %s261, 7 [#allocation0]
    %v263 = vld [vmem:[%s262] ss:$-1 sm:$0xff]
    %v264 = vrot.slane %v263, 4
    %v265 = vlaneseq
    %v266 = vshrl.u32 %v265, 7
    %vm267 = vcmp.lt.s32.totalorder %v266, 4
    %268 = vst.msk [vmem:[%s256] sm:$0xff] %vm267, %v264
    %s269 = scalar_lea.vmem [#allocation1], 64
    %s270 = scalar_lea.vmem [#allocation0], 96
    %s271 = scalar_lea.vmem %s270, 8 [#allocation0]
    %s272 = scalar_lea.vmem %s271, 7 [#allocation0]
    %v273 = vld [vmem:[%s272] ss:$-1 sm:$0xff]
    %v274 = vrot.slane %v273, 4
    %275 = vst [vmem:[%s269] sm:$0xff] %v274
    %s276 = scalar_lea.vmem %s270, 16 [#allocation0]
    %s277 = scalar_lea.vmem %s276, 7 [#allocation0]
    %v278 = vld [vmem:[%s277] ss:$-1 sm:$0xff]
    %v279 = vrot.slane %v278, 4
    %v280 = vlaneseq
    %v281 = vshrl.u32 %v280, 7
    %vm282 = vcmp.lt.s32.totalorder %v281, 4
    %283 = vst.msk [vmem:[%s269] sm:$0xff] %vm282, %v279
    %s284 = scalar_lea.vmem %s269, 8 [#allocation1]
    %s285 = scalar_lea.vmem %s270, 7 [#allocation0]
    %v286 = vld [vmem:[%s285] ss:$-1 sm:$0xff]
    %v287 = vrot.slane %v286, 4
    %288 = vst [vmem:[%s284] sm:$0xff] %v287
    %s289 = scalar_lea.vmem %s270, 8 [#allocation0]
    %s290 = scalar_lea.vmem %s289, 7 [#allocation0]
    %v291 = vld [vmem:[%s290] ss:$-1 sm:$0xff]
    %v292 = vrot.slane %v291, 4
    %v293 = vlaneseq
    %v294 = vshrl.u32 %v293, 7
    %vm295 = vcmp.lt.s32.totalorder %v294, 4
    %296 = vst.msk [vmem:[%s284] sm:$0xff] %vm295, %v292
    %s297 = scalar_lea.vmem [#allocation1], 80
    %s298 = scalar_lea.vmem [#allocation0], 120
    %s299 = scalar_lea.vmem %s298, 8 [#allocation0]
    %s300 = scalar_lea.vmem %s299, 7 [#allocation0]
    %v301 = vld [vmem:[%s300] ss:$-1 sm:$0xff]
    %v302 = vrot.slane %v301, 4
    %303 = vst [vmem:[%s297] sm:$0xff] %v302
    %s304 = scalar_lea.vmem %s298, 16 [#allocation0]
    %s305 = scalar_lea.vmem %s304, 7 [#allocation0]
    %v306 = vld [vmem:[%s305] ss:$-1 sm:$0xff]
    %v307 = vrot.slane %v306, 4
    %v308 = vlaneseq
    %v309 = vshrl.u32 %v308, 7
    %vm310 = vcmp.lt.s32.totalorder %v309, 4
    %311 = vst.msk [vmem:[%s297] sm:$0xff] %vm310, %v307
    %s312 = scalar_lea.vmem %s297, 8 [#allocation1]
    %s313 = scalar_lea.vmem %s298, 7 [#allocation0]
    %v314 = vld [vmem:[%s313] ss:$-1 sm:$0xff]
    %v315 = vrot.slane %v314, 4
    %316 = vst [vmem:[%s312] sm:$0xff] %v315
    %s317 = scalar_lea.vmem %s298, 8 [#allocation0]
    %s318 = scalar_lea.vmem %s317, 7 [#allocation0]
    %v319 = vld [vmem:[%s318] ss:$-1 sm:$0xff]
    %v320 = vrot.slane %v319, 4
    %v321 = vlaneseq
    %v322 = vshrl.u32 %v321, 7
    %vm323 = vcmp.lt.s32.totalorder %v322, 4
    %324 = vst.msk [vmem:[%s312] sm:$0xff] %vm323, %v320
    %s325 = scalar_lea.vmem [#allocation1], 96
    %s326 = scalar_lea.vmem [#allocation0], 144
    %s327 = scalar_lea.vmem %s326, 8 [#allocation0]
    %s328 = scalar_lea.vmem %s327, 7 [#allocation0]
    %v329 = vld [vmem:[%s328] ss:$-1 sm:$0xff]
    %v330 = vrot.slane %v329, 4
    %331 = vst [vmem:[%s325] sm:$0xff] %v330
    %s332 = scalar_lea.vmem %s326, 16 [#allocation0]
    %s333 = scalar_lea.vmem %s332, 7 [#allocation0]
    %v334 = vld [vmem:[%s333] ss:$-1 sm:$0xff]
    %v335 = vrot.slane %v334, 4
    %v336 = vlaneseq
    %v337 = vshrl.u32 %v336, 7
    %vm338 = vcmp.lt.s32.totalorder %v337, 4
    %339 = vst.msk [vmem:[%s325] sm:$0xff] %vm338, %v335
    %s340 = scalar_lea.vmem %s325, 8 [#allocation1]
    %s341 = scalar_lea.vmem %s326, 7 [#allocation0]
    %v342 = vld [vmem:[%s341] ss:$-1 sm:$0xff]
    %v343 = vrot.slane %v342, 4
    %344 = vst [vmem:[%s340] sm:$0xff] %v343
    %s345 = scalar_lea.vmem %s326, 8 [#allocation0]
    %s346 = scalar_lea.vmem %s345, 7 [#allocation0]
    %v347 = vld [vmem:[%s346] ss:$-1 sm:$0xff]
    %v348 = vrot.slane %v347, 4
    %v349 = vlaneseq
    %v350 = vshrl.u32 %v349, 7
    %vm351 = vcmp.lt.s32.totalorder %v350, 4
    %352 = vst.msk [vmem:[%s340] sm:$0xff] %vm351, %v348
    %s353 = scalar_lea.vmem [#allocation1], 112
    %s354 = scalar_lea.vmem [#allocation0], 168
    %s355 = scalar_lea.vmem %s354, 8 [#allocation0]
    %s356 = scalar_lea.vmem %s355, 7 [#allocation0]
    %v357 = vld [vmem:[%s356] ss:$-1 sm:$0xff]
    %v358 = vrot.slane %v357, 4
    %359 = vst [vmem:[%s353] sm:$0xff] %v358
    %s360 = scalar_lea.vmem %s354, 16 [#allocation0]
    %s361 = scalar_lea.vmem %s360, 7 [#allocation0]
    %v362 = vld [vmem:[%s361] ss:$-1 sm:$0xff]
    %v363 = vrot.slane %v362, 4
    %v364 = vlaneseq
    %v365 = vshrl.u32 %v364, 7
    %vm366 = vcmp.lt.s32.totalorder %v365, 4
    %367 = vst.msk [vmem:[%s353] sm:$0xff] %vm366, %v363
    %s368 = scalar_lea.vmem %s353, 8 [#allocation1]
    %s369 = scalar_lea.vmem %s354, 7 [#allocation0]
    %v370 = vld [vmem:[%s369] ss:$-1 sm:$0xff]
    %v371 = vrot.slane %v370, 4
    %372 = vst [vmem:[%s368] sm:$0xff] %v371
    %s373 = scalar_lea.vmem %s354, 8 [#allocation0]
    %s374 = scalar_lea.vmem %s373, 7 [#allocation0]
    %v375 = vld [vmem:[%s374] ss:$-1 sm:$0xff]
    %v376 = vrot.slane %v375, 4
    %v377 = vlaneseq
    %v378 = vshrl.u32 %v377, 7
    %vm379 = vcmp.lt.s32.totalorder %v378, 4
    %380 = vst.msk [vmem:[%s368] sm:$0xff] %vm379, %v376
    %s381 = scalar_lea.vmem [#allocation1], 128
    %s382 = scalar_lea.vmem [#allocation0], 192
    %s383 = scalar_lea.vmem %s382, 8 [#allocation0]
    %s384 = scalar_lea.vmem %s383, 7 [#allocation0]
    %v385 = vld [vmem:[%s384] ss:$-1 sm:$0xff]
    %v386 = vrot.slane %v385, 4
    %387 = vst [vmem:[%s381] sm:$0xff] %v386
    %s388 = scalar_lea.vmem %s382, 16 [#allocation0]
    %s389 = scalar_lea.vmem %s388, 7 [#allocation0]
    %v390 = vld [vmem:[%s389] ss:$-1 sm:$0xff]
    %v391 = vrot.slane %v390, 4
    %v392 = vlaneseq
    %v393 = vshrl.u32 %v392, 7
    %vm394 = vcmp.lt.s32.totalorder %v393, 4
    %395 = vst.msk [vmem:[%s381] sm:$0xff] %vm394, %v391
    %s396 = scalar_lea.vmem %s381, 8 [#allocation1]
    %s397 = scalar_lea.vmem %s382, 7 [#allocation0]
    %v398 = vld [vmem:[%s397] ss:$-1 sm:$0xff]
    %v399 = vrot.slane %v398, 4
    %400 = vst [vmem:[%s396] sm:$0xff] %v399
    %s401 = scalar_lea.vmem %s382, 8 [#allocation0]
    %s402 = scalar_lea.vmem %s401, 7 [#allocation0]
    %v403 = vld [vmem:[%s402] ss:$-1 sm:$0xff]
    %v404 = vrot.slane %v403, 4
    %v405 = vlaneseq
    %v406 = vshrl.u32 %v405, 7
    %vm407 = vcmp.lt.s32.totalorder %v406, 4
    %408 = vst.msk [vmem:[%s396] sm:$0xff] %vm407, %v404
    %s409 = scalar_lea.vmem [#allocation1], 144
    %s410 = scalar_lea.vmem [#allocation0], 216
    %s411 = scalar_lea.vmem %s410, 8 [#allocation0]
    %s412 = scalar_lea.vmem %s411, 7 [#allocation0]
    %v413 = vld [vmem:[%s412] ss:$-1 sm:$0xff]
    %v414 = vrot.slane %v413, 4
    %415 = vst [vmem:[%s409] sm:$0xff] %v414
    %s416 = scalar_lea.vmem %s410, 16 [#allocation0]
    %s417 = scalar_lea.vmem %s416, 7 [#allocation0]
    %v418 = vld [vmem:[%s417] ss:$-1 sm:$0xff]
    %v419 = vrot.slane %v418, 4
    %v420 = vlaneseq
    %v421 = vshrl.u32 %v420, 7
    %vm422 = vcmp.lt.s32.totalorder %v421, 4
    %423 = vst.msk [vmem:[%s409] sm:$0xff] %vm422, %v419
    %s424 = scalar_lea.vmem %s409, 8 [#allocation1]
    %s425 = scalar_lea.vmem %s410, 7 [#allocation0]
    %v426 = vld [vmem:[%s425] ss:$-1 sm:$0xff]
    %v427 = vrot.slane %v426, 4
    %428 = vst [vmem:[%s424] sm:$0xff] %v427
    %s429 = scalar_lea.vmem %s410, 8 [#allocation0]
    %s430 = scalar_lea.vmem %s429, 7 [#allocation0]
    %v431 = vld [vmem:[%s430] ss:$-1 sm:$0xff]
    %v432 = vrot.slane %v431, 4
    %v433 = vlaneseq
    %v434 = vshrl.u32 %v433, 7
    %vm435 = vcmp.lt.s32.totalorder %v434, 4
    %436 = vst.msk [vmem:[%s424] sm:$0xff] %vm435, %v432
    %s437 = scalar_lea.vmem [#allocation1], 160
    %s438 = scalar_lea.vmem [#allocation0], 240
    %s439 = scalar_lea.vmem %s438, 8 [#allocation0]
    %s440 = scalar_lea.vmem %s439, 7 [#allocation0]
    %v441 = vld [vmem:[%s440] ss:$-1 sm:$0xff]
    %v442 = vrot.slane %v441, 4
    %443 = vst [vmem:[%s437] sm:$0xff] %v442
    %s444 = scalar_lea.vmem %s438, 16 [#allocation0]
    %s445 = scalar_lea.vmem %s444, 7 [#allocation0]
    %v446 = vld [vmem:[%s445] ss:$-1 sm:$0xff]
    %v447 = vrot.slane %v446, 4
    %v448 = vlaneseq
    %v449 = vshrl.u32 %v448, 7
    %vm450 = vcmp.lt.s32.totalorder %v449, 4
    %451 = vst.msk [vmem:[%s437] sm:$0xff] %vm450, %v447
    %s452 = scalar_lea.vmem %s437, 8 [#allocation1]
    %s453 = scalar_lea.vmem %s438, 7 [#allocation0]
    %v454 = vld [vmem:[%s453] ss:$-1 sm:$0xff]
    %v455 = vrot.slane %v454, 4
    %456 = vst [vmem:[%s452] sm:$0xff] %v455
    %s457 = scalar_lea.vmem %s438, 8 [#allocation0]
    %s458 = scalar_lea.vmem %s457, 7 [#allocation0]
    %v459 = vld [vmem:[%s458] ss:$-1 sm:$0xff]
    %v460 = vrot.slane %v459, 4
    %v461 = vlaneseq
    %v462 = vshrl.u32 %v461, 7
    %vm463 = vcmp.lt.s32.totalorder %v462, 4
    %464 = vst.msk [vmem:[%s452] sm:$0xff] %vm463, %v460
    %s465 = scalar_lea.vmem [#allocation1], 176
    %s466 = scalar_lea.vmem [#allocation0], 264
    %s467 = scalar_lea.vmem %s466, 8 [#allocation0]
    %s468 = scalar_lea.vmem %s467, 7 [#allocation0]
    %v469 = vld [vmem:[%s468] ss:$-1 sm:$0xff]
    %v470 = vrot.slane %v469, 4
    %471 = vst [vmem:[%s465] sm:$0xff] %v470
    %s472 = scalar_lea.vmem %s466, 16 [#allocation0]
    %s473 = scalar_lea.vmem %s472, 7 [#allocation0]
    %v474 = vld [vmem:[%s473] ss:$-1 sm:$0xff]
    %v475 = vrot.slane %v474, 4
    %v476 = vlaneseq
    %v477 = vshrl.u32 %v476, 7
    %vm478 = vcmp.lt.s32.totalorder %v477, 4
    %479 = vst.msk [vmem:[%s465] sm:$0xff] %vm478, %v475
    %s480 = scalar_lea.vmem %s465, 8 [#allocation1]
    %s481 = scalar_lea.vmem %s466, 7 [#allocation0]
    %v482 = vld [vmem:[%s481] ss:$-1 sm:$0xff]
    %v483 = vrot.slane %v482, 4
    %484 = vst [vmem:[%s480] sm:$0xff] %v483
    %s485 = scalar_lea.vmem %s466, 8 [#allocation0]
    %s486 = scalar_lea.vmem %s485, 7 [#allocation0]
    %v487 = vld [vmem:[%s486] ss:$-1 sm:$0xff]
    %v488 = vrot.slane %v487, 4
    %v489 = vlaneseq
    %v490 = vshrl.u32 %v489, 7
    %vm491 = vcmp.lt.s32.totalorder %v490, 4
    %492 = vst.msk [vmem:[%s480] sm:$0xff] %vm491, %v488
    %s493 = scalar_lea.vmem [#allocation1], 192
    %s494 = scalar_lea.vmem [#allocation0], 288
    %s495 = scalar_lea.vmem %s494, 8 [#allocation0]
    %s496 = scalar_lea.vmem %s495, 7 [#allocation0]
    %v497 = vld [vmem:[%s496] ss:$-1 sm:$0xff]
    %v498 = vrot.slane %v497, 4
    %499 = vst [vmem:[%s493] sm:$0xff] %v498
    %s500 = scalar_lea.vmem %s494, 16 [#allocation0]
    %s501 = scalar_lea.vmem %s500, 7 [#allocation0]
    %v502 = vld [vmem:[%s501] ss:$-1 sm:$0xff]
    %v503 = vrot.slane %v502, 4
    %v504 = vlaneseq
    %v505 = vshrl.u32 %v504, 7
    %vm506 = vcmp.lt.s32.totalorder %v505, 4
    %507 = vst.msk [vmem:[%s493] sm:$0xff] %vm506, %v503
    %s508 = scalar_lea.vmem %s493, 8 [#allocation1]
    %s509 = scalar_lea.vmem %s494, 7 [#allocation0]
    %v510 = vld [vmem:[%s509] ss:$-1 sm:$0xff]
    %v511 = vrot.slane %v510, 4
    %512 = vst [vmem:[%s508] sm:$0xff] %v511
    %s513 = scalar_lea.vmem %s494, 8 [#allocation0]
    %s514 = scalar_lea.vmem %s513, 7 [#allocation0]
    %v515 = vld [vmem:[%s514] ss:$-1 sm:$0xff]
    %v516 = vrot.slane %v515, 4
    %v517 = vlaneseq
    %v518 = vshrl.u32 %v517, 7
    %vm519 = vcmp.lt.s32.totalorder %v518, 4
    %520 = vst.msk [vmem:[%s508] sm:$0xff] %vm519, %v516
    %s521 = scalar_lea.vmem [#allocation1], 208
    %s522 = scalar_lea.vmem [#allocation0], 312
    %s523 = scalar_lea.vmem %s522, 8 [#allocation0]
    %s524 = scalar_lea.vmem %s523, 7 [#allocation0]
    %v525 = vld [vmem:[%s524] ss:$-1 sm:$0xff]
    %v526 = vrot.slane %v525, 4
    %527 = vst [vmem:[%s521] sm:$0xff] %v526
    %s528 = scalar_lea.vmem %s522, 16 [#allocation0]
    %s529 = scalar_lea.vmem %s528, 7 [#allocation0]
    %v530 = vld [vmem:[%s529] ss:$-1 sm:$0xff]
    %v531 = vrot.slane %v530, 4
    %v532 = vlaneseq
    %v533 = vshrl.u32 %v532, 7
    %vm534 = vcmp.lt.s32.totalorder %v533, 4
    %535 = vst.msk [vmem:[%s521] sm:$0xff] %vm534, %v531
    %s536 = scalar_lea.vmem %s521, 8 [#allocation1]
    %s537 = scalar_lea.vmem %s522, 7 [#allocation0]
    %v538 = vld [vmem:[%s537] ss:$-1 sm:$0xff]
    %v539 = vrot.slane %v538, 4
    %540 = vst [vmem:[%s536] sm:$0xff] %v539
    %s541 = scalar_lea.vmem %s522, 8 [#allocation0]
    %s542 = scalar_lea.vmem %s541, 7 [#allocation0]
    %v543 = vld [vmem:[%s542] ss:$-1 sm:$0xff]
    %v544 = vrot.slane %v543, 4
    %v545 = vlaneseq
    %v546 = vshrl.u32 %v545, 7
    %vm547 = vcmp.lt.s32.totalorder %v546, 4
    %548 = vst.msk [vmem:[%s536] sm:$0xff] %vm547, %v544
    %s549 = scalar_lea.vmem [#allocation1], 224
    %s550 = scalar_lea.vmem [#allocation0], 336
    %s551 = scalar_lea.vmem %s550, 8 [#allocation0]
    %s552 = scalar_lea.vmem %s551, 7 [#allocation0]
    %v553 = vld [vmem:[%s552] ss:$-1 sm:$0xff]
    %v554 = vrot.slane %v553, 4
    %555 = vst [vmem:[%s549] sm:$0xff] %v554
    %s556 = scalar_lea.vmem %s550, 16 [#allocation0]
    %s557 = scalar_lea.vmem %s556, 7 [#allocation0]
    %v558 = vld [vmem:[%s557] ss:$-1 sm:$0xff]
    %v559 = vrot.slane %v558, 4
    %v560 = vlaneseq
    %v561 = vshrl.u32 %v560, 7
    %vm562 = vcmp.lt.s32.totalorder %v561, 4
    %563 = vst.msk [vmem:[%s549] sm:$0xff] %vm562, %v559
    %s564 = scalar_lea.vmem %s549, 8 [#allocation1]
    %s565 = scalar_lea.vmem %s550, 7 [#allocation0]
    %v566 = vld [vmem:[%s565] ss:$-1 sm:$0xff]
    %v567 = vrot.slane %v566, 4
    %568 = vst [vmem:[%s564] sm:$0xff] %v567
    %s569 = scalar_lea.vmem %s550, 8 [#allocation0]
    %s570 = scalar_lea.vmem %s569, 7 [#allocation0]
    %v571 = vld [vmem:[%s570] ss:$-1 sm:$0xff]
    %v572 = vrot.slane %v571, 4
    %v573 = vlaneseq
    %v574 = vshrl.u32 %v573, 7
    %vm575 = vcmp.lt.s32.totalorder %v574, 4
    %576 = vst.msk [vmem:[%s564] sm:$0xff] %vm575, %v572
    %s577 = scalar_lea.vmem [#allocation1], 240
    %s578 = scalar_lea.vmem [#allocation0], 360
    %s579 = scalar_lea.vmem %s578, 8 [#allocation0]
    %s580 = scalar_lea.vmem %s579, 7 [#allocation0]
    %v581 = vld [vmem:[%s580] ss:$-1 sm:$0xff]
    %v582 = vrot.slane %v581, 4
    %583 = vst [vmem:[%s577] sm:$0xff] %v582
    %s584 = scalar_lea.vmem %s578, 16 [#allocation0]
    %s585 = scalar_lea.vmem %s584, 7 [#allocation0]
    %v586 = vld [vmem:[%s585] ss:$-1 sm:$0xff]
    %v587 = vrot.slane %v586, 4
    %v588 = vlaneseq
    %v589 = vshrl.u32 %v588, 7
    %vm590 = vcmp.lt.s32.totalorder %v589, 4
    %591 = vst.msk [vmem:[%s577] sm:$0xff] %vm590, %v587
    %s592 = scalar_lea.vmem %s577, 8 [#allocation1]
    %s593 = scalar_lea.vmem %s578, 7 [#allocation0]
    %v594 = vld [vmem:[%s593] ss:$-1 sm:$0xff]
    %v595 = vrot.slane %v594, 4
    %596 = vst [vmem:[%s592] sm:$0xff] %v595
    %s597 = scalar_lea.vmem %s578, 8 [#allocation0]
    %s598 = scalar_lea.vmem %s597, 7 [#allocation0]
    %v599 = vld [vmem:[%s598] ss:$-1 sm:$0xff]
    %v600 = vrot.slane %v599, 4
    %v601 = vlaneseq
    %v602 = vshrl.u32 %v601, 7
    %vm603 = vcmp.lt.s32.totalorder %v602, 4
    %604 = vst.msk [vmem:[%s592] sm:$0xff] %vm603, %v600
    // Predicated region
    $region36: #{reverse.11} parent=1 // pred_check
      _
    $region37: #{reverse.11} parent=1 // pred_check_branch
      %606 = sbr.rel (0) target = $region39
    $region38: #{reverse.11} parent=1 // pred_region
      // Predicated region
      $region40: #{reverse.11} parent=38 // pred_check
        _
      $region41: #{reverse.11} parent=38 // pred_check_branch
        %608 = sbr.rel (0) target = $region43
      $region42: #{reverse.11} parent=38 // pred_region
        // Predicated region
        $region55: #{reverse.11} parent=42 // pred_check
          _
        $region56: #{reverse.11} parent=42 // pred_check_branch
          %685 = sbr.rel (0) target = $region58
        $region57: #{reverse.11} parent=42 // pred_region
          loop: start=0, step=1, limit=1
          $region59: #{reverse.11} parent=57 // loop_pre_header
            _
          $region60: #{reverse.11} parent=57 // loop_header
            %s687 = sphi 0, %s691
            %p688 = scmp.ge.s32.totalorder %s687, 1
            %s692 = sphi [#allocation1], [#allocation1]
            %s693 = sphi %s1, %s1
          $region61: #{reverse.11} parent=57 // loop_header_branch
            %690 = sbr.rel (%p688) target = $region65
          $region62: #{reverse.11} parent=57 // loop_body
            %v694 = vld [vmem:[%s692] sm:$0xff]
            %695 = vst [vmem:[%s693] sm:$0xff] %v694
            %v696 = vld [vmem:[%s692 + $0x8] sm:$0xff]
            %697 = vst [vmem:[%s693 + $0x8] sm:$0xff] %v696
            %v698 = vld [vmem:[%s692 + $0x10] sm:$0xff]
            %699 = vst [vmem:[%s693 + $0x10] sm:$0xff] %v698
            %v700 = vld [vmem:[%s692 + $0x18] sm:$0xff]
            %701 = vst [vmem:[%s693 + $0x18] sm:$0xff] %v700
            %v702 = vld [vmem:[%s692 + $0x20] sm:$0xff]
            %703 = vst [vmem:[%s693 + $0x20] sm:$0xff] %v702
            %v704 = vld [vmem:[%s692 + $0x28] sm:$0xff]
            %705 = vst [vmem:[%s693 + $0x28] sm:$0xff] %v704
            %v706 = vld [vmem:[%s692 + $0x30] sm:$0xff]
            %707 = vst [vmem:[%s693 + $0x30] sm:$0xff] %v706
            %v708 = vld [vmem:[%s692 + $0x38] sm:$0xff]
            %709 = vst [vmem:[%s693 + $0x38] sm:$0xff] %v708
            %v710 = vld [vmem:[%s692 + $0x40] sm:$0xff]
            %711 = vst [vmem:[%s693 + $0x40] sm:$0xff] %v710
            %v712 = vld [vmem:[%s692 + $0x48] sm:$0xff]
            %713 = vst [vmem:[%s693 + $0x48] sm:$0xff] %v712
            %v714 = vld [vmem:[%s692 + $0x50] sm:$0xff]
            %715 = vst [vmem:[%s693 + $0x50] sm:$0xff] %v714
            %v716 = vld [vmem:[%s692 + $0x58] sm:$0xff]
            %717 = vst [vmem:[%s693 + $0x58] sm:$0xff] %v716
            %v718 = vld [vmem:[%s692 + $0x60] sm:$0xff]
            %719 = vst [vmem:[%s693 + $0x60] sm:$0xff] %v718
            %v720 = vld [vmem:[%s692 + $0x68] sm:$0xff]
            %721 = vst [vmem:[%s693 + $0x68] sm:$0xff] %v720
            %v722 = vld [vmem:[%s692 + $0x70] sm:$0xff]
            %723 = vst [vmem:[%s693 + $0x70] sm:$0xff] %v722
            %v724 = vld [vmem:[%s692 + $0x78] sm:$0xff]
            %725 = vst [vmem:[%s693 + $0x78] sm:$0xff] %v724
            %v726 = vld [vmem:[%s692 + $0x80] sm:$0xff]
            %727 = vst [vmem:[%s693 + $0x80] sm:$0xff] %v726
            %v728 = vld [vmem:[%s692 + $0x88] sm:$0xff]
            %729 = vst [vmem:[%s693 + $0x88] sm:$0xff] %v728
            %v730 = vld [vmem:[%s692 + $0x90] sm:$0xff]
            %731 = vst [vmem:[%s693 + $0x90] sm:$0xff] %v730
            %v732 = vld [vmem:[%s692 + $0x98] sm:$0xff]
            %733 = vst [vmem:[%s693 + $0x98] sm:$0xff] %v732
            %v734 = vld [vmem:[%s692 + $0xa0] sm:$0xff]
            %735 = vst [vmem:[%s693 + $0xa0] sm:$0xff] %v734
            %v736 = vld [vmem:[%s692 + $0xa8] sm:$0xff]
            %737 = vst [vmem:[%s693 + $0xa8] sm:$0xff] %v736
            %v738 = vld [vmem:[%s692 + $0xb0] sm:$0xff]
            %739 = vst [vmem:[%s693 + $0xb0] sm:$0xff] %v738
            %v740 = vld [vmem:[%s692 + $0xb8] sm:$0xff]
            %741 = vst [vmem:[%s693 + $0xb8] sm:$0xff] %v740
            %v742 = vld [vmem:[%s692 + $0xc0] sm:$0xff]
            %743 = vst [vmem:[%s693 + $0xc0] sm:$0xff] %v742
            %v744 = vld [vmem:[%s692 + $0xc8] sm:$0xff]
            %745 = vst [vmem:[%s693 + $0xc8] sm:$0xff] %v744
            %v746 = vld [vmem:[%s692 + $0xd0] sm:$0xff]
            %747 = vst [vmem:[%s693 + $0xd0] sm:$0xff] %v746
            %v748 = vld [vmem:[%s692 + $0xd8] sm:$0xff]
            %749 = vst [vmem:[%s693 + $0xd8] sm:$0xff] %v748
            %v750 = vld [vmem:[%s692 + $0xe0] sm:$0xff]
            %751 = vst [vmem:[%s693 + $0xe0] sm:$0xff] %v750
            %v752 = vld [vmem:[%s692 + $0xe8] sm:$0xff]
            %753 = vst [vmem:[%s693 + $0xe8] sm:$0xff] %v752
            %v754 = vld [vmem:[%s692 + $0xf0] sm:$0xff]
            %755 = vst [vmem:[%s693 + $0xf0] sm:$0xff] %v754
            %v756 = vld [vmem:[%s692 + $0xf8] sm:$0xff]
            %757 = vst [vmem:[%s693 + $0xf8] sm:$0xff] %v756
          $region63: #{reverse.11} parent=57 // loop_footer
            %s691 = sadd.s32 1, %s687
          $region64: #{reverse.11} parent=57 // loop_footer_branch
            %686 = sbr.rel target = $region60
          $region65: #{reverse.11} parent=57 // loop_exit
            _
        $region58: #{reverse.11} parent=42 // pred_fallthru
          _
        // Predicated region
        $region66: #{reverse.11} parent=42 // pred_check
          _
        $region67: #{reverse.11} parent=42 // pred_check_branch
          %759 = sbr.rel target = $region69
        $region68: #{reverse.11} parent=42 // pred_region
          _
        $region69: #{reverse.11} parent=42 // pred_fallthru
          _
      $region43: #{reverse.11} parent=38 // pred_fallthru
        _
      // Predicated region
      $region44: #{reverse.11} parent=38 // pred_check
        _
      $region45: #{reverse.11} parent=38 // pred_check_branch
        %610 = sbr.rel target = $region47
      $region46: #{reverse.11} parent=38 // pred_region
        loop: start=0, step=1, limit=1
        $region48: #{reverse.11} parent=46 // loop_pre_header
          _
        $region49: #{reverse.11} parent=46 // loop_header
          %s613 = sphi 0, %s617
          %p614 = scmp.ge.s32.totalorder %s613, 1
          %s618 = sphi [#allocation1], [#allocation1]
          %s619 = sphi %s1, %s1
        $region50: #{reverse.11} parent=46 // loop_header_branch
          %616 = sbr.rel (%p614) target = $region54
        $region51: #{reverse.11} parent=46 // loop_body
          %v620 = vld [vmem:[%s618] sm:$0xff]
          %621 = vst [vmem:[%s619] sm:$0xff] %v620
          %v622 = vld [vmem:[%s618 + $0x8] sm:$0xff]
          %623 = vst [vmem:[%s619 + $0x8] sm:$0xff] %v622
          %v624 = vld [vmem:[%s618 + $0x10] sm:$0xff]
          %625 = vst [vmem:[%s619 + $0x10] sm:$0xff] %v624
          %v626 = vld [vmem:[%s618 + $0x18] sm:$0xff]
          %627 = vst [vmem:[%s619 + $0x18] sm:$0xff] %v626
          %v628 = vld [vmem:[%s618 + $0x20] sm:$0xff]
          %629 = vst [vmem:[%s619 + $0x20] sm:$0xff] %v628
          %v630 = vld [vmem:[%s618 + $0x28] sm:$0xff]
          %631 = vst [vmem:[%s619 + $0x28] sm:$0xff] %v630
          %v632 = vld [vmem:[%s618 + $0x30] sm:$0xff]
          %633 = vst [vmem:[%s619 + $0x30] sm:$0xff] %v632
          %v634 = vld [vmem:[%s618 + $0x38] sm:$0xff]
          %635 = vst [vmem:[%s619 + $0x38] sm:$0xff] %v634
          %v636 = vld [vmem:[%s618 + $0x40] sm:$0xff]
          %637 = vst [vmem:[%s619 + $0x40] sm:$0xff] %v636
          %v638 = vld [vmem:[%s618 + $0x48] sm:$0xff]
          %639 = vst [vmem:[%s619 + $0x48] sm:$0xff] %v638
          %v640 = vld [vmem:[%s618 + $0x50] sm:$0xff]
          %641 = vst [vmem:[%s619 + $0x50] sm:$0xff] %v640
          %v642 = vld [vmem:[%s618 + $0x58] sm:$0xff]
          %643 = vst [vmem:[%s619 + $0x58] sm:$0xff] %v642
          %v644 = vld [vmem:[%s618 + $0x60] sm:$0xff]
          %645 = vst [vmem:[%s619 + $0x60] sm:$0xff] %v644
          %v646 = vld [vmem:[%s618 + $0x68] sm:$0xff]
          %647 = vst [vmem:[%s619 + $0x68] sm:$0xff] %v646
          %v648 = vld [vmem:[%s618 + $0x70] sm:$0xff]
          %649 = vst [vmem:[%s619 + $0x70] sm:$0xff] %v648
          %v650 = vld [vmem:[%s618 + $0x78] sm:$0xff]
          %651 = vst [vmem:[%s619 + $0x78] sm:$0xff] %v650
          %v652 = vld [vmem:[%s618 + $0x80] sm:$0xff]
          %653 = vst [vmem:[%s619 + $0x80] sm:$0xff] %v652
          %v654 = vld [vmem:[%s618 + $0x88] sm:$0xff]
          %655 = vst [vmem:[%s619 + $0x88] sm:$0xff] %v654
          %v656 = vld [vmem:[%s618 + $0x90] sm:$0xff]
          %657 = vst [vmem:[%s619 + $0x90] sm:$0xff] %v656
          %v658 = vld [vmem:[%s618 + $0x98] sm:$0xff]
          %659 = vst [vmem:[%s619 + $0x98] sm:$0xff] %v658
          %v660 = vld [vmem:[%s618 + $0xa0] sm:$0xff]
          %661 = vst [vmem:[%s619 + $0xa0] sm:$0xff] %v660
          %v662 = vld [vmem:[%s618 + $0xa8] sm:$0xff]
          %663 = vst [vmem:[%s619 + $0xa8] sm:$0xff] %v662
          %v664 = vld [vmem:[%s618 + $0xb0] sm:$0xff]
          %665 = vst [vmem:[%s619 + $0xb0] sm:$0xff] %v664
          %v666 = vld [vmem:[%s618 + $0xb8] sm:$0xff]
          %667 = vst [vmem:[%s619 + $0xb8] sm:$0xff] %v666
          %v668 = vld [vmem:[%s618 + $0xc0] sm:$0xff]
          %669 = vst [vmem:[%s619 + $0xc0] sm:$0xff] %v668
          %v670 = vld [vmem:[%s618 + $0xc8] sm:$0xff]
          %671 = vst [vmem:[%s619 + $0xc8] sm:$0xff] %v670
          %v672 = vld [vmem:[%s618 + $0xd0] sm:$0xff]
          %673 = vst [vmem:[%s619 + $0xd0] sm:$0xff] %v672
          %v674 = vld [vmem:[%s618 + $0xd8] sm:$0xff]
          %675 = vst [vmem:[%s619 + $0xd8] sm:$0xff] %v674
          %v676 = vld [vmem:[%s618 + $0xe0] sm:$0xff]
          %677 = vst [vmem:[%s619 + $0xe0] sm:$0xff] %v676
          %v678 = vld [vmem:[%s618 + $0xe8] sm:$0xff]
          %679 = vst [vmem:[%s619 + $0xe8] sm:$0xff] %v678
          %v680 = vld [vmem:[%s618 + $0xf0] sm:$0xff]
          %681 = vst [vmem:[%s619 + $0xf0] sm:$0xff] %v680
          %v682 = vld [vmem:[%s618 + $0xf8] sm:$0xff]
          %683 = vst [vmem:[%s619 + $0xf8] sm:$0xff] %v682
        $region52: #{reverse.11} parent=46 // loop_footer
          %s617 = sadd.s32 1, %s613
        $region53: #{reverse.11} parent=46 // loop_footer_branch
          %612 = sbr.rel target = $region49
        $region54: #{reverse.11} parent=46 // loop_exit
          _
      $region47: #{reverse.11} parent=38 // pred_fallthru
        _
    $region39: #{reverse.11} parent=1 // pred_fallthru
      _
    %760 = vnop

// kernel: fno_forward.11
$region0: #{fno_forward.11}
  #allocation0 [shape = 'u32[]', space=smem, size = 0x4, offset = 0x4, fixed_abs, tag = 'smem constant byte address 0x4 - core index']
  #allocation1 [shape = 'u32[144,128]{1,0:T(1,128)}', space=vmem, size = 0x12000, scoped, tag = 'internal scratch']
  %s0 = inlined_call_operand.vmem [shape: f32[8,2,32], index: 0, kind: input, shape index: {}]
  %s1 = inlined_call_operand.vmem [shape: f32[8,2,32], index: 1, kind: input, shape index: {}]
  %s2 = inlined_call_operand.vmem [shape: f32[8,8,32], index: 2, kind: input, shape index: {}]
  %s3 = inlined_call_operand.vmem [shape: f32[8,8,32], index: 3, kind: input, shape index: {}]
  %s4 = inlined_call_operand.vmem [shape: f32[8,2,32], index: 4, kind: output, shape index: {0}]
  %s5 = inlined_call_operand.vmem [shape: f32[8,2,32], index: 5, kind: output, shape index: {1}]
  %6 = xla_tuple %s4, %s5
  %s7 = sld [smem:[#allocation0]]
  $region34: #{fno_forward.11} parent=0
    _
  %s9 = ssub.s32 1, %s7
  %s10 = scalar_select 0, %s9, %s7
  // Predicated region
  $region2: #{fno_forward.11} parent=0 // pred_check
    _
  $region3: #{fno_forward.11} parent=0 // pred_check_branch
    %12 = sbr.rel (0) target = $region5
  $region4: #{fno_forward.11} parent=0 // pred_region
    _
  $region5: #{fno_forward.11} parent=0 // pred_fallthru
    _
  // Predicated region
  $region6: #{fno_forward.11} parent=0 // pred_check
    _
  $region7: #{fno_forward.11} parent=0 // pred_check_branch
    %14 = sbr.rel (0) target = $region9
  $region8: #{fno_forward.11} parent=0 // pred_region
    _
  $region9: #{fno_forward.11} parent=0 // pred_fallthru
    _
  // Predicated region
  $region10: #{fno_forward.11} parent=0 // pred_check
    _
  $region11: #{fno_forward.11} parent=0 // pred_check_branch
    %16 = sbr.rel (0) target = $region13
  $region12: #{fno_forward.11} parent=0 // pred_region
    _
  $region13: #{fno_forward.11} parent=0 // pred_fallthru
    _
  // Predicated region
  $region14: #{fno_forward.11} parent=0 // pred_check
    _
  $region15: #{fno_forward.11} parent=0 // pred_check_branch
    %18 = sbr.rel (0) target = $region17
  $region16: #{fno_forward.11} parent=0 // pred_region
    _
  $region17: #{fno_forward.11} parent=0 // pred_fallthru
    _
  %v19 = vld [vmem:[%s0] sm:$0x3]
  %v20 = vld [vmem:[%s1] sm:$0x3]
  %v21 = vld [vmem:[%s2] sm:$0xff]
  %v23 = vcombine.high %v21, %v21
  %v25 = vunpack.c.l.s4 1966171168
  %v26 = vunpack.c.0.s8 %v25
  %v27 = vlaneseq
  %v28 = vshrl.u32 %v27, 7
  %v29 = vsub.s32 %v26, %v28
  %v30 = vrot.slane %v21, %v29
  %v32 = vunpack.c.l.s4 1966171168
  %v33 = vunpack.c.0.s8 %v32
  %v34 = vlaneseq
  %v35 = vshrl.u32 %v34, 7
  %v36 = vsub.s32 %v33, %v35
  %v37 = vrot.slane %v23, %v36
  %v38 = vcombine.high %v30, %v30
  %v39 = vcombine.high %v37, %v37
  %v41 = vunpack.c.l.s4 1966171168
  %v42 = vunpack.c.0.s8 %v41
  %v43 = vlaneseq
  %v44 = vshrl.u32 %v43, 7
  %v45 = vsub.s32 %v42, %v44
  %v46 = vrot.slane %v30, %v45
  %v48 = vunpack.c.l.s4 1966171168
  %v49 = vunpack.c.0.s8 %v48
  %v50 = vlaneseq
  %v51 = vshrl.u32 %v50, 7
  %v52 = vsub.s32 %v49, %v51
  %v53 = vrot.slane %v37, %v52
  %v55 = vunpack.c.l.s4 1966171168
  %v56 = vunpack.c.0.s8 %v55
  %v57 = vlaneseq
  %v58 = vshrl.u32 %v57, 7
  %v59 = vsub.s32 %v56, %v58
  %v60 = vrot.slane %v38, %v59
  %v62 = vunpack.c.l.s4 1966171168
  %v63 = vunpack.c.0.s8 %v62
  %v64 = vlaneseq
  %v65 = vshrl.u32 %v64, 7
  %v66 = vsub.s32 %v63, %v65
  %v67 = vrot.slane %v39, %v66
  %v68 = vcombine.high %v46, %v46
  %v69 = vcombine.high %v53, %v53
  %v70 = vcombine.high %v60, %v60
  %v71 = vcombine.high %v67, %v67
  %v72 = vld [vmem:[%s3] sm:$0xff]
  %v74 = vcombine.high %v72, %v72
  %v76 = vunpack.c.l.s4 1966171168
  %v77 = vunpack.c.0.s8 %v76
  %v78 = vlaneseq
  %v79 = vshrl.u32 %v78, 7
  %v80 = vsub.s32 %v77, %v79
  %v81 = vrot.slane %v72, %v80
  %v83 = vunpack.c.l.s4 1966171168
  %v84 = vunpack.c.0.s8 %v83
  %v85 = vlaneseq
  %v86 = vshrl.u32 %v85, 7
  %v87 = vsub.s32 %v84, %v86
  %v88 = vrot.slane %v74, %v87
  %v89 = vcombine.high %v81, %v81
  %v90 = vcombine.high %v88, %v88
  %v92 = vunpack.c.l.s4 1966171168
  %v93 = vunpack.c.0.s8 %v92
  %v94 = vlaneseq
  %v95 = vshrl.u32 %v94, 7
  %v96 = vsub.s32 %v93, %v95
  %v97 = vrot.slane %v81, %v96
  %v99 = vunpack.c.l.s4 1966171168
  %v100 = vunpack.c.0.s8 %v99
  %v101 = vlaneseq
  %v102 = vshrl.u32 %v101, 7
  %v103 = vsub.s32 %v100, %v102
  %v104 = vrot.slane %v88, %v103
  %v106 = vunpack.c.l.s4 1966171168
  %v107 = vunpack.c.0.s8 %v106
  %v108 = vlaneseq
  %v109 = vshrl.u32 %v108, 7
  %v110 = vsub.s32 %v107, %v109
  %v111 = vrot.slane %v89, %v110
  %v113 = vunpack.c.l.s4 1966171168
  %v114 = vunpack.c.0.s8 %v113
  %v115 = vlaneseq
  %v116 = vshrl.u32 %v115, 7
  %v117 = vsub.s32 %v114, %v116
  %v118 = vrot.slane %v90, %v117
  %v119 = vcombine.high %v97, %v97
  %v120 = vcombine.high %v104, %v104
  %v121 = vcombine.high %v111, %v111
  %v122 = vcombine.high %v118, %v118
  %v123 = vlaneseq
  %v124 = vshrl.u32 %v123, 7
  %v125 = vsub.s32 0, %v124
  %v126 = vrot.slane %v46, %v125
  %v127 = vlaneseq
  %v128 = vshrl.u32 %v127, 7
  %v129 = vsub.s32 0, %v128
  %v130 = vrot.slane %v60, %v129
  %v131 = vlaneseq
  %v132 = vshrl.u32 %v131, 7
  %v133 = vsub.s32 0, %v132
  %v134 = vrot.slane %v68, %v133
  %v135 = vlaneseq
  %v136 = vshrl.u32 %v135, 7
  %v137 = vsub.s32 0, %v136
  %v138 = vrot.slane %v70, %v137
  %v139 = vlaneseq
  %v140 = vshrl.u32 %v139, 7
  %v141 = vsub.s32 0, %v140
  %v142 = vrot.slane %v53, %v141
  %v143 = vlaneseq
  %v144 = vshrl.u32 %v143, 7
  %v145 = vsub.s32 0, %v144
  %v146 = vrot.slane %v67, %v145
  %v147 = vlaneseq
  %v148 = vshrl.u32 %v147, 7
  %v149 = vsub.s32 0, %v148
  %v150 = vrot.slane %v69, %v149
  %v151 = vlaneseq
  %v152 = vshrl.u32 %v151, 7
  %v153 = vsub.s32 0, %v152
  %v154 = vrot.slane %v71, %v153
  %v163 = vmul.f32 %v19, %v126
  %v164 = vmul.f32 %v19, %v130
  %v165 = vmul.f32 %v19, %v134
  %v166 = vmul.f32 %v19, %v138
  %v167 = vmul.f32 %v19, %v142
  %v168 = vmul.f32 %v19, %v146
  %v169 = vmul.f32 %v19, %v150
  %v170 = vmul.f32 %v19, %v154
  %v171 = vadd.f32 %v163, 0.0
  %v172 = vadd.f32 %v164, 0.0
  %v173 = vadd.f32 %v165, 0.0
  %v174 = vadd.f32 %v166, 0.0
  %v175 = vadd.f32 %v167, 0.0
  %v176 = vadd.f32 %v168, 0.0
  %v177 = vadd.f32 %v169, 0.0
  %v178 = vadd.f32 %v170, 0.0
  %v179 = vlaneseq
  %v180 = vshrl.u32 %v179, 7
  %v181 = vsub.s32 0, %v180
  %v182 = vrot.slane %v97, %v181
  %v183 = vlaneseq
  %v184 = vshrl.u32 %v183, 7
  %v185 = vsub.s32 0, %v184
  %v186 = vrot.slane %v111, %v185
  %v187 = vlaneseq
  %v188 = vshrl.u32 %v187, 7
  %v189 = vsub.s32 0, %v188
  %v190 = vrot.slane %v119, %v189
  %v191 = vlaneseq
  %v192 = vshrl.u32 %v191, 7
  %v193 = vsub.s32 0, %v192
  %v194 = vrot.slane %v121, %v193
  %v195 = vlaneseq
  %v196 = vshrl.u32 %v195, 7
  %v197 = vsub.s32 0, %v196
  %v198 = vrot.slane %v104, %v197
  %v199 = vlaneseq
  %v200 = vshrl.u32 %v199, 7
  %v201 = vsub.s32 0, %v200
  %v202 = vrot.slane %v118, %v201
  %v203 = vlaneseq
  %v204 = vshrl.u32 %v203, 7
  %v205 = vsub.s32 0, %v204
  %v206 = vrot.slane %v120, %v205
  %v207 = vlaneseq
  %v208 = vshrl.u32 %v207, 7
  %v209 = vsub.s32 0, %v208
  %v210 = vrot.slane %v122, %v209
  %v219 = vmul.f32 %v20, %v182
  %v220 = vmul.f32 %v20, %v186
  %v221 = vmul.f32 %v20, %v190
  %v222 = vmul.f32 %v20, %v194
  %v223 = vmul.f32 %v20, %v198
  %v224 = vmul.f32 %v20, %v202
  %v225 = vmul.f32 %v20, %v206
  %v226 = vmul.f32 %v20, %v210
  %v227 = vsub.f32 %v171, %v219
  %v228 = vsub.f32 %v172, %v220
  %v229 = vsub.f32 %v173, %v221
  %v230 = vsub.f32 %v174, %v222
  %v231 = vsub.f32 %v175, %v223
  %v232 = vsub.f32 %v176, %v224
  %v233 = vsub.f32 %v177, %v225
  %v234 = vsub.f32 %v178, %v226
  %v235 = vmul.f32 %v19, %v182
  %v236 = vmul.f32 %v19, %v186
  %v237 = vmul.f32 %v19, %v190
  %v238 = vmul.f32 %v19, %v194
  %v239 = vmul.f32 %v19, %v198
  %v240 = vmul.f32 %v19, %v202
  %v241 = vmul.f32 %v19, %v206
  %v242 = vmul.f32 %v19, %v210
  %v243 = vadd.f32 %v235, 0.0
  %v244 = vadd.f32 %v236, 0.0
  %v245 = vadd.f32 %v237, 0.0
  %v246 = vadd.f32 %v238, 0.0
  %v247 = vadd.f32 %v239, 0.0
  %v248 = vadd.f32 %v240, 0.0
  %v249 = vadd.f32 %v241, 0.0
  %v250 = vadd.f32 %v242, 0.0
  %v251 = vmul.f32 %v20, %v126
  %v252 = vmul.f32 %v20, %v130
  %v253 = vmul.f32 %v20, %v134
  %v254 = vmul.f32 %v20, %v138
  %v255 = vmul.f32 %v20, %v142
  %v256 = vmul.f32 %v20, %v146
  %v257 = vmul.f32 %v20, %v150
  %v258 = vmul.f32 %v20, %v154
  %v259 = vadd.f32 %v243, %v251
  %v260 = vadd.f32 %v244, %v252
  %v261 = vadd.f32 %v245, %v253
  %v262 = vadd.f32 %v246, %v254
  %v263 = vadd.f32 %v247, %v255
  %v264 = vadd.f32 %v248, %v256
  %v265 = vadd.f32 %v249, %v257
  %v266 = vadd.f32 %v250, %v258
  %s267 = scalar_lea.vmem %s0, 2
  %v268 = vld [vmem:[%s267] sm:$0x3]
  %s269 = scalar_lea.vmem %s1, 2
  %v270 = vld [vmem:[%s269] sm:$0x3]
  %s271 = scalar_lea.vmem %s2, 8
  %v272 = vld [vmem:[%s271] sm:$0xff]
  %v274 = vcombine.high %v272, %v272
  %v276 = vunpack.c.l.s4 1966171168
  %v277 = vunpack.c.0.s8 %v276
  %v278 = vlaneseq
  %v279 = vshrl.u32 %v278, 7
  %v280 = vsub.s32 %v277, %v279
  %v281 = vrot.slane %v272, %v280
  %v283 = vunpack.c.l.s4 1966171168
  %v284 = vunpack.c.0.s8 %v283
  %v285 = vlaneseq
  %v286 = vshrl.u32 %v285, 7
  %v287 = vsub.s32 %v284, %v286
  %v288 = vrot.slane %v274, %v287
  %v289 = vcombine.high %v281, %v281
  %v290 = vcombine.high %v288, %v288
  %v292 = vunpack.c.l.s4 1966171168
  %v293 = vunpack.c.0.s8 %v292
  %v294 = vlaneseq
  %v295 = vshrl.u32 %v294, 7
  %v296 = vsub.s32 %v293, %v295
  %v297 = vrot.slane %v281, %v296
  %v299 = vunpack.c.l.s4 1966171168
  %v300 = vunpack.c.0.s8 %v299
  %v301 = vlaneseq
  %v302 = vshrl.u32 %v301, 7
  %v303 = vsub.s32 %v300, %v302
  %v304 = vrot.slane %v288, %v303
  %v306 = vunpack.c.l.s4 1966171168
  %v307 = vunpack.c.0.s8 %v306
  %v308 = vlaneseq
  %v309 = vshrl.u32 %v308, 7
  %v310 = vsub.s32 %v307, %v309
  %v311 = vrot.slane %v289, %v310
  %v313 = vunpack.c.l.s4 1966171168
  %v314 = vunpack.c.0.s8 %v313
  %v315 = vlaneseq
  %v316 = vshrl.u32 %v315, 7
  %v317 = vsub.s32 %v314, %v316
  %v318 = vrot.slane %v290, %v317
  %v319 = vcombine.high %v297, %v297
  %v320 = vcombine.high %v304, %v304
  %v321 = vcombine.high %v311, %v311
  %v322 = vcombine.high %v318, %v318
  %s323 = scalar_lea.vmem %s3, 8
  %v324 = vld [vmem:[%s323] sm:$0xff]
  %v326 = vcombine.high %v324, %v324
  %v328 = vunpack.c.l.s4 1966171168
  %v329 = vunpack.c.0.s8 %v328
  %v330 = vlaneseq
  %v331 = vshrl.u32 %v330, 7
  %v332 = vsub.s32 %v329, %v331
  %v333 = vrot.slane %v324, %v332
  %v335 = vunpack.c.l.s4 1966171168
  %v336 = vunpack.c.0.s8 %v335
  %v337 = vlaneseq
  %v338 = vshrl.u32 %v337, 7
  %v339 = vsub.s32 %v336, %v338
  %v340 = vrot.slane %v326, %v339
  %v341 = vcombine.high %v333, %v333
  %v342 = vcombine.high %v340, %v340
  %v344 = vunpack.c.l.s4 1966171168
  %v345 = vunpack.c.0.s8 %v344
  %v346 = vlaneseq
  %v347 = vshrl.u32 %v346, 7
  %v348 = vsub.s32 %v345, %v347
  %v349 = vrot.slane %v333, %v348
  %v351 = vunpack.c.l.s4 1966171168
  %v352 = vunpack.c.0.s8 %v351
  %v353 = vlaneseq
  %v354 = vshrl.u32 %v353, 7
  %v355 = vsub.s32 %v352, %v354
  %v356 = vrot.slane %v340, %v355
  %v358 = vunpack.c.l.s4 1966171168
  %v359 = vunpack.c.0.s8 %v358
  %v360 = vlaneseq
  %v361 = vshrl.u32 %v360, 7
  %v362 = vsub.s32 %v359, %v361
  %v363 = vrot.slane %v341, %v362
  %v365 = vunpack.c.l.s4 1966171168
  %v366 = vunpack.c.0.s8 %v365
  %v367 = vlaneseq
  %v368 = vshrl.u32 %v367, 7
  %v369 = vsub.s32 %v366, %v368
  %v370 = vrot.slane %v342, %v369
  %v371 = vcombine.high %v349, %v349
  %v372 = vcombine.high %v356, %v356
  %v373 = vcombine.high %v363, %v363
  %v374 = vcombine.high %v370, %v370
  %v375 = vlaneseq
  %v376 = vshrl.u32 %v375, 7
  %v377 = vsub.s32 0, %v376
  %v378 = vrot.slane %v297, %v377
  %v379 = vlaneseq
  %v380 = vshrl.u32 %v379, 7
  %v381 = vsub.s32 0, %v380
  %v382 = vrot.slane %v311, %v381
  %v383 = vlaneseq
  %v384 = vshrl.u32 %v383, 7
  %v385 = vsub.s32 0, %v384
  %v386 = vrot.slane %v319, %v385
  %v387 = vlaneseq
  %v388 = vshrl.u32 %v387, 7
  %v389 = vsub.s32 0, %v388
  %v390 = vrot.slane %v321, %v389
  %v391 = vlaneseq
  %v392 = vshrl.u32 %v391, 7
  %v393 = vsub.s32 0, %v392
  %v394 = vrot.slane %v304, %v393
  %v395 = vlaneseq
  %v396 = vshrl.u32 %v395, 7
  %v397 = vsub.s32 0, %v396
  %v398 = vrot.slane %v318, %v397
  %v399 = vlaneseq
  %v400 = vshrl.u32 %v399, 7
  %v401 = vsub.s32 0, %v400
  %v402 = vrot.slane %v320, %v401
  %v403 = vlaneseq
  %v404 = vshrl.u32 %v403, 7
  %v405 = vsub.s32 0, %v404
  %v406 = vrot.slane %v322, %v405
  %v415 = vmul.f32 %v268, %v378
  %v416 = vmul.f32 %v268, %v382
  %v417 = vmul.f32 %v268, %v386
  %v418 = vmul.f32 %v268, %v390
  %v419 = vmul.f32 %v268, %v394
  %v420 = vmul.f32 %v268, %v398
  %v421 = vmul.f32 %v268, %v402
  %v422 = vmul.f32 %v268, %v406
  %v423 = vadd.f32 %v227, %v415
  %v424 = vadd.f32 %v228, %v416
  %v425 = vadd.f32 %v229, %v417
  %v426 = vadd.f32 %v230, %v418
  %v427 = vadd.f32 %v231, %v419
  %v428 = vadd.f32 %v232, %v420
  %v429 = vadd.f32 %v233, %v421
  %v430 = vadd.f32 %v234, %v422
  %v431 = vlaneseq
  %v432 = vshrl.u32 %v431, 7
  %v433 = vsub.s32 0, %v432
  %v434 = vrot.slane %v349, %v433
  %v435 = vlaneseq
  %v436 = vshrl.u32 %v435, 7
  %v437 = vsub.s32 0, %v436
  %v438 = vrot.slane %v363, %v437
  %v439 = vlaneseq
  %v440 = vshrl.u32 %v439, 7
  %v441 = vsub.s32 0, %v440
  %v442 = vrot.slane %v371, %v441
  %v443 = vlaneseq
  %v444 = vshrl.u32 %v443, 7
  %v445 = vsub.s32 0, %v444
  %v446 = vrot.slane %v373, %v445
  %v447 = vlaneseq
  %v448 = vshrl.u32 %v447, 7
  %v449 = vsub.s32 0, %v448
  %v450 = vrot.slane %v356, %v449
  %v451 = vlaneseq
  %v452 = vshrl.u32 %v451, 7
  %v453 = vsub.s32 0, %v452
  %v454 = vrot.slane %v370, %v453
  %v455 = vlaneseq
  %v456 = vshrl.u32 %v455, 7
  %v457 = vsub.s32 0, %v456
  %v458 = vrot.slane %v372, %v457
  %v459 = vlaneseq
  %v460 = vshrl.u32 %v459, 7
  %v461 = vsub.s32 0, %v460
  %v462 = vrot.slane %v374, %v461
  %v471 = vmul.f32 %v270, %v434
  %v472 = vmul.f32 %v270, %v438
  %v473 = vmul.f32 %v270, %v442
  %v474 = vmul.f32 %v270, %v446
  %v475 = vmul.f32 %v270, %v450
  %v476 = vmul.f32 %v270, %v454
  %v477 = vmul.f32 %v270, %v458
  %v478 = vmul.f32 %v270, %v462
  %v479 = vsub.f32 %v423, %v471
  %v480 = vsub.f32 %v424, %v472
  %v481 = vsub.f32 %v425, %v473
  %v482 = vsub.f32 %v426, %v474
  %v483 = vsub.f32 %v427, %v475
  %v484 = vsub.f32 %v428, %v476
  %v485 = vsub.f32 %v429, %v477
  %v486 = vsub.f32 %v430, %v478
  %v487 = vmul.f32 %v268, %v434
  %v488 = vmul.f32 %v268, %v438
  %v489 = vmul.f32 %v268, %v442
  %v490 = vmul.f32 %v268, %v446
  %v491 = vmul.f32 %v268, %v450
  %v492 = vmul.f32 %v268, %v454
  %v493 = vmul.f32 %v268, %v458
  %v494 = vmul.f32 %v268, %v462
  %v495 = vadd.f32 %v259, %v487
  %v496 = vadd.f32 %v260, %v488
  %v497 = vadd.f32 %v261, %v489
  %v498 = vadd.f32 %v262, %v490
  %v499 = vadd.f32 %v263, %v491
  %v500 = vadd.f32 %v264, %v492
  %v501 = vadd.f32 %v265, %v493
  %v502 = vadd.f32 %v266, %v494
  %v503 = vmul.f32 %v270, %v378
  %v504 = vmul.f32 %v270, %v382
  %v505 = vmul.f32 %v270, %v386
  %v506 = vmul.f32 %v270, %v390
  %v507 = vmul.f32 %v270, %v394
  %v508 = vmul.f32 %v270, %v398
  %v509 = vmul.f32 %v270, %v402
  %v510 = vmul.f32 %v270, %v406
  %v511 = vadd.f32 %v495, %v503
  %v512 = vadd.f32 %v496, %v504
  %v513 = vadd.f32 %v497, %v505
  %v514 = vadd.f32 %v498, %v506
  %v515 = vadd.f32 %v499, %v507
  %v516 = vadd.f32 %v500, %v508
  %v517 = vadd.f32 %v501, %v509
  %v518 = vadd.f32 %v502, %v510
  %s519 = scalar_lea.vmem %s0, 4
  %v520 = vld [vmem:[%s519] sm:$0x3]
  %s521 = scalar_lea.vmem %s1, 4
  %v522 = vld [vmem:[%s521] sm:$0x3]
  %s523 = scalar_lea.vmem %s2, 16
  %v524 = vld [vmem:[%s523] sm:$0xff]
  %v526 = vcombine.high %v524, %v524
  %v528 = vunpack.c.l.s4 1966171168
  %v529 = vunpack.c.0.s8 %v528
  %v530 = vlaneseq
  %v531 = vshrl.u32 %v530, 7
  %v532 = vsub.s32 %v529, %v531
  %v533 = vrot.slane %v524, %v532
  %v535 = vunpack.c.l.s4 1966171168
  %v536 = vunpack.c.0.s8 %v535
  %v537 = vlaneseq
  %v538 = vshrl.u32 %v537, 7
  %v539 = vsub.s32 %v536, %v538
  %v540 = vrot.slane %v526, %v539
  %v541 = vcombine.high %v533, %v533
  %v542 = vcombine.high %v540, %v540
  %v544 = vunpack.c.l.s4 1966171168
  %v545 = vunpack.c.0.s8 %v544
  %v546 = vlaneseq
  %v547 = vshrl.u32 %v546, 7
  %v548 = vsub.s32 %v545, %v547
  %v549 = vrot.slane %v533, %v548
  %v551 = vunpack.c.l.s4 1966171168
  %v552 = vunpack.c.0.s8 %v551
  %v553 = vlaneseq
  %v554 = vshrl.u32 %v553, 7
  %v555 = vsub.s32 %v552, %v554
  %v556 = vrot.slane %v540, %v555
  %v558 = vunpack.c.l.s4 1966171168
  %v559 = vunpack.c.0.s8 %v558
  %v560 = vlaneseq
  %v561 = vshrl.u32 %v560, 7
  %v562 = vsub.s32 %v559, %v561
  %v563 = vrot.slane %v541, %v562
  %v565 = vunpack.c.l.s4 1966171168
  %v566 = vunpack.c.0.s8 %v565
  %v567 = vlaneseq
  %v568 = vshrl.u32 %v567, 7
  %v569 = vsub.s32 %v566, %v568
  %v570 = vrot.slane %v542, %v569
  %v571 = vcombine.high %v549, %v549
  %v572 = vcombine.high %v556, %v556
  %v573 = vcombine.high %v563, %v563
  %v574 = vcombine.high %v570, %v570
  %s575 = scalar_lea.vmem %s3, 16
  %v576 = vld [vmem:[%s575] sm:$0xff]
  %v578 = vcombine.high %v576, %v576
  %v580 = vunpack.c.l.s4 1966171168
  %v581 = vunpack.c.0.s8 %v580
  %v582 = vlaneseq
  %v583 = vshrl.u32 %v582, 7
  %v584 = vsub.s32 %v581, %v583
  %v585 = vrot.slane %v576, %v584
  %v587 = vunpack.c.l.s4 1966171168
  %v588 = vunpack.c.0.s8 %v587
  %v589 = vlaneseq
  %v590 = vshrl.u32 %v589, 7
  %v591 = vsub.s32 %v588, %v590
  %v592 = vrot.slane %v578, %v591
  %v593 = vcombine.high %v585, %v585
  %v594 = vcombine.high %v592, %v592
  %v596 = vunpack.c.l.s4 1966171168
  %v597 = vunpack.c.0.s8 %v596
  %v598 = vlaneseq
  %v599 = vshrl.u32 %v598, 7
  %v600 = vsub.s32 %v597, %v599
  %v601 = vrot.slane %v585, %v600
  %v603 = vunpack.c.l.s4 1966171168
  %v604 = vunpack.c.0.s8 %v603
  %v605 = vlaneseq
  %v606 = vshrl.u32 %v605, 7
  %v607 = vsub.s32 %v604, %v606
  %v608 = vrot.slane %v592, %v607
  %v610 = vunpack.c.l.s4 1966171168
  %v611 = vunpack.c.0.s8 %v610
  %v612 = vlaneseq
  %v613 = vshrl.u32 %v612, 7
  %v614 = vsub.s32 %v611, %v613
  %v615 = vrot.slane %v593, %v614
  %v617 = vunpack.c.l.s4 1966171168
  %v618 = vunpack.c.0.s8 %v617
  %v619 = vlaneseq
  %v620 = vshrl.u32 %v619, 7
  %v621 = vsub.s32 %v618, %v620
  %v622 = vrot.slane %v594, %v621
  %v623 = vcombine.high %v601, %v601
  %v624 = vcombine.high %v608, %v608
  %v625 = vcombine.high %v615, %v615
  %v626 = vcombine.high %v622, %v622
  %v627 = vlaneseq
  %v628 = vshrl.u32 %v627, 7
  %v629 = vsub.s32 0, %v628
  %v630 = vrot.slane %v549, %v629
  %v631 = vlaneseq
  %v632 = vshrl.u32 %v631, 7
  %v633 = vsub.s32 0, %v632
  %v634 = vrot.slane %v563, %v633
  %v635 = vlaneseq
  %v636 = vshrl.u32 %v635, 7
  %v637 = vsub.s32 0, %v636
  %v638 = vrot.slane %v571, %v637
  %v639 = vlaneseq
  %v640 = vshrl.u32 %v639, 7
  %v641 = vsub.s32 0, %v640
  %v642 = vrot.slane %v573, %v641
  %v643 = vlaneseq
  %v644 = vshrl.u32 %v643, 7
  %v645 = vsub.s32 0, %v644
  %v646 = vrot.slane %v556, %v645
  %v647 = vlaneseq
  %v648 = vshrl.u32 %v647, 7
  %v649 = vsub.s32 0, %v648
  %v650 = vrot.slane %v570, %v649
  %v651 = vlaneseq
  %v652 = vshrl.u32 %v651, 7
  %v653 = vsub.s32 0, %v652
  %v654 = vrot.slane %v572, %v653
  %v655 = vlaneseq
  %v656 = vshrl.u32 %v655, 7
  %v657 = vsub.s32 0, %v656
  %v658 = vrot.slane %v574, %v657
  %v667 = vmul.f32 %v520, %v630
  %v668 = vmul.f32 %v520, %v634
  %v669 = vmul.f32 %v520, %v638
  %v670 = vmul.f32 %v520, %v642
  %v671 = vmul.f32 %v520, %v646
  %v672 = vmul.f32 %v520, %v650
  %v673 = vmul.f32 %v520, %v654
  %v674 = vmul.f32 %v520, %v658
  %v675 = vadd.f32 %v479, %v667
  %v676 = vadd.f32 %v480, %v668
  %v677 = vadd.f32 %v481, %v669
  %v678 = vadd.f32 %v482, %v670
  %v679 = vadd.f32 %v483, %v671
  %v680 = vadd.f32 %v484, %v672
  %v681 = vadd.f32 %v485, %v673
  %v682 = vadd.f32 %v486, %v674
  %v683 = vlaneseq
  %v684 = vshrl.u32 %v683, 7
  %v685 = vsub.s32 0, %v684
  %v686 = vrot.slane %v601, %v685
  %v687 = vlaneseq
  %v688 = vshrl.u32 %v687, 7
  %v689 = vsub.s32 0, %v688
  %v690 = vrot.slane %v615, %v689
  %v691 = vlaneseq
  %v692 = vshrl.u32 %v691, 7
  %v693 = vsub.s32 0, %v692
  %v694 = vrot.slane %v623, %v693
  %v695 = vlaneseq
  %v696 = vshrl.u32 %v695, 7
  %v697 = vsub.s32 0, %v696
  %v698 = vrot.slane %v625, %v697
  %v699 = vlaneseq
  %v700 = vshrl.u32 %v699, 7
  %v701 = vsub.s32 0, %v700
  %v702 = vrot.slane %v608, %v701
  %v703 = vlaneseq
  %v704 = vshrl.u32 %v703, 7
  %v705 = vsub.s32 0, %v704
  %v706 = vrot.slane %v622, %v705
  %v707 = vlaneseq
  %v708 = vshrl.u32 %v707, 7
  %v709 = vsub.s32 0, %v708
  %v710 = vrot.slane %v624, %v709
  %v711 = vlaneseq
  %v712 = vshrl.u32 %v711, 7
  %v713 = vsub.s32 0, %v712
  %v714 = vrot.slane %v626, %v713
  %v723 = vmul.f32 %v522, %v686
  %v724 = vmul.f32 %v522, %v690
  %v725 = vmul.f32 %v522, %v694
  %v726 = vmul.f32 %v522, %v698
  %v727 = vmul.f32 %v522, %v702
  %v728 = vmul.f32 %v522, %v706
  %v729 = vmul.f32 %v522, %v710
  %v730 = vmul.f32 %v522, %v714
  %v731 = vsub.f32 %v675, %v723
  %v732 = vsub.f32 %v676, %v724
  %v733 = vsub.f32 %v677, %v725
  %v734 = vsub.f32 %v678, %v726
  %v735 = vsub.f32 %v679, %v727
  %v736 = vsub.f32 %v680, %v728
  %v737 = vsub.f32 %v681, %v729
  %v738 = vsub.f32 %v682, %v730
  %v739 = vmul.f32 %v520, %v686
  %v740 = vmul.f32 %v520, %v690
  %v741 = vmul.f32 %v520, %v694
  %v742 = vmul.f32 %v520, %v698
  %v743 = vmul.f32 %v520, %v702
  %v744 = vmul.f32 %v520, %v706
  %v745 = vmul.f32 %v520, %v710
  %v746 = vmul.f32 %v520, %v714
  %v747 = vadd.f32 %v511, %v739
  %v748 = vadd.f32 %v512, %v740
  %v749 = vadd.f32 %v513, %v741
  %v750 = vadd.f32 %v514, %v742
  %v751 = vadd.f32 %v515, %v743
  %v752 = vadd.f32 %v516, %v744
  %v753 = vadd.f32 %v517, %v745
  %v754 = vadd.f32 %v518, %v746
  %v755 = vmul.f32 %v522, %v630
  %v756 = vmul.f32 %v522, %v634
  %v757 = vmul.f32 %v522, %v638
  %v758 = vmul.f32 %v522, %v642
  %v759 = vmul.f32 %v522, %v646
  %v760 = vmul.f32 %v522, %v650
  %v761 = vmul.f32 %v522, %v654
  %v762 = vmul.f32 %v522, %v658
  %v763 = vadd.f32 %v747, %v755
  %v764 = vadd.f32 %v748, %v756
  %v765 = vadd.f32 %v749, %v757
  %v766 = vadd.f32 %v750, %v758
  %v767 = vadd.f32 %v751, %v759
  %v768 = vadd.f32 %v752, %v760
  %v769 = vadd.f32 %v753, %v761
  %v770 = vadd.f32 %v754, %v762
  %s771 = scalar_lea.vmem %s0, 6
  %v772 = vld [vmem:[%s771] sm:$0x3]
  %s773 = scalar_lea.vmem %s1, 6
  %v774 = vld [vmem:[%s773] sm:$0x3]
  %s775 = scalar_lea.vmem %s2, 24
  %v776 = vld [vmem:[%s775] sm:$0xff]
  %v778 = vcombine.high %v776, %v776
  %v780 = vunpack.c.l.s4 1966171168
  %v781 = vunpack.c.0.s8 %v780
  %v782 = vlaneseq
  %v783 = vshrl.u32 %v782, 7
  %v784 = vsub.s32 %v781, %v783
  %v785 = vrot.slane %v776, %v784
  %v787 = vunpack.c.l.s4 1966171168
  %v788 = vunpack.c.0.s8 %v787
  %v789 = vlaneseq
  %v790 = vshrl.u32 %v789, 7
  %v791 = vsub.s32 %v788, %v790
  %v792 = vrot.slane %v778, %v791
  %v793 = vcombine.high %v785, %v785
  %v794 = vcombine.high %v792, %v792
  %v796 = vunpack.c.l.s4 1966171168
  %v797 = vunpack.c.0.s8 %v796
  %v798 = vlaneseq
  %v799 = vshrl.u32 %v798, 7
  %v800 = vsub.s32 %v797, %v799
  %v801 = vrot.slane %v785, %v800
  %v803 = vunpack.c.l.s4 1966171168
  %v804 = vunpack.c.0.s8 %v803
  %v805 = vlaneseq
  %v806 = vshrl.u32 %v805, 7
  %v807 = vsub.s32 %v804, %v806
  %v808 = vrot.slane %v792, %v807
  %v810 = vunpack.c.l.s4 1966171168
  %v811 = vunpack.c.0.s8 %v810
  %v812 = vlaneseq
  %v813 = vshrl.u32 %v812, 7
  %v814 = vsub.s32 %v811, %v813
  %v815 = vrot.slane %v793, %v814
  %v817 = vunpack.c.l.s4 1966171168
  %v818 = vunpack.c.0.s8 %v817
  %v819 = vlaneseq
  %v820 = vshrl.u32 %v819, 7
  %v821 = vsub.s32 %v818, %v820
  %v822 = vrot.slane %v794, %v821
  %v823 = vcombine.high %v801, %v801
  %v824 = vcombine.high %v808, %v808
  %v825 = vcombine.high %v815, %v815
  %v826 = vcombine.high %v822, %v822
  %s827 = scalar_lea.vmem %s3, 24
  %v828 = vld [vmem:[%s827] sm:$0xff]
  %v830 = vcombine.high %v828, %v828
  %v832 = vunpack.c.l.s4 1966171168
  %v833 = vunpack.c.0.s8 %v832
  %v834 = vlaneseq
  %v835 = vshrl.u32 %v834, 7
  %v836 = vsub.s32 %v833, %v835
  %v837 = vrot.slane %v828, %v836
  %v839 = vunpack.c.l.s4 1966171168
  %v840 = vunpack.c.0.s8 %v839
  %v841 = vlaneseq
  %v842 = vshrl.u32 %v841, 7
  %v843 = vsub.s32 %v840, %v842
  %v844 = vrot.slane %v830, %v843
  %v845 = vcombine.high %v837, %v837
  %v846 = vcombine.high %v844, %v844
  %v848 = vunpack.c.l.s4 1966171168
  %v849 = vunpack.c.0.s8 %v848
  %v850 = vlaneseq
  %v851 = vshrl.u32 %v850, 7
  %v852 = vsub.s32 %v849, %v851
  %v853 = vrot.slane %v837, %v852
  %v855 = vunpack.c.l.s4 1966171168
  %v856 = vunpack.c.0.s8 %v855
  %v857 = vlaneseq
  %v858 = vshrl.u32 %v857, 7
  %v859 = vsub.s32 %v856, %v858
  %v860 = vrot.slane %v844, %v859
  %v862 = vunpack.c.l.s4 1966171168
  %v863 = vunpack.c.0.s8 %v862
  %v864 = vlaneseq
  %v865 = vshrl.u32 %v864, 7
  %v866 = vsub.s32 %v863, %v865
  %v867 = vrot.slane %v845, %v866
  %v869 = vunpack.c.l.s4 1966171168
  %v870 = vunpack.c.0.s8 %v869
  %v871 = vlaneseq
  %v872 = vshrl.u32 %v871, 7
  %v873 = vsub.s32 %v870, %v872
  %v874 = vrot.slane %v846, %v873
  %v875 = vcombine.high %v853, %v853
  %v876 = vcombine.high %v860, %v860
  %v877 = vcombine.high %v867, %v867
  %v878 = vcombine.high %v874, %v874
  %v879 = vlaneseq
  %v880 = vshrl.u32 %v879, 7
  %v881 = vsub.s32 0, %v880
  %v882 = vrot.slane %v801, %v881
  %v883 = vlaneseq
  %v884 = vshrl.u32 %v883, 7
  %v885 = vsub.s32 0, %v884
  %v886 = vrot.slane %v815, %v885
  %v887 = vlaneseq
  %v888 = vshrl.u32 %v887, 7
  %v889 = vsub.s32 0, %v888
  %v890 = vrot.slane %v823, %v889
  %v891 = vlaneseq
  %v892 = vshrl.u32 %v891, 7
  %v893 = vsub.s32 0, %v892
  %v894 = vrot.slane %v825, %v893
  %v895 = vlaneseq
  %v896 = vshrl.u32 %v895, 7
  %v897 = vsub.s32 0, %v896
  %v898 = vrot.slane %v808, %v897
  %v899 = vlaneseq
  %v900 = vshrl.u32 %v899, 7
  %v901 = vsub.s32 0, %v900
  %v902 = vrot.slane %v822, %v901
  %v903 = vlaneseq
  %v904 = vshrl.u32 %v903, 7
  %v905 = vsub.s32 0, %v904
  %v906 = vrot.slane %v824, %v905
  %v907 = vlaneseq
  %v908 = vshrl.u32 %v907, 7
  %v909 = vsub.s32 0, %v908
  %v910 = vrot.slane %v826, %v909
  %v919 = vmul.f32 %v772, %v882
  %v920 = vmul.f32 %v772, %v886
  %v921 = vmul.f32 %v772, %v890
  %v922 = vmul.f32 %v772, %v894
  %v923 = vmul.f32 %v772, %v898
  %v924 = vmul.f32 %v772, %v902
  %v925 = vmul.f32 %v772, %v906
  %v926 = vmul.f32 %v772, %v910
  %v927 = vadd.f32 %v731, %v919
  %v928 = vadd.f32 %v732, %v920
  %v929 = vadd.f32 %v733, %v921
  %v930 = vadd.f32 %v734, %v922
  %v931 = vadd.f32 %v735, %v923
  %v932 = vadd.f32 %v736, %v924
  %v933 = vadd.f32 %v737, %v925
  %v934 = vadd.f32 %v738, %v926
  %v935 = vlaneseq
  %v936 = vshrl.u32 %v935, 7
  %v937 = vsub.s32 0, %v936
  %v938 = vrot.slane %v853, %v937
  %v939 = vlaneseq
  %v940 = vshrl.u32 %v939, 7
  %v941 = vsub.s32 0, %v940
  %v942 = vrot.slane %v867, %v941
  %v943 = vlaneseq
  %v944 = vshrl.u32 %v943, 7
  %v945 = vsub.s32 0, %v944
  %v946 = vrot.slane %v875, %v945
  %v947 = vlaneseq
  %v948 = vshrl.u32 %v947, 7
  %v949 = vsub.s32 0, %v948
  %v950 = vrot.slane %v877, %v949
  %v951 = vlaneseq
  %v952 = vshrl.u32 %v951, 7
  %v953 = vsub.s32 0, %v952
  %v954 = vrot.slane %v860, %v953
  %v955 = vlaneseq
  %v956 = vshrl.u32 %v955, 7
  %v957 = vsub.s32 0, %v956
  %v958 = vrot.slane %v874, %v957
  %v959 = vlaneseq
  %v960 = vshrl.u32 %v959, 7
  %v961 = vsub.s32 0, %v960
  %v962 = vrot.slane %v876, %v961
  %v963 = vlaneseq
  %v964 = vshrl.u32 %v963, 7
  %v965 = vsub.s32 0, %v964
  %v966 = vrot.slane %v878, %v965
  %v975 = vmul.f32 %v774, %v938
  %v976 = vmul.f32 %v774, %v942
  %v977 = vmul.f32 %v774, %v946
  %v978 = vmul.f32 %v774, %v950
  %v979 = vmul.f32 %v774, %v954
  %v980 = vmul.f32 %v774, %v958
  %v981 = vmul.f32 %v774, %v962
  %v982 = vmul.f32 %v774, %v966
  %v983 = vsub.f32 %v927, %v975
  %v984 = vsub.f32 %v928, %v976
  %v985 = vsub.f32 %v929, %v977
  %v986 = vsub.f32 %v930, %v978
  %v987 = vsub.f32 %v931, %v979
  %v988 = vsub.f32 %v932, %v980
  %v989 = vsub.f32 %v933, %v981
  %v990 = vsub.f32 %v934, %v982
  %v991 = vmul.f32 %v772, %v938
  %v992 = vmul.f32 %v772, %v942
  %v993 = vmul.f32 %v772, %v946
  %v994 = vmul.f32 %v772, %v950
  %v995 = vmul.f32 %v772, %v954
  %v996 = vmul.f32 %v772, %v958
  %v997 = vmul.f32 %v772, %v962
  %v998 = vmul.f32 %v772, %v966
  %v999 = vadd.f32 %v763, %v991
  %v1000 = vadd.f32 %v764, %v992
  %v1001 = vadd.f32 %v765, %v993
  %v1002 = vadd.f32 %v766, %v994
  %v1003 = vadd.f32 %v767, %v995
  %v1004 = vadd.f32 %v768, %v996
  %v1005 = vadd.f32 %v769, %v997
  %v1006 = vadd.f32 %v770, %v998
  %v1007 = vmul.f32 %v774, %v882
  %v1008 = vmul.f32 %v774, %v886
  %v1009 = vmul.f32 %v774, %v890
  %v1010 = vmul.f32 %v774, %v894
  %v1011 = vmul.f32 %v774, %v898
  %v1012 = vmul.f32 %v774, %v902
  %v1013 = vmul.f32 %v774, %v906
  %v1014 = vmul.f32 %v774, %v910
  %v1015 = vadd.f32 %v999, %v1007
  %v1016 = vadd.f32 %v1000, %v1008
  %v1017 = vadd.f32 %v1001, %v1009
  %v1018 = vadd.f32 %v1002, %v1010
  %v1019 = vadd.f32 %v1003, %v1011
  %v1020 = vadd.f32 %v1004, %v1012
  %v1021 = vadd.f32 %v1005, %v1013
  %v1022 = vadd.f32 %v1006, %v1014
  %s1023 = scalar_lea.vmem %s0, 8
  %v1024 = vld [vmem:[%s1023] sm:$0x3]
  %s1025 = scalar_lea.vmem %s1, 8
  %v1026 = vld [vmem:[%s1025] sm:$0x3]
  %s1027 = scalar_lea.vmem %s2, 32
  %v1028 = vld [vmem:[%s1027] sm:$0xff]
  %v1030 = vcombine.high %v1028, %v1028
  %v1032 = vunpack.c.l.s4 1966171168
  %v1033 = vunpack.c.0.s8 %v1032
  %v1034 = vlaneseq
  %v1035 = vshrl.u32 %v1034, 7
  %v1036 = vsub.s32 %v1033, %v1035
  %v1037 = vrot.slane %v1028, %v1036
  %v1039 = vunpack.c.l.s4 1966171168
  %v1040 = vunpack.c.0.s8 %v1039
  %v1041 = vlaneseq
  %v1042 = vshrl.u32 %v1041, 7
  %v1043 = vsub.s32 %v1040, %v1042
  %v1044 = vrot.slane %v1030, %v1043
  %v1045 = vcombine.high %v1037, %v1037
  %v1046 = vcombine.high %v1044, %v1044
  %v1048 = vunpack.c.l.s4 1966171168
  %v1049 = vunpack.c.0.s8 %v1048
  %v1050 = vlaneseq
  %v1051 = vshrl.u32 %v1050, 7
  %v1052 = vsub.s32 %v1049, %v1051
  %v1053 = vrot.slane %v1037, %v1052
  %v1055 = vunpack.c.l.s4 1966171168
  %v1056 = vunpack.c.0.s8 %v1055
  %v1057 = vlaneseq
  %v1058 = vshrl.u32 %v1057, 7
  %v1059 = vsub.s32 %v1056, %v1058
  %v1060 = vrot.slane %v1044, %v1059
  %v1062 = vunpack.c.l.s4 1966171168
  %v1063 = vunpack.c.0.s8 %v1062
  %v1064 = vlaneseq
  %v1065 = vshrl.u32 %v1064, 7
  %v1066 = vsub.s32 %v1063, %v1065
  %v1067 = vrot.slane %v1045, %v1066
  %v1069 = vunpack.c.l.s4 1966171168
  %v1070 = vunpack.c.0.s8 %v1069
  %v1071 = vlaneseq
  %v1072 = vshrl.u32 %v1071, 7
  %v1073 = vsub.s32 %v1070, %v1072
  %v1074 = vrot.slane %v1046, %v1073
  %v1075 = vcombine.high %v1053, %v1053
  %v1076 = vcombine.high %v1060, %v1060
  %v1077 = vcombine.high %v1067, %v1067
  %v1078 = vcombine.high %v1074, %v1074
  %s1079 = scalar_lea.vmem %s3, 32
  %v1080 = vld [vmem:[%s1079] sm:$0xff]
  %v1082 = vcombine.high %v1080, %v1080
  %v1084 = vunpack.c.l.s4 1966171168
  %v1085 = vunpack.c.0.s8 %v1084
  %v1086 = vlaneseq
  %v1087 = vshrl.u32 %v1086, 7
  %v1088 = vsub.s32 %v1085, %v1087
  %v1089 = vrot.slane %v1080, %v1088
  %v1091 = vunpack.c.l.s4 1966171168
  %v1092 = vunpack.c.0.s8 %v1091
  %v1093 = vlaneseq
  %v1094 = vshrl.u32 %v1093, 7
  %v1095 = vsub.s32 %v1092, %v1094
  %v1096 = vrot.slane %v1082, %v1095
  %v1097 = vcombine.high %v1089, %v1089
  %v1098 = vcombine.high %v1096, %v1096
  %v1100 = vunpack.c.l.s4 1966171168
  %v1101 = vunpack.c.0.s8 %v1100
  %v1102 = vlaneseq
  %v1103 = vshrl.u32 %v1102, 7
  %v1104 = vsub.s32 %v1101, %v1103
  %v1105 = vrot.slane %v1089, %v1104
  %v1107 = vunpack.c.l.s4 1966171168
  %v1108 = vunpack.c.0.s8 %v1107
  %v1109 = vlaneseq
  %v1110 = vshrl.u32 %v1109, 7
  %v1111 = vsub.s32 %v1108, %v1110
  %v1112 = vrot.slane %v1096, %v1111
  %v1114 = vunpack.c.l.s4 1966171168
  %v1115 = vunpack.c.0.s8 %v1114
  %v1116 = vlaneseq
  %v1117 = vshrl.u32 %v1116, 7
  %v1118 = vsub.s32 %v1115, %v1117
  %v1119 = vrot.slane %v1097, %v1118
  %v1121 = vunpack.c.l.s4 1966171168
  %v1122 = vunpack.c.0.s8 %v1121
  %v1123 = vlaneseq
  %v1124 = vshrl.u32 %v1123, 7
  %v1125 = vsub.s32 %v1122, %v1124
  %v1126 = vrot.slane %v1098, %v1125
  %v1127 = vcombine.high %v1105, %v1105
  %v1128 = vcombine.high %v1112, %v1112
  %v1129 = vcombine.high %v1119, %v1119
  %v1130 = vcombine.high %v1126, %v1126
  %v1131 = vlaneseq
  %v1132 = vshrl.u32 %v1131, 7
  %v1133 = vsub.s32 0, %v1132
  %v1134 = vrot.slane %v1053, %v1133
  %v1135 = vlaneseq
  %v1136 = vshrl.u32 %v1135, 7
  %v1137 = vsub.s32 0, %v1136
  %v1138 = vrot.slane %v1067, %v1137
  %v1139 = vlaneseq
  %v1140 = vshrl.u32 %v1139, 7
  %v1141 = vsub.s32 0, %v1140
  %v1142 = vrot.slane %v1075, %v1141
  %v1143 = vlaneseq
  %v1144 = vshrl.u32 %v1143, 7
  %v1145 = vsub.s32 0, %v1144
  %v1146 = vrot.slane %v1077, %v1145
  %v1147 = vlaneseq
  %v1148 = vshrl.u32 %v1147, 7
  %v1149 = vsub.s32 0, %v1148
  %v1150 = vrot.slane %v1060, %v1149
  %v1151 = vlaneseq
  %v1152 = vshrl.u32 %v1151, 7
  %v1153 = vsub.s32 0, %v1152
  %v1154 = vrot.slane %v1074, %v1153
  %v1155 = vlaneseq
  %v1156 = vshrl.u32 %v1155, 7
  %v1157 = vsub.s32 0, %v1156
  %v1158 = vrot.slane %v1076, %v1157
  %v1159 = vlaneseq
  %v1160 = vshrl.u32 %v1159, 7
  %v1161 = vsub.s32 0, %v1160
  %v1162 = vrot.slane %v1078, %v1161
  %v1171 = vmul.f32 %v1024, %v1134
  %v1172 = vmul.f32 %v1024, %v1138
  %v1173 = vmul.f32 %v1024, %v1142
  %v1174 = vmul.f32 %v1024, %v1146
  %v1175 = vmul.f32 %v1024, %v1150
  %v1176 = vmul.f32 %v1024, %v1154
  %v1177 = vmul.f32 %v1024, %v1158
  %v1178 = vmul.f32 %v1024, %v1162
  %v1179 = vadd.f32 %v983, %v1171
  %v1180 = vadd.f32 %v984, %v1172
  %v1181 = vadd.f32 %v985, %v1173
  %v1182 = vadd.f32 %v986, %v1174
  %v1183 = vadd.f32 %v987, %v1175
  %v1184 = vadd.f32 %v988, %v1176
  %v1185 = vadd.f32 %v989, %v1177
  %v1186 = vadd.f32 %v990, %v1178
  %v1187 = vlaneseq
  %v1188 = vshrl.u32 %v1187, 7
  %v1189 = vsub.s32 0, %v1188
  %v1190 = vrot.slane %v1105, %v1189
  %v1191 = vlaneseq
  %v1192 = vshrl.u32 %v1191, 7
  %v1193 = vsub.s32 0, %v1192
  %v1194 = vrot.slane %v1119, %v1193
  %v1195 = vlaneseq
  %v1196 = vshrl.u32 %v1195, 7
  %v1197 = vsub.s32 0, %v1196
  %v1198 = vrot.slane %v1127, %v1197
  %v1199 = vlaneseq
  %v1200 = vshrl.u32 %v1199, 7
  %v1201 = vsub.s32 0, %v1200
  %v1202 = vrot.slane %v1129, %v1201
  %v1203 = vlaneseq
  %v1204 = vshrl.u32 %v1203, 7
  %v1205 = vsub.s32 0, %v1204
  %v1206 = vrot.slane %v1112, %v1205
  %v1207 = vlaneseq
  %v1208 = vshrl.u32 %v1207, 7
  %v1209 = vsub.s32 0, %v1208
  %v1210 = vrot.slane %v1126, %v1209
  %v1211 = vlaneseq
  %v1212 = vshrl.u32 %v1211, 7
  %v1213 = vsub.s32 0, %v1212
  %v1214 = vrot.slane %v1128, %v1213
  %v1215 = vlaneseq
  %v1216 = vshrl.u32 %v1215, 7
  %v1217 = vsub.s32 0, %v1216
  %v1218 = vrot.slane %v1130, %v1217
  %v1227 = vmul.f32 %v1026, %v1190
  %v1228 = vmul.f32 %v1026, %v1194
  %v1229 = vmul.f32 %v1026, %v1198
  %v1230 = vmul.f32 %v1026, %v1202
  %v1231 = vmul.f32 %v1026, %v1206
  %v1232 = vmul.f32 %v1026, %v1210
  %v1233 = vmul.f32 %v1026, %v1214
  %v1234 = vmul.f32 %v1026, %v1218
  %v1235 = vsub.f32 %v1179, %v1227
  %v1236 = vsub.f32 %v1180, %v1228
  %v1237 = vsub.f32 %v1181, %v1229
  %v1238 = vsub.f32 %v1182, %v1230
  %v1239 = vsub.f32 %v1183, %v1231
  %v1240 = vsub.f32 %v1184, %v1232
  %v1241 = vsub.f32 %v1185, %v1233
  %v1242 = vsub.f32 %v1186, %v1234
  %v1243 = vmul.f32 %v1024, %v1190
  %v1244 = vmul.f32 %v1024, %v1194
  %v1245 = vmul.f32 %v1024, %v1198
  %v1246 = vmul.f32 %v1024, %v1202
  %v1247 = vmul.f32 %v1024, %v1206
  %v1248 = vmul.f32 %v1024, %v1210
  %v1249 = vmul.f32 %v1024, %v1214
  %v1250 = vmul.f32 %v1024, %v1218
  %v1251 = vadd.f32 %v1015, %v1243
  %v1252 = vadd.f32 %v1016, %v1244
  %v1253 = vadd.f32 %v1017, %v1245
  %v1254 = vadd.f32 %v1018, %v1246
  %v1255 = vadd.f32 %v1019, %v1247
  %v1256 = vadd.f32 %v1020, %v1248
  %v1257 = vadd.f32 %v1021, %v1249
  %v1258 = vadd.f32 %v1022, %v1250
  %v1259 = vmul.f32 %v1026, %v1134
  %v1260 = vmul.f32 %v1026, %v1138
  %v1261 = vmul.f32 %v1026, %v1142
  %v1262 = vmul.f32 %v1026, %v1146
  %v1263 = vmul.f32 %v1026, %v1150
  %v1264 = vmul.f32 %v1026, %v1154
  %v1265 = vmul.f32 %v1026, %v1158
  %v1266 = vmul.f32 %v1026, %v1162
  %v1267 = vadd.f32 %v1251, %v1259
  %v1268 = vadd.f32 %v1252, %v1260
  %v1269 = vadd.f32 %v1253, %v1261
  %v1270 = vadd.f32 %v1254, %v1262
  %v1271 = vadd.f32 %v1255, %v1263
  %v1272 = vadd.f32 %v1256, %v1264
  %v1273 = vadd.f32 %v1257, %v1265
  %v1274 = vadd.f32 %v1258, %v1266
  %s1275 = scalar_lea.vmem %s0, 10
  %v1276 = vld [vmem:[%s1275] sm:$0x3]
  %s1277 = scalar_lea.vmem %s1, 10
  %v1278 = vld [vmem:[%s1277] sm:$0x3]
  %s1279 = scalar_lea.vmem %s2, 40
  %v1280 = vld [vmem:[%s1279] sm:$0xff]
  %v1282 = vcombine.high %v1280, %v1280
  %v1284 = vunpack.c.l.s4 1966171168
  %v1285 = vunpack.c.0.s8 %v1284
  %v1286 = vlaneseq
  %v1287 = vshrl.u32 %v1286, 7
  %v1288 = vsub.s32 %v1285, %v1287
  %v1289 = vrot.slane %v1280, %v1288
  %v1291 = vunpack.c.l.s4 1966171168
  %v1292 = vunpack.c.0.s8 %v1291
  %v1293 = vlaneseq
  %v1294 = vshrl.u32 %v1293, 7
  %v1295 = vsub.s32 %v1292, %v1294
  %v1296 = vrot.slane %v1282, %v1295
  %v1297 = vcombine.high %v1289, %v1289
  %v1298 = vcombine.high %v1296, %v1296
  %v1300 = vunpack.c.l.s4 1966171168
  %v1301 = vunpack.c.0.s8 %v1300
  %v1302 = vlaneseq
  %v1303 = vshrl.u32 %v1302, 7
  %v1304 = vsub.s32 %v1301, %v1303
  %v1305 = vrot.slane %v1289, %v1304
  %v1307 = vunpack.c.l.s4 1966171168
  %v1308 = vunpack.c.0.s8 %v1307
  %v1309 = vlaneseq
  %v1310 = vshrl.u32 %v1309, 7
  %v1311 = vsub.s32 %v1308, %v1310
  %v1312 = vrot.slane %v1296, %v1311
  %v1314 = vunpack.c.l.s4 1966171168
  %v1315 = vunpack.c.0.s8 %v1314
  %v1316 = vlaneseq
  %v1317 = vshrl.u32 %v1316, 7
  %v1318 = vsub.s32 %v1315, %v1317
  %v1319 = vrot.slane %v1297, %v1318
  %v1321 = vunpack.c.l.s4 1966171168
  %v1322 = vunpack.c.0.s8 %v1321
  %v1323 = vlaneseq
  %v1324 = vshrl.u32 %v1323, 7
  %v1325 = vsub.s32 %v1322, %v1324
  %v1326 = vrot.slane %v1298, %v1325
  %v1327 = vcombine.high %v1305, %v1305
  %v1328 = vcombine.high %v1312, %v1312
  %v1329 = vcombine.high %v1319, %v1319
  %v1330 = vcombine.high %v1326, %v1326
  %s1331 = scalar_lea.vmem %s3, 40
  %v1332 = vld [vmem:[%s1331] sm:$0xff]
  %v1334 = vcombine.high %v1332, %v1332
  %v1336 = vunpack.c.l.s4 1966171168
  %v1337 = vunpack.c.0.s8 %v1336
  %v1338 = vlaneseq
  %v1339 = vshrl.u32 %v1338, 7
  %v1340 = vsub.s32 %v1337, %v1339
  %v1341 = vrot.slane %v1332, %v1340
  %v1343 = vunpack.c.l.s4 1966171168
  %v1344 = vunpack.c.0.s8 %v1343
  %v1345 = vlaneseq
  %v1346 = vshrl.u32 %v1345, 7
  %v1347 = vsub.s32 %v1344, %v1346
  %v1348 = vrot.slane %v1334, %v1347
  %v1349 = vcombine.high %v1341, %v1341
  %v1350 = vcombine.high %v1348, %v1348
  %v1352 = vunpack.c.l.s4 1966171168
  %v1353 = vunpack.c.0.s8 %v1352
  %v1354 = vlaneseq
  %v1355 = vshrl.u32 %v1354, 7
  %v1356 = vsub.s32 %v1353, %v1355
  %v1357 = vrot.slane %v1341, %v1356
  %v1359 = vunpack.c.l.s4 1966171168
  %v1360 = vunpack.c.0.s8 %v1359
  %v1361 = vlaneseq
  %v1362 = vshrl.u32 %v1361, 7
  %v1363 = vsub.s32 %v1360, %v1362
  %v1364 = vrot.slane %v1348, %v1363
  %v1366 = vunpack.c.l.s4 1966171168
  %v1367 = vunpack.c.0.s8 %v1366
  %v1368 = vlaneseq
  %v1369 = vshrl.u32 %v1368, 7
  %v1370 = vsub.s32 %v1367, %v1369
  %v1371 = vrot.slane %v1349, %v1370
  %v1373 = vunpack.c.l.s4 1966171168
  %v1374 = vunpack.c.0.s8 %v1373
  %v1375 = vlaneseq
  %v1376 = vshrl.u32 %v1375, 7
  %v1377 = vsub.s32 %v1374, %v1376
  %v1378 = vrot.slane %v1350, %v1377
  %v1379 = vcombine.high %v1357, %v1357
  %v1380 = vcombine.high %v1364, %v1364
  %v1381 = vcombine.high %v1371, %v1371
  %v1382 = vcombine.high %v1378, %v1378
  %v1383 = vlaneseq
  %v1384 = vshrl.u32 %v1383, 7
  %v1385 = vsub.s32 0, %v1384
  %v1386 = vrot.slane %v1305, %v1385
  %v1387 = vlaneseq
  %v1388 = vshrl.u32 %v1387, 7
  %v1389 = vsub.s32 0, %v1388
  %v1390 = vrot.slane %v1319, %v1389
  %v1391 = vlaneseq
  %v1392 = vshrl.u32 %v1391, 7
  %v1393 = vsub.s32 0, %v1392
  %v1394 = vrot.slane %v1327, %v1393
  %v1395 = vlaneseq
  %v1396 = vshrl.u32 %v1395, 7
  %v1397 = vsub.s32 0, %v1396
  %v1398 = vrot.slane %v1329, %v1397
  %v1399 = vlaneseq
  %v1400 = vshrl.u32 %v1399, 7
  %v1401 = vsub.s32 0, %v1400
  %v1402 = vrot.slane %v1312, %v1401
  %v1403 = vlaneseq
  %v1404 = vshrl.u32 %v1403, 7
  %v1405 = vsub.s32 0, %v1404
  %v1406 = vrot.slane %v1326, %v1405
  %v1407 = vlaneseq
  %v1408 = vshrl.u32 %v1407, 7
  %v1409 = vsub.s32 0, %v1408
  %v1410 = vrot.slane %v1328, %v1409
  %v1411 = vlaneseq
  %v1412 = vshrl.u32 %v1411, 7
  %v1413 = vsub.s32 0, %v1412
  %v1414 = vrot.slane %v1330, %v1413
  %v1423 = vmul.f32 %v1276, %v1386
  %v1424 = vmul.f32 %v1276, %v1390
  %v1425 = vmul.f32 %v1276, %v1394
  %v1426 = vmul.f32 %v1276, %v1398
  %v1427 = vmul.f32 %v1276, %v1402
  %v1428 = vmul.f32 %v1276, %v1406
  %v1429 = vmul.f32 %v1276, %v1410
  %v1430 = vmul.f32 %v1276, %v1414
  %v1431 = vadd.f32 %v1235, %v1423
  %v1432 = vadd.f32 %v1236, %v1424
  %v1433 = vadd.f32 %v1237, %v1425
  %v1434 = vadd.f32 %v1238, %v1426
  %v1435 = vadd.f32 %v1239, %v1427
  %v1436 = vadd.f32 %v1240, %v1428
  %v1437 = vadd.f32 %v1241, %v1429
  %v1438 = vadd.f32 %v1242, %v1430
  %v1439 = vlaneseq
  %v1440 = vshrl.u32 %v1439, 7
  %v1441 = vsub.s32 0, %v1440
  %v1442 = vrot.slane %v1357, %v1441
  %v1443 = vlaneseq
  %v1444 = vshrl.u32 %v1443, 7
  %v1445 = vsub.s32 0, %v1444
  %v1446 = vrot.slane %v1371, %v1445
  %v1447 = vlaneseq
  %v1448 = vshrl.u32 %v1447, 7
  %v1449 = vsub.s32 0, %v1448
  %v1450 = vrot.slane %v1379, %v1449
  %v1451 = vlaneseq
  %v1452 = vshrl.u32 %v1451, 7
  %v1453 = vsub.s32 0, %v1452
  %v1454 = vrot.slane %v1381, %v1453
  %v1455 = vlaneseq
  %v1456 = vshrl.u32 %v1455, 7
  %v1457 = vsub.s32 0, %v1456
  %v1458 = vrot.slane %v1364, %v1457
  %v1459 = vlaneseq
  %v1460 = vshrl.u32 %v1459, 7
  %v1461 = vsub.s32 0, %v1460
  %v1462 = vrot.slane %v1378, %v1461
  %v1463 = vlaneseq
  %v1464 = vshrl.u32 %v1463, 7
  %v1465 = vsub.s32 0, %v1464
  %v1466 = vrot.slane %v1380, %v1465
  %v1467 = vlaneseq
  %v1468 = vshrl.u32 %v1467, 7
  %v1469 = vsub.s32 0, %v1468
  %v1470 = vrot.slane %v1382, %v1469
  %v1479 = vmul.f32 %v1278, %v1442
  %v1480 = vmul.f32 %v1278, %v1446
  %v1481 = vmul.f32 %v1278, %v1450
  %v1482 = vmul.f32 %v1278, %v1454
  %v1483 = vmul.f32 %v1278, %v1458
  %v1484 = vmul.f32 %v1278, %v1462
  %v1485 = vmul.f32 %v1278, %v1466
  %v1486 = vmul.f32 %v1278, %v1470
  %v1487 = vsub.f32 %v1431, %v1479
  %v1488 = vsub.f32 %v1432, %v1480
  %v1489 = vsub.f32 %v1433, %v1481
  %v1490 = vsub.f32 %v1434, %v1482
  %v1491 = vsub.f32 %v1435, %v1483
  %v1492 = vsub.f32 %v1436, %v1484
  %v1493 = vsub.f32 %v1437, %v1485
  %v1494 = vsub.f32 %v1438, %v1486
  %v1495 = vmul.f32 %v1276, %v1442
  %v1496 = vmul.f32 %v1276, %v1446
  %v1497 = vmul.f32 %v1276, %v1450
  %v1498 = vmul.f32 %v1276, %v1454
  %v1499 = vmul.f32 %v1276, %v1458
  %v1500 = vmul.f32 %v1276, %v1462
  %v1501 = vmul.f32 %v1276, %v1466
  %v1502 = vmul.f32 %v1276, %v1470
  %v1503 = vadd.f32 %v1267, %v1495
  %v1504 = vadd.f32 %v1268, %v1496
  %v1505 = vadd.f32 %v1269, %v1497
  %v1506 = vadd.f32 %v1270, %v1498
  %v1507 = vadd.f32 %v1271, %v1499
  %v1508 = vadd.f32 %v1272, %v1500
  %v1509 = vadd.f32 %v1273, %v1501
  %v1510 = vadd.f32 %v1274, %v1502
  %v1511 = vmul.f32 %v1278, %v1386
  %v1512 = vmul.f32 %v1278, %v1390
  %v1513 = vmul.f32 %v1278, %v1394
  %v1514 = vmul.f32 %v1278, %v1398
  %v1515 = vmul.f32 %v1278, %v1402
  %v1516 = vmul.f32 %v1278, %v1406
  %v1517 = vmul.f32 %v1278, %v1410
  %v1518 = vmul.f32 %v1278, %v1414
  %v1519 = vadd.f32 %v1503, %v1511
  %v1520 = vadd.f32 %v1504, %v1512
  %v1521 = vadd.f32 %v1505, %v1513
  %v1522 = vadd.f32 %v1506, %v1514
  %v1523 = vadd.f32 %v1507, %v1515
  %v1524 = vadd.f32 %v1508, %v1516
  %v1525 = vadd.f32 %v1509, %v1517
  %v1526 = vadd.f32 %v1510, %v1518
  %s1527 = scalar_lea.vmem %s0, 12
  %v1528 = vld [vmem:[%s1527] sm:$0x3]
  %s1529 = scalar_lea.vmem %s1, 12
  %v1530 = vld [vmem:[%s1529] sm:$0x3]
  %s1531 = scalar_lea.vmem %s2, 48
  %v1532 = vld [vmem:[%s1531] sm:$0xff]
  %v1534 = vcombine.high %v1532, %v1532
  %v1536 = vunpack.c.l.s4 1966171168
  %v1537 = vunpack.c.0.s8 %v1536
  %v1538 = vlaneseq
  %v1539 = vshrl.u32 %v1538, 7
  %v1540 = vsub.s32 %v1537, %v1539
  %v1541 = vrot.slane %v1532, %v1540
  %v1543 = vunpack.c.l.s4 1966171168
  %v1544 = vunpack.c.0.s8 %v1543
  %v1545 = vlaneseq
  %v1546 = vshrl.u32 %v1545, 7
  %v1547 = vsub.s32 %v1544, %v1546
  %v1548 = vrot.slane %v1534, %v1547
  %v1549 = vcombine.high %v1541, %v1541
  %v1550 = vcombine.high %v1548, %v1548
  %v1552 = vunpack.c.l.s4 1966171168
  %v1553 = vunpack.c.0.s8 %v1552
  %v1554 = vlaneseq
  %v1555 = vshrl.u32 %v1554, 7
  %v1556 = vsub.s32 %v1553, %v1555
  %v1557 = vrot.slane %v1541, %v1556
  %v1559 = vunpack.c.l.s4 1966171168
  %v1560 = vunpack.c.0.s8 %v1559
  %v1561 = vlaneseq
  %v1562 = vshrl.u32 %v1561, 7
  %v1563 = vsub.s32 %v1560, %v1562
  %v1564 = vrot.slane %v1548, %v1563
  %v1566 = vunpack.c.l.s4 1966171168
  %v1567 = vunpack.c.0.s8 %v1566
  %v1568 = vlaneseq
  %v1569 = vshrl.u32 %v1568, 7
  %v1570 = vsub.s32 %v1567, %v1569
  %v1571 = vrot.slane %v1549, %v1570
  %v1573 = vunpack.c.l.s4 1966171168
  %v1574 = vunpack.c.0.s8 %v1573
  %v1575 = vlaneseq
  %v1576 = vshrl.u32 %v1575, 7
  %v1577 = vsub.s32 %v1574, %v1576
  %v1578 = vrot.slane %v1550, %v1577
  %v1579 = vcombine.high %v1557, %v1557
  %v1580 = vcombine.high %v1564, %v1564
  %v1581 = vcombine.high %v1571, %v1571
  %v1582 = vcombine.high %v1578, %v1578
  %s1583 = scalar_lea.vmem %s3, 48
  %v1584 = vld [vmem:[%s1583] sm:$0xff]
  %v1586 = vcombine.high %v1584, %v1584
  %v1588 = vunpack.c.l.s4 1966171168
  %v1589 = vunpack.c.0.s8 %v1588
  %v1590 = vlaneseq
  %v1591 = vshrl.u32 %v1590, 7
  %v1592 = vsub.s32 %v1589, %v1591
  %v1593 = vrot.slane %v1584, %v1592
  %v1595 = vunpack.c.l.s4 1966171168
  %v1596 = vunpack.c.0.s8 %v1595
  %v1597 = vlaneseq
  %v1598 = vshrl.u32 %v1597, 7
  %v1599 = vsub.s32 %v1596, %v1598
  %v1600 = vrot.slane %v1586, %v1599
  %v1601 = vcombine.high %v1593, %v1593
  %v1602 = vcombine.high %v1600, %v1600
  %v1604 = vunpack.c.l.s4 1966171168
  %v1605 = vunpack.c.0.s8 %v1604
  %v1606 = vlaneseq
  %v1607 = vshrl.u32 %v1606, 7
  %v1608 = vsub.s32 %v1605, %v1607
  %v1609 = vrot.slane %v1593, %v1608
  %v1611 = vunpack.c.l.s4 1966171168
  %v1612 = vunpack.c.0.s8 %v1611
  %v1613 = vlaneseq
  %v1614 = vshrl.u32 %v1613, 7
  %v1615 = vsub.s32 %v1612, %v1614
  %v1616 = vrot.slane %v1600, %v1615
  %v1618 = vunpack.c.l.s4 1966171168
  %v1619 = vunpack.c.0.s8 %v1618
  %v1620 = vlaneseq
  %v1621 = vshrl.u32 %v1620, 7
  %v1622 = vsub.s32 %v1619, %v1621
  %v1623 = vrot.slane %v1601, %v1622
  %v1625 = vunpack.c.l.s4 1966171168
  %v1626 = vunpack.c.0.s8 %v1625
  %v1627 = vlaneseq
  %v1628 = vshrl.u32 %v1627, 7
  %v1629 = vsub.s32 %v1626, %v1628
  %v1630 = vrot.slane %v1602, %v1629
  %v1631 = vcombine.high %v1609, %v1609
  %v1632 = vcombine.high %v1616, %v1616
  %v1633 = vcombine.high %v1623, %v1623
  %v1634 = vcombine.high %v1630, %v1630
  %v1635 = vlaneseq
  %v1636 = vshrl.u32 %v1635, 7
  %v1637 = vsub.s32 0, %v1636
  %v1638 = vrot.slane %v1557, %v1637
  %v1639 = vlaneseq
  %v1640 = vshrl.u32 %v1639, 7
  %v1641 = vsub.s32 0, %v1640
  %v1642 = vrot.slane %v1571, %v1641
  %v1643 = vlaneseq
  %v1644 = vshrl.u32 %v1643, 7
  %v1645 = vsub.s32 0, %v1644
  %v1646 = vrot.slane %v1579, %v1645
  %v1647 = vlaneseq
  %v1648 = vshrl.u32 %v1647, 7
  %v1649 = vsub.s32 0, %v1648
  %v1650 = vrot.slane %v1581, %v1649
  %v1651 = vlaneseq
  %v1652 = vshrl.u32 %v1651, 7
  %v1653 = vsub.s32 0, %v1652
  %v1654 = vrot.slane %v1564, %v1653
  %v1655 = vlaneseq
  %v1656 = vshrl.u32 %v1655, 7
  %v1657 = vsub.s32 0, %v1656
  %v1658 = vrot.slane %v1578, %v1657
  %v1659 = vlaneseq
  %v1660 = vshrl.u32 %v1659, 7
  %v1661 = vsub.s32 0, %v1660
  %v1662 = vrot.slane %v1580, %v1661
  %v1663 = vlaneseq
  %v1664 = vshrl.u32 %v1663, 7
  %v1665 = vsub.s32 0, %v1664
  %v1666 = vrot.slane %v1582, %v1665
  %v1675 = vmul.f32 %v1528, %v1638
  %v1676 = vmul.f32 %v1528, %v1642
  %v1677 = vmul.f32 %v1528, %v1646
  %v1678 = vmul.f32 %v1528, %v1650
  %v1679 = vmul.f32 %v1528, %v1654
  %v1680 = vmul.f32 %v1528, %v1658
  %v1681 = vmul.f32 %v1528, %v1662
  %v1682 = vmul.f32 %v1528, %v1666
  %v1683 = vadd.f32 %v1487, %v1675
  %v1684 = vadd.f32 %v1488, %v1676
  %v1685 = vadd.f32 %v1489, %v1677
  %v1686 = vadd.f32 %v1490, %v1678
  %v1687 = vadd.f32 %v1491, %v1679
  %v1688 = vadd.f32 %v1492, %v1680
  %v1689 = vadd.f32 %v1493, %v1681
  %v1690 = vadd.f32 %v1494, %v1682
  %v1691 = vlaneseq
  %v1692 = vshrl.u32 %v1691, 7
  %v1693 = vsub.s32 0, %v1692
  %v1694 = vrot.slane %v1609, %v1693
  %v1695 = vlaneseq
  %v1696 = vshrl.u32 %v1695, 7
  %v1697 = vsub.s32 0, %v1696
  %v1698 = vrot.slane %v1623, %v1697
  %v1699 = vlaneseq
  %v1700 = vshrl.u32 %v1699, 7
  %v1701 = vsub.s32 0, %v1700
  %v1702 = vrot.slane %v1631, %v1701
  %v1703 = vlaneseq
  %v1704 = vshrl.u32 %v1703, 7
  %v1705 = vsub.s32 0, %v1704
  %v1706 = vrot.slane %v1633, %v1705
  %v1707 = vlaneseq
  %v1708 = vshrl.u32 %v1707, 7
  %v1709 = vsub.s32 0, %v1708
  %v1710 = vrot.slane %v1616, %v1709
  %v1711 = vlaneseq
  %v1712 = vshrl.u32 %v1711, 7
  %v1713 = vsub.s32 0, %v1712
  %v1714 = vrot.slane %v1630, %v1713
  %v1715 = vlaneseq
  %v1716 = vshrl.u32 %v1715, 7
  %v1717 = vsub.s32 0, %v1716
  %v1718 = vrot.slane %v1632, %v1717
  %v1719 = vlaneseq
  %v1720 = vshrl.u32 %v1719, 7
  %v1721 = vsub.s32 0, %v1720
  %v1722 = vrot.slane %v1634, %v1721
  %v1731 = vmul.f32 %v1530, %v1694
  %v1732 = vmul.f32 %v1530, %v1698
  %v1733 = vmul.f32 %v1530, %v1702
  %v1734 = vmul.f32 %v1530, %v1706
  %v1735 = vmul.f32 %v1530, %v1710
  %v1736 = vmul.f32 %v1530, %v1714
  %v1737 = vmul.f32 %v1530, %v1718
  %v1738 = vmul.f32 %v1530, %v1722
  %v1739 = vsub.f32 %v1683, %v1731
  %v1740 = vsub.f32 %v1684, %v1732
  %v1741 = vsub.f32 %v1685, %v1733
  %v1742 = vsub.f32 %v1686, %v1734
  %v1743 = vsub.f32 %v1687, %v1735
  %v1744 = vsub.f32 %v1688, %v1736
  %v1745 = vsub.f32 %v1689, %v1737
  %v1746 = vsub.f32 %v1690, %v1738
  %v1747 = vmul.f32 %v1528, %v1694
  %v1748 = vmul.f32 %v1528, %v1698
  %v1749 = vmul.f32 %v1528, %v1702
  %v1750 = vmul.f32 %v1528, %v1706
  %v1751 = vmul.f32 %v1528, %v1710
  %v1752 = vmul.f32 %v1528, %v1714
  %v1753 = vmul.f32 %v1528, %v1718
  %v1754 = vmul.f32 %v1528, %v1722
  %v1755 = vadd.f32 %v1519, %v1747
  %v1756 = vadd.f32 %v1520, %v1748
  %v1757 = vadd.f32 %v1521, %v1749
  %v1758 = vadd.f32 %v1522, %v1750
  %v1759 = vadd.f32 %v1523, %v1751
  %v1760 = vadd.f32 %v1524, %v1752
  %v1761 = vadd.f32 %v1525, %v1753
  %v1762 = vadd.f32 %v1526, %v1754
  %v1763 = vmul.f32 %v1530, %v1638
  %v1764 = vmul.f32 %v1530, %v1642
  %v1765 = vmul.f32 %v1530, %v1646
  %v1766 = vmul.f32 %v1530, %v1650
  %v1767 = vmul.f32 %v1530, %v1654
  %v1768 = vmul.f32 %v1530, %v1658
  %v1769 = vmul.f32 %v1530, %v1662
  %v1770 = vmul.f32 %v1530, %v1666
  %v1771 = vadd.f32 %v1755, %v1763
  %v1772 = vadd.f32 %v1756, %v1764
  %v1773 = vadd.f32 %v1757, %v1765
  %v1774 = vadd.f32 %v1758, %v1766
  %v1775 = vadd.f32 %v1759, %v1767
  %v1776 = vadd.f32 %v1760, %v1768
  %v1777 = vadd.f32 %v1761, %v1769
  %v1778 = vadd.f32 %v1762, %v1770
  %s1779 = scalar_lea.vmem %s0, 14
  %v1780 = vld [vmem:[%s1779] sm:$0x3]
  %s1781 = scalar_lea.vmem %s1, 14
  %v1782 = vld [vmem:[%s1781] sm:$0x3]
  %s1783 = scalar_lea.vmem %s2, 56
  %v1784 = vld [vmem:[%s1783] sm:$0xff]
  %v1786 = vcombine.high %v1784, %v1784
  %v1788 = vunpack.c.l.s4 1966171168
  %v1789 = vunpack.c.0.s8 %v1788
  %v1790 = vlaneseq
  %v1791 = vshrl.u32 %v1790, 7
  %v1792 = vsub.s32 %v1789, %v1791
  %v1793 = vrot.slane %v1784, %v1792
  %v1795 = vunpack.c.l.s4 1966171168
  %v1796 = vunpack.c.0.s8 %v1795
  %v1797 = vlaneseq
  %v1798 = vshrl.u32 %v1797, 7
  %v1799 = vsub.s32 %v1796, %v1798
  %v1800 = vrot.slane %v1786, %v1799
  %v1801 = vcombine.high %v1793, %v1793
  %v1802 = vcombine.high %v1800, %v1800
  %v1804 = vunpack.c.l.s4 1966171168
  %v1805 = vunpack.c.0.s8 %v1804
  %v1806 = vlaneseq
  %v1807 = vshrl.u32 %v1806, 7
  %v1808 = vsub.s32 %v1805, %v1807
  %v1809 = vrot.slane %v1793, %v1808
  %v1811 = vunpack.c.l.s4 1966171168
  %v1812 = vunpack.c.0.s8 %v1811
  %v1813 = vlaneseq
  %v1814 = vshrl.u32 %v1813, 7
  %v1815 = vsub.s32 %v1812, %v1814
  %v1816 = vrot.slane %v1800, %v1815
  %v1818 = vunpack.c.l.s4 1966171168
  %v1819 = vunpack.c.0.s8 %v1818
  %v1820 = vlaneseq
  %v1821 = vshrl.u32 %v1820, 7
  %v1822 = vsub.s32 %v1819, %v1821
  %v1823 = vrot.slane %v1801, %v1822
  %v1825 = vunpack.c.l.s4 1966171168
  %v1826 = vunpack.c.0.s8 %v1825
  %v1827 = vlaneseq
  %v1828 = vshrl.u32 %v1827, 7
  %v1829 = vsub.s32 %v1826, %v1828
  %v1830 = vrot.slane %v1802, %v1829
  %v1831 = vcombine.high %v1809, %v1809
  %v1832 = vcombine.high %v1816, %v1816
  %v1833 = vcombine.high %v1823, %v1823
  %v1834 = vcombine.high %v1830, %v1830
  %s1835 = scalar_lea.vmem %s3, 56
  %v1836 = vld [vmem:[%s1835] sm:$0xff]
  %v1838 = vcombine.high %v1836, %v1836
  %v1840 = vunpack.c.l.s4 1966171168
  %v1841 = vunpack.c.0.s8 %v1840
  %v1842 = vlaneseq
  %v1843 = vshrl.u32 %v1842, 7
  %v1844 = vsub.s32 %v1841, %v1843
  %v1845 = vrot.slane %v1836, %v1844
  %v1847 = vunpack.c.l.s4 1966171168
  %v1848 = vunpack.c.0.s8 %v1847
  %v1849 = vlaneseq
  %v1850 = vshrl.u32 %v1849, 7
  %v1851 = vsub.s32 %v1848, %v1850
  %v1852 = vrot.slane %v1838, %v1851
  %v1853 = vcombine.high %v1845, %v1845
  %v1854 = vcombine.high %v1852, %v1852
  %v1856 = vunpack.c.l.s4 1966171168
  %v1857 = vunpack.c.0.s8 %v1856
  %v1858 = vlaneseq
  %v1859 = vshrl.u32 %v1858, 7
  %v1860 = vsub.s32 %v1857, %v1859
  %v1861 = vrot.slane %v1845, %v1860
  %v1863 = vunpack.c.l.s4 1966171168
  %v1864 = vunpack.c.0.s8 %v1863
  %v1865 = vlaneseq
  %v1866 = vshrl.u32 %v1865, 7
  %v1867 = vsub.s32 %v1864, %v1866
  %v1868 = vrot.slane %v1852, %v1867
  %v1870 = vunpack.c.l.s4 1966171168
  %v1871 = vunpack.c.0.s8 %v1870
  %v1872 = vlaneseq
  %v1873 = vshrl.u32 %v1872, 7
  %v1874 = vsub.s32 %v1871, %v1873
  %v1875 = vrot.slane %v1853, %v1874
  %v1877 = vunpack.c.l.s4 1966171168
  %v1878 = vunpack.c.0.s8 %v1877
  %v1879 = vlaneseq
  %v1880 = vshrl.u32 %v1879, 7
  %v1881 = vsub.s32 %v1878, %v1880
  %v1882 = vrot.slane %v1854, %v1881
  %v1883 = vcombine.high %v1861, %v1861
  %v1884 = vcombine.high %v1868, %v1868
  %v1885 = vcombine.high %v1875, %v1875
  %v1886 = vcombine.high %v1882, %v1882
  %v1887 = vlaneseq
  %v1888 = vshrl.u32 %v1887, 7
  %v1889 = vsub.s32 0, %v1888
  %v1890 = vrot.slane %v1809, %v1889
  %v1891 = vlaneseq
  %v1892 = vshrl.u32 %v1891, 7
  %v1893 = vsub.s32 0, %v1892
  %v1894 = vrot.slane %v1823, %v1893
  %v1895 = vlaneseq
  %v1896 = vshrl.u32 %v1895, 7
  %v1897 = vsub.s32 0, %v1896
  %v1898 = vrot.slane %v1831, %v1897
  %v1899 = vlaneseq
  %v1900 = vshrl.u32 %v1899, 7
  %v1901 = vsub.s32 0, %v1900
  %v1902 = vrot.slane %v1833, %v1901
  %v1903 = vlaneseq
  %v1904 = vshrl.u32 %v1903, 7
  %v1905 = vsub.s32 0, %v1904
  %v1906 = vrot.slane %v1816, %v1905
  %v1907 = vlaneseq
  %v1908 = vshrl.u32 %v1907, 7
  %v1909 = vsub.s32 0, %v1908
  %v1910 = vrot.slane %v1830, %v1909
  %v1911 = vlaneseq
  %v1912 = vshrl.u32 %v1911, 7
  %v1913 = vsub.s32 0, %v1912
  %v1914 = vrot.slane %v1832, %v1913
  %v1915 = vlaneseq
  %v1916 = vshrl.u32 %v1915, 7
  %v1917 = vsub.s32 0, %v1916
  %v1918 = vrot.slane %v1834, %v1917
  %v1927 = vmul.f32 %v1780, %v1890
  %v1928 = vmul.f32 %v1780, %v1894
  %v1929 = vmul.f32 %v1780, %v1898
  %v1930 = vmul.f32 %v1780, %v1902
  %v1931 = vmul.f32 %v1780, %v1906
  %v1932 = vmul.f32 %v1780, %v1910
  %v1933 = vmul.f32 %v1780, %v1914
  %v1934 = vmul.f32 %v1780, %v1918
  %v1935 = vadd.f32 %v1739, %v1927
  %v1936 = vadd.f32 %v1740, %v1928
  %v1937 = vadd.f32 %v1741, %v1929
  %v1938 = vadd.f32 %v1742, %v1930
  %v1939 = vadd.f32 %v1743, %v1931
  %v1940 = vadd.f32 %v1744, %v1932
  %v1941 = vadd.f32 %v1745, %v1933
  %v1942 = vadd.f32 %v1746, %v1934
  %v1943 = vlaneseq
  %v1944 = vshrl.u32 %v1943, 7
  %v1945 = vsub.s32 0, %v1944
  %v1946 = vrot.slane %v1861, %v1945
  %v1947 = vlaneseq
  %v1948 = vshrl.u32 %v1947, 7
  %v1949 = vsub.s32 0, %v1948
  %v1950 = vrot.slane %v1875, %v1949
  %v1951 = vlaneseq
  %v1952 = vshrl.u32 %v1951, 7
  %v1953 = vsub.s32 0, %v1952
  %v1954 = vrot.slane %v1883, %v1953
  %v1955 = vlaneseq
  %v1956 = vshrl.u32 %v1955, 7
  %v1957 = vsub.s32 0, %v1956
  %v1958 = vrot.slane %v1885, %v1957
  %v1959 = vlaneseq
  %v1960 = vshrl.u32 %v1959, 7
  %v1961 = vsub.s32 0, %v1960
  %v1962 = vrot.slane %v1868, %v1961
  %v1963 = vlaneseq
  %v1964 = vshrl.u32 %v1963, 7
  %v1965 = vsub.s32 0, %v1964
  %v1966 = vrot.slane %v1882, %v1965
  %v1967 = vlaneseq
  %v1968 = vshrl.u32 %v1967, 7
  %v1969 = vsub.s32 0, %v1968
  %v1970 = vrot.slane %v1884, %v1969
  %v1971 = vlaneseq
  %v1972 = vshrl.u32 %v1971, 7
  %v1973 = vsub.s32 0, %v1972
  %v1974 = vrot.slane %v1886, %v1973
  %v1983 = vmul.f32 %v1782, %v1946
  %v1984 = vmul.f32 %v1782, %v1950
  %v1985 = vmul.f32 %v1782, %v1954
  %v1986 = vmul.f32 %v1782, %v1958
  %v1987 = vmul.f32 %v1782, %v1962
  %v1988 = vmul.f32 %v1782, %v1966
  %v1989 = vmul.f32 %v1782, %v1970
  %v1990 = vmul.f32 %v1782, %v1974
  %v1991 = vsub.f32 %v1935, %v1983
  %v1992 = vsub.f32 %v1936, %v1984
  %v1993 = vsub.f32 %v1937, %v1985
  %v1994 = vsub.f32 %v1938, %v1986
  %v1995 = vsub.f32 %v1939, %v1987
  %v1996 = vsub.f32 %v1940, %v1988
  %v1997 = vsub.f32 %v1941, %v1989
  %v1998 = vsub.f32 %v1942, %v1990
  %v1999 = vmul.f32 %v1780, %v1946
  %v2000 = vmul.f32 %v1780, %v1950
  %v2001 = vmul.f32 %v1780, %v1954
  %v2002 = vmul.f32 %v1780, %v1958
  %v2003 = vmul.f32 %v1780, %v1962
  %v2004 = vmul.f32 %v1780, %v1966
  %v2005 = vmul.f32 %v1780, %v1970
  %v2006 = vmul.f32 %v1780, %v1974
  %v2007 = vadd.f32 %v1771, %v1999
  %v2008 = vadd.f32 %v1772, %v2000
  %v2009 = vadd.f32 %v1773, %v2001
  %v2010 = vadd.f32 %v1774, %v2002
  %v2011 = vadd.f32 %v1775, %v2003
  %v2012 = vadd.f32 %v1776, %v2004
  %v2013 = vadd.f32 %v1777, %v2005
  %v2014 = vadd.f32 %v1778, %v2006
  %v2015 = vmul.f32 %v1782, %v1890
  %v2016 = vmul.f32 %v1782, %v1894
  %v2017 = vmul.f32 %v1782, %v1898
  %v2018 = vmul.f32 %v1782, %v1902
  %v2019 = vmul.f32 %v1782, %v1906
  %v2020 = vmul.f32 %v1782, %v1910
  %v2021 = vmul.f32 %v1782, %v1914
  %v2022 = vmul.f32 %v1782, %v1918
  %v2023 = vadd.f32 %v2007, %v2015
  %v2024 = vadd.f32 %v2008, %v2016
  %v2025 = vadd.f32 %v2009, %v2017
  %v2026 = vadd.f32 %v2010, %v2018
  %v2027 = vadd.f32 %v2011, %v2019
  %v2028 = vadd.f32 %v2012, %v2020
  %v2029 = vadd.f32 %v2013, %v2021
  %v2030 = vadd.f32 %v2014, %v2022
  %vm2031 = vcmask 254976
  %2032 = vst.msk [vmem:[%s4] sm:$0x3] %vm2031, %v1991
  %2033 = vst.msk [vmem:[%s4 + $0x2] sm:$0x3] %vm2031, %v1992
  %2034 = vst.msk [vmem:[%s4 + $0x4] sm:$0x3] %vm2031, %v1993
  %2035 = vst.msk [vmem:[%s4 + $0x6] sm:$0x3] %vm2031, %v1994
  %2036 = vst.msk [vmem:[%s4 + $0x8] sm:$0x3] %vm2031, %v1995
  %2037 = vst.msk [vmem:[%s4 + $0xa] sm:$0x3] %vm2031, %v1996
  %2038 = vst.msk [vmem:[%s4 + $0xc] sm:$0x3] %vm2031, %v1997
  %2039 = vst.msk [vmem:[%s4 + $0xe] sm:$0x3] %vm2031, %v1998
  %2040 = vst.msk [vmem:[%s5] sm:$0x3] %vm2031, %v2023
  %2041 = vst.msk [vmem:[%s5 + $0x2] sm:$0x3] %vm2031, %v2024
  %2042 = vst.msk [vmem:[%s5 + $0x4] sm:$0x3] %vm2031, %v2025
  %2043 = vst.msk [vmem:[%s5 + $0x6] sm:$0x3] %vm2031, %v2026
  %2044 = vst.msk [vmem:[%s5 + $0x8] sm:$0x3] %vm2031, %v2027
  %2045 = vst.msk [vmem:[%s5 + $0xa] sm:$0x3] %vm2031, %v2028
  %2046 = vst.msk [vmem:[%s5 + $0xc] sm:$0x3] %vm2031, %v2029
  %2047 = vst.msk [vmem:[%s5 + $0xe] sm:$0x3] %vm2031, %v2030
  // Predicated region
  $region18: #{fno_forward.11} parent=0 // pred_check
    _
  $region19: #{fno_forward.11} parent=0 // pred_check_branch
    %2049 = sbr.rel (0) target = $region21
  $region20: #{fno_forward.11} parent=0 // pred_region
    _
  $region21: #{fno_forward.11} parent=0 // pred_fallthru
    _
  // Predicated region
  $region22: #{fno_forward.11} parent=0 // pred_check
    _
  $region23: #{fno_forward.11} parent=0 // pred_check_branch
    %2051 = sbr.rel (0) target = $region25
  $region24: #{fno_forward.11} parent=0 // pred_region
    _
  $region25: #{fno_forward.11} parent=0 // pred_fallthru
    _
  // Predicated region
  $region26: #{fno_forward.11} parent=0 // pred_check
    _
  $region27: #{fno_forward.11} parent=0 // pred_check_branch
    %2053 = sbr.rel (0) target = $region29
  $region28: #{fno_forward.11} parent=0 // pred_region
    _
  $region29: #{fno_forward.11} parent=0 // pred_fallthru
    _
  // Predicated region
  $region30: #{fno_forward.11} parent=0 // pred_check
    _
  $region31: #{fno_forward.11} parent=0 // pred_check_branch
    %2055 = sbr.rel (0) target = $region33
  $region32: #{fno_forward.11} parent=0 // pred_region
    _
  $region33: #{fno_forward.11} parent=0 // pred_fallthru
    _

// kernel: fno_forward.12
$region0: #{fno_forward.12}
  #allocation0 [shape = 'u32[]', space=smem, size = 0x4, offset = 0x4, fixed_abs, tag = 'smem constant byte address 0x4 - core index']
  #allocation1 [shape = 'u32[144,128]{1,0:T(1,128)}', space=vmem, size = 0x12000, scoped, tag = 'internal scratch']
  %s0 = inlined_call_operand.vmem [shape: bf16[8,1250], index: 0, kind: input, shape index: {}]
  %s1 = inlined_call_operand.vmem [shape: f32[8,8], index: 1, kind: input, shape index: {}]
  %s2 = inlined_call_operand.vmem [shape: f32[8,1], index: 2, kind: input, shape index: {}]
  %s3 = inlined_call_operand.vmem [shape: bf16[8,1250], index: 3, kind: input, shape index: {}]
  %s4 = inlined_call_operand.vmem [shape: bf16[8,1250], index: 4, kind: output, shape index: {}]
  %s5 = sld [smem:[#allocation0]]
  $region49: #{fno_forward.12} parent=0
    _
  %s7 = ssub.s32 1, %s5
  %s8 = scalar_select 0, %s7, %s5
  loop: start=0, step=1, limit=4
  $region2: #{fno_forward.12} parent=0 // loop_pre_header
    _
  $region3: #{fno_forward.12} parent=0 // loop_header
    %s10 = sphi 0, %s14
    %p11 = scmp.ge.s32.totalorder %s10, 4
    %s20 = sphi 0, %s22
    %s23 = sphi 0, %s20
    %s24 = sphi 0, %s23
    %s40 = sphi 0, %s24
    %s44 = sphi 0, %s44
    %s46 = sphi 0, %s44
    %s47 = sphi 0, %s46
    %s61 = sphi 0, %s47
    %s65 = sphi 0, %s65
    %s67 = sphi 0, %s65
    %s68 = sphi 0, %s67
    %s82 = sphi 0, %s68
    %s88 = sphi 0, %s90
    %s91 = sphi 0, %s88
    %s92 = sphi 0, %s91
    %s108 = sphi 0, %s92
    %s114 = sphi 0, %s116
    %s117 = sphi 0, %s114
    %s118 = sphi 0, %s117
    %s134 = sphi 0, %s118
  $region4: #{fno_forward.12} parent=0 // loop_header_branch
    %13 = sbr.rel (%p11) target = $region8
  $region5: #{fno_forward.12} parent=0 // loop_body
    %s15 = ssub.s32 %s10, 1
    %s16 = ssub.s32 %s10, 2
    %s17 = sadd.s32 %s10, 1
    %s18 = ssub.s32 %s10, %s17
    %p19 = scmp.eq.s32.totalorder %s18, 0
    %s21 = sadd.s32 %s20, 1
    %s22 = scalar_select %p19, %s20, %s21
    %p25 = pneg %p19
    %p26 = scmp.eq.s32.totalorder %s10, 1
    %p27 = por %p25, %p26
    %p28 = scmp.ne.s32.totalorder %s20, %s23
    %p29 = scmp.eq.s32.totalorder %s10, 0
    %p30 = por %p28, %p29
    %p31 = scmp.ne.s32.totalorder %s20, %s23
    %p32 = scmp.eq.s32.totalorder %s15, 1
    %p33 = por %p31, %p32
    %p34 = scmp.ne.s32.totalorder %s23, %s24
    %p35 = scmp.eq.s32.totalorder %s15, 0
    %p36 = por %p34, %p35
    %p37 = scmp.ne.s32.totalorder %s23, %s24
    %p38 = scmp.eq.s32.totalorder %s16, 1
    %p39 = por %p37, %p38
    %p41 = scmp.ne.s32.totalorder %s24, %s40
    %p42 = scmp.eq.s32.totalorder %s16, 0
    %p43 = por %p41, %p42
    %s45 = sadd.s32 %s44, 1
    %p48 = scmp.eq.s32.totalorder %s10, 1
    %p49 = scmp.ne.s32.totalorder %s44, %s46
    %p50 = scmp.eq.s32.totalorder %s10, 0
    %p51 = por %p49, %p50
    %p52 = scmp.ne.s32.totalorder %s44, %s46
    %p53 = scmp.eq.s32.totalorder %s15, 1
    %p54 = por %p52, %p53
    %p55 = scmp.ne.s32.totalorder %s46, %s47
    %p56 = scmp.eq.s32.totalorder %s15, 0
    %p57 = por %p55, %p56
    %p58 = scmp.ne.s32.totalorder %s46, %s47
    %p59 = scmp.eq.s32.totalorder %s16, 1
    %p60 = por %p58, %p59
    %p62 = scmp.ne.s32.totalorder %s47, %s61
    %p63 = scmp.eq.s32.totalorder %s16, 0
    %p64 = por %p62, %p63
    %s66 = sadd.s32 %s65, 1
    %p69 = scmp.eq.s32.totalorder %s10, 1
    %p70 = scmp.ne.s32.totalorder %s65, %s67
    %p71 = scmp.eq.s32.totalorder %s10, 0
    %p72 = por %p70, %p71
    %p73 = scmp.ne.s32.totalorder %s65, %s67
    %p74 = scmp.eq.s32.totalorder %s15, 1
    %p75 = por %p73, %p74
    %p76 = scmp.ne.s32.totalorder %s67, %s68
    %p77 = scmp.eq.s32.totalorder %s15, 0
    %p78 = por %p76, %p77
    %p79 = scmp.ne.s32.totalorder %s67, %s68
    %p80 = scmp.eq.s32.totalorder %s16, 1
    %p81 = por %p79, %p80
    %p83 = scmp.ne.s32.totalorder %s68, %s82
    %p84 = scmp.eq.s32.totalorder %s16, 0
    %p85 = por %p83, %p84
    %s86 = ssub.s32 %s10, %s17
    %p87 = scmp.eq.s32.totalorder %s86, 0
    %s89 = sadd.s32 %s88, 1
    %s90 = scalar_select %p87, %s88, %s89
    %p93 = pneg %p87
    %p94 = scmp.eq.s32.totalorder %s10, 1
    %p95 = por %p93, %p94
    %p96 = scmp.ne.s32.totalorder %s88, %s91
    %p97 = scmp.eq.s32.totalorder %s10, 0
    %p98 = por %p96, %p97
    %p99 = scmp.ne.s32.totalorder %s88, %s91
    %p100 = scmp.eq.s32.totalorder %s15, 1
    %p101 = por %p99, %p100
    %p102 = scmp.ne.s32.totalorder %s91, %s92
    %p103 = scmp.eq.s32.totalorder %s15, 0
    %p104 = por %p102, %p103
    %p105 = scmp.ne.s32.totalorder %s91, %s92
    %p106 = scmp.eq.s32.totalorder %s16, 1
    %p107 = por %p105, %p106
    %p109 = scmp.ne.s32.totalorder %s92, %s108
    %p110 = scmp.eq.s32.totalorder %s16, 0
    %p111 = por %p109, %p110
    %s112 = ssub.s32 %s10, %s17
    %p113 = scmp.eq.s32.totalorder %s112, 0
    %s115 = sadd.s32 %s114, 1
    %s116 = scalar_select %p113, %s114, %s115
    %p119 = pneg %p113
    %p120 = scmp.eq.s32.totalorder %s10, 1
    %p121 = por %p119, %p120
    %p122 = scmp.ne.s32.totalorder %s114, %s117
    %p123 = scmp.eq.s32.totalorder %s10, 0
    %p124 = por %p122, %p123
    %p125 = scmp.ne.s32.totalorder %s114, %s117
    %p126 = scmp.eq.s32.totalorder %s15, 1
    %p127 = por %p125, %p126
    %p128 = scmp.ne.s32.totalorder %s117, %s118
    %p129 = scmp.eq.s32.totalorder %s15, 0
    %p130 = por %p128, %p129
    %p131 = scmp.ne.s32.totalorder %s117, %s118
    %p132 = scmp.eq.s32.totalorder %s16, 1
    %p133 = por %p131, %p132
    %p135 = scmp.ne.s32.totalorder %s118, %s134
    %p136 = scmp.eq.s32.totalorder %s16, 0
    %p137 = por %p135, %p136
    %p138 = scmp.le.s32.totalorder 1, %s10
    %p139 = scmp.lt.s32.totalorder %s10, 3
    %p140 = pnand %p138, %p139
    %p141 = pneg %p140
    // Predicated region
    $region9: #{fno_forward.12} parent=5 // pred_check
      _
    $region10: #{fno_forward.12} parent=5 // pred_check_branch
      %143 = sbr.rel (%p140) target = $region12
    $region11: #{fno_forward.12} parent=5 // pred_region
      %s144 = ssub.s32 %s10, 1
      // Predicated region
      $region13: #{fno_forward.12} parent=11 // pred_check
        %p145 = pneg %p57
      $region14: #{fno_forward.12} parent=11 // pred_check_branch
        %147 = sbr.rel (%p145) target = $region16
      $region15: #{fno_forward.12} parent=11 // pred_region
        _
      $region16: #{fno_forward.12} parent=11 // pred_fallthru
        _
      // Predicated region
      $region17: #{fno_forward.12} parent=11 // pred_check
        %p148 = pneg %p78
      $region18: #{fno_forward.12} parent=11 // pred_check_branch
        %150 = sbr.rel (%p148) target = $region20
      $region19: #{fno_forward.12} parent=11 // pred_region
        _
      $region20: #{fno_forward.12} parent=11 // pred_fallthru
        _
    $region12: #{fno_forward.12} parent=5 // pred_fallthru
      _
    %p151 = scmp.lt.s32.totalorder %s10, 2
    // Predicated region
    $region21: #{fno_forward.12} parent=5 // pred_check
      %p152 = pneg %p151
    $region22: #{fno_forward.12} parent=5 // pred_check_branch
      %154 = sbr.rel (%p152) target = $region24
    $region23: #{fno_forward.12} parent=5 // pred_region
      // Predicated region
      $region25: #{fno_forward.12} parent=23 // pred_check
        %p155 = pneg %p30
      $region26: #{fno_forward.12} parent=23 // pred_check_branch
        %157 = sbr.rel (%p155) target = $region28
      $region27: #{fno_forward.12} parent=23 // pred_region
        %s158 = smul.u32 5, %s10
        %p159 = scmp.lt.s32.totalorder %s158, 9
        %s160 = scalar_select %p159, %s158, 9
        %s161 = smul.addr %s160, 4
        %s162 = scalar_lea.vmem %s0, %s161
        %s163 = smul.u32 5, %s10
      $region28: #{fno_forward.12} parent=23 // pred_fallthru
        _
      // Predicated region
      $region29: #{fno_forward.12} parent=23 // pred_check
        %p164 = pneg %p98
      $region30: #{fno_forward.12} parent=23 // pred_check_branch
        %166 = sbr.rel (%p164) target = $region32
      $region31: #{fno_forward.12} parent=23 // pred_region
        %s167 = smul.u32 5, %s10
        %p168 = scmp.lt.s32.totalorder %s167, 9
        %s169 = scalar_select %p168, %s167, 9
        %s170 = smul.addr %s169, 4
        %s171 = scalar_lea.vmem %s3, %s170
        %s172 = smul.u32 5, %s10
      $region32: #{fno_forward.12} parent=23 // pred_fallthru
        _
    $region24: #{fno_forward.12} parent=5 // pred_fallthru
      _
    %p173 = scmp.le.s32.totalorder 1, %s10
    %p174 = scmp.lt.s32.totalorder %s10, 3
    %p175 = pnand %p173, %p174
    %p176 = pneg %p175
    // Predicated region
    $region33: #{fno_forward.12} parent=5 // pred_check
      _
    $region34: #{fno_forward.12} parent=5 // pred_check_branch
      %178 = sbr.rel (%p175) target = $region36
    $region35: #{fno_forward.12} parent=5 // pred_region
      %s179 = ssub.s32 %s10, 1
      %s180 = smul.u32 5, %s15
      %p181 = scmp.lt.s32.totalorder %s180, 9
      %s182 = scalar_select %p181, %s180, 9
      %s183 = smul.addr %s182, 4
      %s184 = scalar_lea.vmem %s0, %s183
      %p185 = pneg %p36
      %p186 = pneg %p33
      %p187 = pneg %p57
      %p188 = pneg %p54
      %p189 = pneg %p78
      %p190 = pneg %p75
      %s191 = smul.u32 5, %s15
      %p192 = scmp.lt.s32.totalorder %s191, 9
      %s193 = scalar_select %p192, %s191, 9
      %s194 = smul.addr %s193, 4
      %s195 = scalar_lea.vmem %s3, %s194
      %p196 = pneg %p104
      %p197 = pneg %p101
      %p198 = pneg %p130
      %p199 = pneg %p127
      %s200 = smul.u32 5, %s15
      %p201 = scmp.lt.s32.totalorder %s200, 9
      %s202 = scalar_select %p201, %s200, 9
      %s203 = smul.addr %s202, 4
      %s204 = scalar_lea.vmem %s4, %s203
      %s205 = smul.u32 5, %s15
      %p206 = scmp.lt.s32.totalorder %s205, 9
      %s207 = scalar_select %p206, %s205, 9
      %s208 = smul.addr %s207, 4
      %s209 = scalar_lea.vmem %s0, %s208
      %s210 = smul.u32 5, %s15
      %s211 = smul.u32 5, %s15
      %p212 = scmp.lt.s32.totalorder %s211, 9
      %s213 = scalar_select %p212, %s211, 9
      %s214 = smul.addr %s213, 4
      %s215 = scalar_lea.vmem %s3, %s214
      %s216 = smul.u32 5, %s15
      %s217 = smul.u32 5, %s15
      %p218 = scmp.lt.s32.totalorder %s217, 9
      %s219 = scalar_select %p218, %s217, 9
      %s220 = smul.addr %s219, 4
      %s221 = scalar_lea.vmem %s4, %s220
      %s222 = smul.u32 5, %s15
      %v224 = vld [vmem:[%s209] sm:$0xff]
      %v225 = vld [vmem:[%s209 + $0x8] sm:$0xff]
      %v226 = vld [vmem:[%s209 + $0x10] sm:$0xf]
      %v227 = vld [vmem:[%s1] sm:$0xff]
      %v228 = vpack.c.bf16 %v227, %v227
      %v229 = vld [vmem:[%s2] sm:$0xff]
      %231 = vset.pattern.permute.xlu0 0
      %232 = vperm.xlu0 %231, %v229
      %v233 = vpop.permute.xlu0 %232
      %v238 = vunpack.c.l.b16 %v224
      %v239 = vunpack.c.h.b16 %v224
      %v240 = vunpack.c.l.b16 %v225
      %v241 = vunpack.c.h.b16 %v225
      %v242 = vunpack.c.l.b16 %v226
      %v243 = vpack.c.b16 %v238, %v238
      %v244 = vpack.c.b16 %v239, %v239
      %v245 = vpack.c.b16 %v240, %v240
      %v246 = vpack.c.b16 %v241, %v241
      %v247 = vpack.c.b16 %v242, %v242
      %vm248 = vcmask 64512
      %v250 = vsel %vm248, %v228, 0
      %vm252 = vcmask 1043456
      %v254 = vsel %vm252, %v243, 0
      %v257 = vsel %vm252, %v244, 0
      %v260 = vsel %vm252, %v245, 0
      %v263 = vsel %vm252, %v246, 0
      %v266 = vsel %vm252, %v247, 0
      %268 = vmatprep.subr.bf16.mxu0 %v257
      %269 = vmatpush1.bf16.msra.mxu0 %v254
      %270 = vmatprep.subr.bf16.mxu0 0
      %271 = vmatpush1.bf16.msra.mxu0 0
      %272 = vmatprep.subr.bf16.mxu0 0
      %273 = vmatpush1.bf16.msra.mxu0 0
      %274 = vmatprep.subr.bf16.mxu0 0
      %275 = vmatpush1.bf16.msra.mxu0 0
      %276 = vmatprep.subr.bf16.mxu0 0
      %277 = vmatpush1.bf16.msra.mxu0 0
      %278 = vmatprep.subr.bf16.mxu0 0
      %279 = vmatpush1.bf16.msra.mxu0 0
      %280 = vmatprep.subr.bf16.mxu0 0
      %281 = vmatpush1.bf16.msra.mxu0 0
      %282 = vmatprep.subr.bf16.mxu0 0
      %283 = vmatpush1.bf16.msra.mxu0 0
      %284 = vmatprep.subr.bf16.mxu0 0
      %285 = vmatpush1.bf16.msra.mxu0 0
      %286 = vmatprep.subr.bf16.mxu0 0
      %287 = vmatpush1.bf16.msra.mxu0 0
      %288 = vmatprep.subr.bf16.mxu0 0
      %289 = vmatpush1.bf16.msra.mxu0 0
      %290 = vmatprep.subr.bf16.mxu0 0
      %291 = vmatpush1.bf16.msra.mxu0 0
      %292 = vmatprep.subr.bf16.mxu0 0
      %293 = vmatpush1.bf16.msra.mxu0 0
      %294 = vmatprep.subr.bf16.mxu0 0
      %295 = vmatpush1.bf16.msra.mxu0 0
      %296 = vmatprep.subr.bf16.mxu0 0
      %297 = vmatpush1.bf16.msra.mxu0 0
      %298 = vmatprep.subr.bf16.mxu0 0
      %299 = vmatpush1.bf16.msra.mxu0 0
      %300 = vmatprep.mubr.bf16.mxu0 0
      %301 = vmatmul.mubr.bf16.gmra.mrb[0].mxu0 %v250
      %v302 = vpop.f32.mrb[0].mxu0
      %v303 = vadd.f32 %v233, %v302
      %v304 = vpop.f32.mrb[0].mxu0
      %v305 = vadd.f32 %v233, %v304
      %v306 = vpop.f32.mrb[0].mxu0
      %v307 = vpop.f32.mrb[0].mxu0
      %308 = vdwg.mxu0
      %309 = vmatprep.subr.bf16.mxu0 %v263
      %310 = vmatpush1.bf16.msra.mxu0 %v260
      %311 = vmatprep.subr.bf16.mxu0 0
      %312 = vmatpush1.bf16.msra.mxu0 0
      %313 = vmatprep.subr.bf16.mxu0 0
      %314 = vmatpush1.bf16.msra.mxu0 0
      %315 = vmatprep.subr.bf16.mxu0 0
      %316 = vmatpush1.bf16.msra.mxu0 0
      %317 = vmatprep.subr.bf16.mxu0 0
      %318 = vmatpush1.bf16.msra.mxu0 0
      %319 = vmatprep.subr.bf16.mxu0 0
      %320 = vmatpush1.bf16.msra.mxu0 0
      %321 = vmatprep.subr.bf16.mxu0 0
      %322 = vmatpush1.bf16.msra.mxu0 0
      %323 = vmatprep.subr.bf16.mxu0 0
      %324 = vmatpush1.bf16.msra.mxu0 0
      %325 = vmatprep.subr.bf16.mxu0 0
      %326 = vmatpush1.bf16.msra.mxu0 0
      %327 = vmatprep.subr.bf16.mxu0 0
      %328 = vmatpush1.bf16.msra.mxu0 0
      %329 = vmatprep.subr.bf16.mxu0 0
      %330 = vmatpush1.bf16.msra.mxu0 0
      %331 = vmatprep.subr.bf16.mxu0 0
      %332 = vmatpush1.bf16.msra.mxu0 0
      %333 = vmatprep.subr.bf16.mxu0 0
      %334 = vmatpush1.bf16.msra.mxu0 0
      %335 = vmatprep.subr.bf16.mxu0 0
      %336 = vmatpush1.bf16.msra.mxu0 0
      %337 = vmatprep.subr.bf16.mxu0 0
      %338 = vmatpush1.bf16.msra.mxu0 0
      %339 = vmatprep.subr.bf16.mxu0 0
      %340 = vmatpush1.bf16.msra.mxu0 0
      %341 = vmatprep.mubr.bf16.mxu0 0
      %342 = vmatmul.mubr.bf16.gmra.mrb[0].mxu0 %v250
      %v343 = vpop.f32.mrb[0].mxu0
      %v344 = vadd.f32 %v233, %v343
      %v345 = vpop.f32.mrb[0].mxu0
      %v346 = vadd.f32 %v233, %v345
      %v347 = vpop.f32.mrb[0].mxu0
      %v348 = vpop.f32.mrb[0].mxu0
      %349 = vdwg.mxu0
      %350 = vmatprep.subr.bf16.mxu0 0
      %351 = vmatpush1.bf16.msra.mxu0 %v266
      %352 = vmatprep.subr.bf16.mxu0 0
      %353 = vmatpush1.bf16.msra.mxu0 0
      %354 = vmatprep.subr.bf16.mxu0 0
      %355 = vmatpush1.bf16.msra.mxu0 0
      %356 = vmatprep.subr.bf16.mxu0 0
      %357 = vmatpush1.bf16.msra.mxu0 0
      %358 = vmatprep.subr.bf16.mxu0 0
      %359 = vmatpush1.bf16.msra.mxu0 0
      %360 = vmatprep.subr.bf16.mxu0 0
      %361 = vmatpush1.bf16.msra.mxu0 0
      %362 = vmatprep.subr.bf16.mxu0 0
      %363 = vmatpush1.bf16.msra.mxu0 0
      %364 = vmatprep.subr.bf16.mxu0 0
      %365 = vmatpush1.bf16.msra.mxu0 0
      %366 = vmatprep.subr.bf16.mxu0 0
      %367 = vmatpush1.bf16.msra.mxu0 0
      %368 = vmatprep.subr.bf16.mxu0 0
      %369 = vmatpush1.bf16.msra.mxu0 0
      %370 = vmatprep.subr.bf16.mxu0 0
      %371 = vmatpush1.bf16.msra.mxu0 0
      %372 = vmatprep.subr.bf16.mxu0 0
      %373 = vmatpush1.bf16.msra.mxu0 0
      %374 = vmatprep.subr.bf16.mxu0 0
      %375 = vmatpush1.bf16.msra.mxu0 0
      %376 = vmatprep.subr.bf16.mxu0 0
      %377 = vmatpush1.bf16.msra.mxu0 0
      %378 = vmatprep.subr.bf16.mxu0 0
      %379 = vmatpush1.bf16.msra.mxu0 0
      %380 = vmatprep.subr.bf16.mxu0 0
      %381 = vmatpush1.bf16.msra.mxu0 0
      %382 = vmatprep.mubr.bf16.mxu0 0
      %383 = vmatmul.mubr.bf16.gmra.mrb[0].mxu0 %v250
      %v384 = vpop.f32.mrb[0].mxu0
      %v385 = vadd.f32 %v233, %v384
      %v386 = vpop.f32.mrb[0].mxu0
      %v387 = vpop.f32.mrb[0].mxu0
      %v388 = vpop.f32.mrb[0].mxu0
      %389 = vdwg.mxu0
      %v390 = vld [vmem:[%s215] sm:$0xff]
      %v391 = vld [vmem:[%s215 + $0x8] sm:$0xff]
      %v392 = vld [vmem:[%s215 + $0x10] sm:$0xf]
      %v393 = vunpack.c.l.bf16 %v390
      %v394 = vunpack.c.h.bf16 %v390
      %v395 = vunpack.c.l.bf16 %v391
      %v396 = vunpack.c.h.bf16 %v391
      %v397 = vunpack.c.l.bf16 %v392
      %v398 = vadd.f32 %v303, %v393
      %v399 = vadd.f32 %v305, %v394
      %v400 = vadd.f32 %v344, %v395
      %v401 = vadd.f32 %v346, %v396
      %v402 = vadd.f32 %v385, %v397
      %v403 = vmul.f32 %v398, 0.5
      %v404 = vmul.f32 %v399, 0.5
      %v405 = vmul.f32 %v400, 0.5
      %v406 = vmul.f32 %v401, 0.5
      %v407 = vmul.f32 %v402, 0.5
      %v408 = vmul.f32 %v398, 0.044715
      %v409 = vmul.f32 %v399, 0.044715
      %v410 = vmul.f32 %v400, 0.044715
      %v411 = vmul.f32 %v401, 0.044715
      %v412 = vmul.f32 %v402, 0.044715
      %v413 = vmul.f32 %v408, %v398
      %v414 = vmul.f32 %v409, %v399
      %v415 = vmul.f32 %v410, %v400
      %v416 = vmul.f32 %v411, %v401
      %v417 = vmul.f32 %v412, %v402
      %v418 = vmul.f32 %v413, %v398
      %v419 = vmul.f32 %v414, %v399
      %v420 = vmul.f32 %v415, %v400
      %v421 = vmul.f32 %v416, %v401
      %v422 = vmul.f32 %v417, %v402
      %v423 = vadd.f32 %v398, %v418
      %v424 = vadd.f32 %v399, %v419
      %v425 = vadd.f32 %v400, %v420
      %v426 = vadd.f32 %v401, %v421
      %v427 = vadd.f32 %v402, %v422
      %v428 = vmul.f32 %v423, 0.7978846
      %v429 = vmul.f32 %v424, 0.7978846
      %v430 = vmul.f32 %v425, 0.7978846
      %v431 = vmul.f32 %v426, 0.7978846
      %v432 = vmul.f32 %v427, 0.7978846
      %v433 = vtanh.pop %v428
      %v434 = vtanh.pop %v429
      %v435 = vtanh.pop %v430
      %v436 = vtanh.pop %v431
      %v437 = vtanh.pop %v432
      %v438 = vadd.f32 %v433, 1.0
      %v439 = vadd.f32 %v434, 1.0
      %v440 = vadd.f32 %v435, 1.0
      %v441 = vadd.f32 %v436, 1.0
      %v442 = vadd.f32 %v437, 1.0
      %v443 = vmul.f32 %v403, %v438
      %v444 = vmul.f32 %v404, %v439
      %v445 = vmul.f32 %v405, %v440
      %v446 = vmul.f32 %v406, %v441
      %v447 = vmul.f32 %v407, %v442
      %v448 = vpack.c.bf16 %v443, %v443
      %v449 = vpack.c.bf16 %v444, %v444
      %v450 = vpack.c.bf16 %v445, %v445
      %v451 = vpack.c.bf16 %v446, %v446
      %v452 = vpack.c.bf16 %v447, %v447
      %v458 = vunpack.c.l.b16 %v448
      %v459 = vunpack.c.l.b16 %v449
      %v460 = vunpack.c.l.b16 %v450
      %v461 = vunpack.c.l.b16 %v451
      %v462 = vunpack.c.l.b16 %v452
      %v463 = vpack.c.b16 %v459, %v458
      %v464 = vpack.c.b16 %v461, %v460
      %v465 = vpack.c.b16 %v462, %v462
      %469 = vst [vmem:[%s221] sm:$0xff] %v463
      %470 = vst [vmem:[%s221 + $0x8] sm:$0xff] %v464
      %471 = vst [vmem:[%s221 + $0x10] sm:$0xf] %v465
      %s472 = smul.u32 5, %s15
      %p473 = scmp.lt.s32.totalorder %s472, 9
      %s474 = scalar_select %p473, %s472, 9
      %s475 = smul.addr %s474, 4
      %s476 = scalar_lea.vmem %s4, %s475
      // Predicated region
      $region37: #{fno_forward.12} parent=35 // pred_check
        %p477 = pneg %p127
      $region38: #{fno_forward.12} parent=35 // pred_check_branch
        %479 = sbr.rel (%p477) target = $region40
      $region39: #{fno_forward.12} parent=35 // pred_region
        %s480 = smul.u32 5, %s15
      $region40: #{fno_forward.12} parent=35 // pred_fallthru
        _
    $region36: #{fno_forward.12} parent=5 // pred_fallthru
      _
    %p481 = scmp.le.s32.totalorder 2, %s10
    // Predicated region
    $region41: #{fno_forward.12} parent=5 // pred_check
      %p482 = pneg %p481
    $region42: #{fno_forward.12} parent=5 // pred_check_branch
      %484 = sbr.rel (%p482) target = $region44
    $region43: #{fno_forward.12} parent=5 // pred_region
      %s485 = ssub.s32 %s10, 2
      // Predicated region
      $region45: #{fno_forward.12} parent=43 // pred_check
        %p486 = pneg %p133
      $region46: #{fno_forward.12} parent=43 // pred_check_branch
        %488 = sbr.rel (%p486) target = $region48
      $region47: #{fno_forward.12} parent=43 // pred_region
        %s489 = smul.u32 5, %s16
        %p490 = scmp.lt.s32.totalorder %s489, 9
        %s491 = scalar_select %p490, %s489, 9
        %s492 = smul.addr %s491, 4
        %s493 = scalar_lea.vmem %s4, %s492
      $region48: #{fno_forward.12} parent=43 // pred_fallthru
        _
    $region44: #{fno_forward.12} parent=5 // pred_fallthru
      _
  $region6: #{fno_forward.12} parent=0 // loop_footer
    %s14 = sadd.s32 1, %s10
  $region7: #{fno_forward.12} parent=0 // loop_footer_branch
    %9 = sbr.rel target = $region3
  $region8: #{fno_forward.12} parent=0 // loop_exit
    _

// kernel: fno_forward.18
$region0: #{fno_forward.18}
  #allocation0 [shape = 'u32[]', space=smem, size = 0x4, offset = 0x4, fixed_abs, tag = 'smem constant byte address 0x4 - core index']
  #allocation1 [shape = 'u32[144,128]{1,0:T(1,128)}', space=vmem, size = 0x12000, scoped, tag = 'internal scratch']
  %s0 = inlined_call_operand.vmem [shape: bf16[8,1250], index: 0, kind: input, shape index: {}]
  %s1 = inlined_call_operand.vmem [shape: f32[8,8], index: 1, kind: input, shape index: {}]
  %s2 = inlined_call_operand.vmem [shape: f32[8,1], index: 2, kind: input, shape index: {}]
  %s3 = inlined_call_operand.vmem [shape: bf16[8,1250], index: 3, kind: input, shape index: {}]
  %s4 = inlined_call_operand.vmem [shape: bf16[8,1250], index: 4, kind: output, shape index: {}]
  %s5 = sld [smem:[#allocation0]]
  $region49: #{fno_forward.18} parent=0
    _
  %s7 = ssub.s32 1, %s5
  %s8 = scalar_select 0, %s7, %s5
  loop: start=0, step=1, limit=4
  $region2: #{fno_forward.18} parent=0 // loop_pre_header
    _
  $region3: #{fno_forward.18} parent=0 // loop_header
    %s10 = sphi 0, %s14
    %p11 = scmp.ge.s32.totalorder %s10, 4
    %s20 = sphi 0, %s22
    %s23 = sphi 0, %s20
    %s24 = sphi 0, %s23
    %s40 = sphi 0, %s24
    %s44 = sphi 0, %s44
    %s46 = sphi 0, %s44
    %s47 = sphi 0, %s46
    %s61 = sphi 0, %s47
    %s65 = sphi 0, %s65
    %s67 = sphi 0, %s65
    %s68 = sphi 0, %s67
    %s82 = sphi 0, %s68
    %s88 = sphi 0, %s90
    %s91 = sphi 0, %s88
    %s92 = sphi 0, %s91
    %s108 = sphi 0, %s92
    %s114 = sphi 0, %s116
    %s117 = sphi 0, %s114
    %s118 = sphi 0, %s117
    %s134 = sphi 0, %s118
  $region4: #{fno_forward.18} parent=0 // loop_header_branch
    %13 = sbr.rel (%p11) target = $region8
  $region5: #{fno_forward.18} parent=0 // loop_body
    %s15 = ssub.s32 %s10, 1
    %s16 = ssub.s32 %s10, 2
    %s17 = sadd.s32 %s10, 1
    %s18 = ssub.s32 %s10, %s17
    %p19 = scmp.eq.s32.totalorder %s18, 0
    %s21 = sadd.s32 %s20, 1
    %s22 = scalar_select %p19, %s20, %s21
    %p25 = pneg %p19
    %p26 = scmp.eq.s32.totalorder %s10, 1
    %p27 = por %p25, %p26
    %p28 = scmp.ne.s32.totalorder %s20, %s23
    %p29 = scmp.eq.s32.totalorder %s10, 0
    %p30 = por %p28, %p29
    %p31 = scmp.ne.s32.totalorder %s20, %s23
    %p32 = scmp.eq.s32.totalorder %s15, 1
    %p33 = por %p31, %p32
    %p34 = scmp.ne.s32.totalorder %s23, %s24
    %p35 = scmp.eq.s32.totalorder %s15, 0
    %p36 = por %p34, %p35
    %p37 = scmp.ne.s32.totalorder %s23, %s24
    %p38 = scmp.eq.s32.totalorder %s16, 1
    %p39 = por %p37, %p38
    %p41 = scmp.ne.s32.totalorder %s24, %s40
    %p42 = scmp.eq.s32.totalorder %s16, 0
    %p43 = por %p41, %p42
    %s45 = sadd.s32 %s44, 1
    %p48 = scmp.eq.s32.totalorder %s10, 1
    %p49 = scmp.ne.s32.totalorder %s44, %s46
    %p50 = scmp.eq.s32.totalorder %s10, 0
    %p51 = por %p49, %p50
    %p52 = scmp.ne.s32.totalorder %s44, %s46
    %p53 = scmp.eq.s32.totalorder %s15, 1
    %p54 = por %p52, %p53
    %p55 = scmp.ne.s32.totalorder %s46, %s47
    %p56 = scmp.eq.s32.totalorder %s15, 0
    %p57 = por %p55, %p56
    %p58 = scmp.ne.s32.totalorder %s46, %s47
    %p59 = scmp.eq.s32.totalorder %s16, 1
    %p60 = por %p58, %p59
    %p62 = scmp.ne.s32.totalorder %s47, %s61
    %p63 = scmp.eq.s32.totalorder %s16, 0
    %p64 = por %p62, %p63
    %s66 = sadd.s32 %s65, 1
    %p69 = scmp.eq.s32.totalorder %s10, 1
    %p70 = scmp.ne.s32.totalorder %s65, %s67
    %p71 = scmp.eq.s32.totalorder %s10, 0
    %p72 = por %p70, %p71
    %p73 = scmp.ne.s32.totalorder %s65, %s67
    %p74 = scmp.eq.s32.totalorder %s15, 1
    %p75 = por %p73, %p74
    %p76 = scmp.ne.s32.totalorder %s67, %s68
    %p77 = scmp.eq.s32.totalorder %s15, 0
    %p78 = por %p76, %p77
    %p79 = scmp.ne.s32.totalorder %s67, %s68
    %p80 = scmp.eq.s32.totalorder %s16, 1
    %p81 = por %p79, %p80
    %p83 = scmp.ne.s32.totalorder %s68, %s82
    %p84 = scmp.eq.s32.totalorder %s16, 0
    %p85 = por %p83, %p84
    %s86 = ssub.s32 %s10, %s17
    %p87 = scmp.eq.s32.totalorder %s86, 0
    %s89 = sadd.s32 %s88, 1
    %s90 = scalar_select %p87, %s88, %s89
    %p93 = pneg %p87
    %p94 = scmp.eq.s32.totalorder %s10, 1
    %p95 = por %p93, %p94
    %p96 = scmp.ne.s32.totalorder %s88, %s91
    %p97 = scmp.eq.s32.totalorder %s10, 0
    %p98 = por %p96, %p97
    %p99 = scmp.ne.s32.totalorder %s88, %s91
    %p100 = scmp.eq.s32.totalorder %s15, 1
    %p101 = por %p99, %p100
    %p102 = scmp.ne.s32.totalorder %s91, %s92
    %p103 = scmp.eq.s32.totalorder %s15, 0
    %p104 = por %p102, %p103
    %p105 = scmp.ne.s32.totalorder %s91, %s92
    %p106 = scmp.eq.s32.totalorder %s16, 1
    %p107 = por %p105, %p106
    %p109 = scmp.ne.s32.totalorder %s92, %s108
    %p110 = scmp.eq.s32.totalorder %s16, 0
    %p111 = por %p109, %p110
    %s112 = ssub.s32 %s10, %s17
    %p113 = scmp.eq.s32.totalorder %s112, 0
    %s115 = sadd.s32 %s114, 1
    %s116 = scalar_select %p113, %s114, %s115
    %p119 = pneg %p113
    %p120 = scmp.eq.s32.totalorder %s10, 1
    %p121 = por %p119, %p120
    %p122 = scmp.ne.s32.totalorder %s114, %s117
    %p123 = scmp.eq.s32.totalorder %s10, 0
    %p124 = por %p122, %p123
    %p125 = scmp.ne.s32.totalorder %s114, %s117
    %p126 = scmp.eq.s32.totalorder %s15, 1
    %p127 = por %p125, %p126
    %p128 = scmp.ne.s32.totalorder %s117, %s118
    %p129 = scmp.eq.s32.totalorder %s15, 0
    %p130 = por %p128, %p129
    %p131 = scmp.ne.s32.totalorder %s117, %s118
    %p132 = scmp.eq.s32.totalorder %s16, 1
    %p133 = por %p131, %p132
    %p135 = scmp.ne.s32.totalorder %s118, %s134
    %p136 = scmp.eq.s32.totalorder %s16, 0
    %p137 = por %p135, %p136
    %p138 = scmp.le.s32.totalorder 1, %s10
    %p139 = scmp.lt.s32.totalorder %s10, 3
    %p140 = pnand %p138, %p139
    %p141 = pneg %p140
    // Predicated region
    $region9: #{fno_forward.18} parent=5 // pred_check
      _
    $region10: #{fno_forward.18} parent=5 // pred_check_branch
      %143 = sbr.rel (%p140) target = $region12
    $region11: #{fno_forward.18} parent=5 // pred_region
      %s144 = ssub.s32 %s10, 1
      // Predicated region
      $region13: #{fno_forward.18} parent=11 // pred_check
        %p145 = pneg %p57
      $region14: #{fno_forward.18} parent=11 // pred_check_branch
        %147 = sbr.rel (%p145) target = $region16
      $region15: #{fno_forward.18} parent=11 // pred_region
        _
      $region16: #{fno_forward.18} parent=11 // pred_fallthru
        _
      // Predicated region
      $region17: #{fno_forward.18} parent=11 // pred_check
        %p148 = pneg %p78
      $region18: #{fno_forward.18} parent=11 // pred_check_branch
        %150 = sbr.rel (%p148) target = $region20
      $region19: #{fno_forward.18} parent=11 // pred_region
        _
      $region20: #{fno_forward.18} parent=11 // pred_fallthru
        _
    $region12: #{fno_forward.18} parent=5 // pred_fallthru
      _
    %p151 = scmp.lt.s32.totalorder %s10, 2
    // Predicated region
    $region21: #{fno_forward.18} parent=5 // pred_check
      %p152 = pneg %p151
    $region22: #{fno_forward.18} parent=5 // pred_check_branch
      %154 = sbr.rel (%p152) target = $region24
    $region23: #{fno_forward.18} parent=5 // pred_region
      // Predicated region
      $region25: #{fno_forward.18} parent=23 // pred_check
        %p155 = pneg %p30
      $region26: #{fno_forward.18} parent=23 // pred_check_branch
        %157 = sbr.rel (%p155) target = $region28
      $region27: #{fno_forward.18} parent=23 // pred_region
        %s158 = smul.u32 5, %s10
        %p159 = scmp.lt.s32.totalorder %s158, 9
        %s160 = scalar_select %p159, %s158, 9
        %s161 = smul.addr %s160, 4
        %s162 = scalar_lea.vmem %s0, %s161
        %s163 = smul.u32 5, %s10
      $region28: #{fno_forward.18} parent=23 // pred_fallthru
        _
      // Predicated region
      $region29: #{fno_forward.18} parent=23 // pred_check
        %p164 = pneg %p98
      $region30: #{fno_forward.18} parent=23 // pred_check_branch
        %166 = sbr.rel (%p164) target = $region32
      $region31: #{fno_forward.18} parent=23 // pred_region
        %s167 = smul.u32 5, %s10
        %p168 = scmp.lt.s32.totalorder %s167, 9
        %s169 = scalar_select %p168, %s167, 9
        %s170 = smul.addr %s169, 4
        %s171 = scalar_lea.vmem %s3, %s170
        %s172 = smul.u32 5, %s10
      $region32: #{fno_forward.18} parent=23 // pred_fallthru
        _
    $region24: #{fno_forward.18} parent=5 // pred_fallthru
      _
    %p173 = scmp.le.s32.totalorder 1, %s10
    %p174 = scmp.lt.s32.totalorder %s10, 3
    %p175 = pnand %p173, %p174
    %p176 = pneg %p175
    // Predicated region
    $region33: #{fno_forward.18} parent=5 // pred_check
      _
    $region34: #{fno_forward.18} parent=5 // pred_check_branch
      %178 = sbr.rel (%p175) target = $region36
    $region35: #{fno_forward.18} parent=5 // pred_region
      %s179 = ssub.s32 %s10, 1
      %s180 = smul.u32 5, %s15
      %p181 = scmp.lt.s32.totalorder %s180, 9
      %s182 = scalar_select %p181, %s180, 9
      %s183 = smul.addr %s182, 4
      %s184 = scalar_lea.vmem %s0, %s183
      %p185 = pneg %p36
      %p186 = pneg %p33
      %p187 = pneg %p57
      %p188 = pneg %p54
      %p189 = pneg %p78
      %p190 = pneg %p75
      %s191 = smul.u32 5, %s15
      %p192 = scmp.lt.s32.totalorder %s191, 9
      %s193 = scalar_select %p192, %s191, 9
      %s194 = smul.addr %s193, 4
      %s195 = scalar_lea.vmem %s3, %s194
      %p196 = pneg %p104
      %p197 = pneg %p101
      %p198 = pneg %p130
      %p199 = pneg %p127
      %s200 = smul.u32 5, %s15
      %p201 = scmp.lt.s32.totalorder %s200, 9
      %s202 = scalar_select %p201, %s200, 9
      %s203 = smul.addr %s202, 4
      %s204 = scalar_lea.vmem %s4, %s203
      %s205 = smul.u32 5, %s15
      %p206 = scmp.lt.s32.totalorder %s205, 9
      %s207 = scalar_select %p206, %s205, 9
      %s208 = smul.addr %s207, 4
      %s209 = scalar_lea.vmem %s0, %s208
      %s210 = smul.u32 5, %s15
      %s211 = smul.u32 5, %s15
      %p212 = scmp.lt.s32.totalorder %s211, 9
      %s213 = scalar_select %p212, %s211, 9
      %s214 = smul.addr %s213, 4
      %s215 = scalar_lea.vmem %s3, %s214
      %s216 = smul.u32 5, %s15
      %s217 = smul.u32 5, %s15
      %p218 = scmp.lt.s32.totalorder %s217, 9
      %s219 = scalar_select %p218, %s217, 9
      %s220 = smul.addr %s219, 4
      %s221 = scalar_lea.vmem %s4, %s220
      %s222 = smul.u32 5, %s15
      %v224 = vld [vmem:[%s209] sm:$0xff]
      %v225 = vld [vmem:[%s209 + $0x8] sm:$0xff]
      %v226 = vld [vmem:[%s209 + $0x10] sm:$0xf]
      %v227 = vld [vmem:[%s1] sm:$0xff]
      %v228 = vpack.c.bf16 %v227, %v227
      %v229 = vld [vmem:[%s2] sm:$0xff]
      %231 = vset.pattern.permute.xlu0 0
      %232 = vperm.xlu0 %231, %v229
      %v233 = vpop.permute.xlu0 %232
      %v238 = vunpack.c.l.b16 %v224
      %v239 = vunpack.c.h.b16 %v224
      %v240 = vunpack.c.l.b16 %v225
      %v241 = vunpack.c.h.b16 %v225
      %v242 = vunpack.c.l.b16 %v226
      %v243 = vpack.c.b16 %v238, %v238
      %v244 = vpack.c.b16 %v239, %v239
      %v245 = vpack.c.b16 %v240, %v240
      %v246 = vpack.c.b16 %v241, %v241
      %v247 = vpack.c.b16 %v242, %v242
      %vm248 = vcmask 64512
      %v250 = vsel %vm248, %v228, 0
      %vm252 = vcmask 1043456
      %v254 = vsel %vm252, %v243, 0
      %v257 = vsel %vm252, %v244, 0
      %v260 = vsel %vm252, %v245, 0
      %v263 = vsel %vm252, %v246, 0
      %v266 = vsel %vm252, %v247, 0
      %268 = vmatprep.subr.bf16.mxu0 %v257
      %269 = vmatpush1.bf16.msra.mxu0 %v254
      %270 = vmatprep.subr.bf16.mxu0 0
      %271 = vmatpush1.bf16.msra.mxu0 0
      %272 = vmatprep.subr.bf16.mxu0 0
      %273 = vmatpush1.bf16.msra.mxu0 0
      %274 = vmatprep.subr.bf16.mxu0 0
      %275 = vmatpush1.bf16.msra.mxu0 0
      %276 = vmatprep.subr.bf16.mxu0 0
      %277 = vmatpush1.bf16.msra.mxu0 0
      %278 = vmatprep.subr.bf16.mxu0 0
      %279 = vmatpush1.bf16.msra.mxu0 0
      %280 = vmatprep.subr.bf16.mxu0 0
      %281 = vmatpush1.bf16.msra.mxu0 0
      %282 = vmatprep.subr.bf16.mxu0 0
      %283 = vmatpush1.bf16.msra.mxu0 0
      %284 = vmatprep.subr.bf16.mxu0 0
      %285 = vmatpush1.bf16.msra.mxu0 0
      %286 = vmatprep.subr.bf16.mxu0 0
      %287 = vmatpush1.bf16.msra.mxu0 0
      %288 = vmatprep.subr.bf16.mxu0 0
      %289 = vmatpush1.bf16.msra.mxu0 0
      %290 = vmatprep.subr.bf16.mxu0 0
      %291 = vmatpush1.bf16.msra.mxu0 0
      %292 = vmatprep.subr.bf16.mxu0 0
      %293 = vmatpush1.bf16.msra.mxu0 0
      %294 = vmatprep.subr.bf16.mxu0 0
      %295 = vmatpush1.bf16.msra.mxu0 0
      %296 = vmatprep.subr.bf16.mxu0 0
      %297 = vmatpush1.bf16.msra.mxu0 0
      %298 = vmatprep.subr.bf16.mxu0 0
      %299 = vmatpush1.bf16.msra.mxu0 0
      %300 = vmatprep.mubr.bf16.mxu0 0
      %301 = vmatmul.mubr.bf16.gmra.mrb[0].mxu0 %v250
      %v302 = vpop.f32.mrb[0].mxu0
      %v303 = vadd.f32 %v233, %v302
      %v304 = vpop.f32.mrb[0].mxu0
      %v305 = vadd.f32 %v233, %v304
      %v306 = vpop.f32.mrb[0].mxu0
      %v307 = vpop.f32.mrb[0].mxu0
      %308 = vdwg.mxu0
      %309 = vmatprep.subr.bf16.mxu0 %v263
      %310 = vmatpush1.bf16.msra.mxu0 %v260
      %311 = vmatprep.subr.bf16.mxu0 0
      %312 = vmatpush1.bf16.msra.mxu0 0
      %313 = vmatprep.subr.bf16.mxu0 0
      %314 = vmatpush1.bf16.msra.mxu0 0
      %315 = vmatprep.subr.bf16.mxu0 0
      %316 = vmatpush1.bf16.msra.mxu0 0
      %317 = vmatprep.subr.bf16.mxu0 0
      %318 = vmatpush1.bf16.msra.mxu0 0
      %319 = vmatprep.subr.bf16.mxu0 0
      %320 = vmatpush1.bf16.msra.mxu0 0
      %321 = vmatprep.subr.bf16.mxu0 0
      %322 = vmatpush1.bf16.msra.mxu0 0
      %323 = vmatprep.subr.bf16.mxu0 0
      %324 = vmatpush1.bf16.msra.mxu0 0
      %325 = vmatprep.subr.bf16.mxu0 0
      %326 = vmatpush1.bf16.msra.mxu0 0
      %327 = vmatprep.subr.bf16.mxu0 0
      %328 = vmatpush1.bf16.msra.mxu0 0
      %329 = vmatprep.subr.bf16.mxu0 0
      %330 = vmatpush1.bf16.msra.mxu0 0
      %331 = vmatprep.subr.bf16.mxu0 0
      %332 = vmatpush1.bf16.msra.mxu0 0
      %333 = vmatprep.subr.bf16.mxu0 0
      %334 = vmatpush1.bf16.msra.mxu0 0
      %335 = vmatprep.subr.bf16.mxu0 0
      %336 = vmatpush1.bf16.msra.mxu0 0
      %337 = vmatprep.subr.bf16.mxu0 0
      %338 = vmatpush1.bf16.msra.mxu0 0
      %339 = vmatprep.subr.bf16.mxu0 0
      %340 = vmatpush1.bf16.msra.mxu0 0
      %341 = vmatprep.mubr.bf16.mxu0 0
      %342 = vmatmul.mubr.bf16.gmra.mrb[0].mxu0 %v250
      %v343 = vpop.f32.mrb[0].mxu0
      %v344 = vadd.f32 %v233, %v343
      %v345 = vpop.f32.mrb[0].mxu0
      %v346 = vadd.f32 %v233, %v345
      %v347 = vpop.f32.mrb[0].mxu0
      %v348 = vpop.f32.mrb[0].mxu0
      %349 = vdwg.mxu0
      %350 = vmatprep.subr.bf16.mxu0 0
      %351 = vmatpush1.bf16.msra.mxu0 %v266
      %352 = vmatprep.subr.bf16.mxu0 0
      %353 = vmatpush1.bf16.msra.mxu0 0
      %354 = vmatprep.subr.bf16.mxu0 0
      %355 = vmatpush1.bf16.msra.mxu0 0
      %356 = vmatprep.subr.bf16.mxu0 0
      %357 = vmatpush1.bf16.msra.mxu0 0
      %358 = vmatprep.subr.bf16.mxu0 0
      %359 = vmatpush1.bf16.msra.mxu0 0
      %360 = vmatprep.subr.bf16.mxu0 0
      %361 = vmatpush1.bf16.msra.mxu0 0
      %362 = vmatprep.subr.bf16.mxu0 0
      %363 = vmatpush1.bf16.msra.mxu0 0
      %364 = vmatprep.subr.bf16.mxu0 0
      %365 = vmatpush1.bf16.msra.mxu0 0
      %366 = vmatprep.subr.bf16.mxu0 0
      %367 = vmatpush1.bf16.msra.mxu0 0
      %368 = vmatprep.subr.bf16.mxu0 0
      %369 = vmatpush1.bf16.msra.mxu0 0
      %370 = vmatprep.subr.bf16.mxu0 0
      %371 = vmatpush1.bf16.msra.mxu0 0
      %372 = vmatprep.subr.bf16.mxu0 0
      %373 = vmatpush1.bf16.msra.mxu0 0
      %374 = vmatprep.subr.bf16.mxu0 0
      %375 = vmatpush1.bf16.msra.mxu0 0
      %376 = vmatprep.subr.bf16.mxu0 0
      %377 = vmatpush1.bf16.msra.mxu0 0
      %378 = vmatprep.subr.bf16.mxu0 0
      %379 = vmatpush1.bf16.msra.mxu0 0
      %380 = vmatprep.subr.bf16.mxu0 0
      %381 = vmatpush1.bf16.msra.mxu0 0
      %382 = vmatprep.mubr.bf16.mxu0 0
      %383 = vmatmul.mubr.bf16.gmra.mrb[0].mxu0 %v250
      %v384 = vpop.f32.mrb[0].mxu0
      %v385 = vadd.f32 %v233, %v384
      %v386 = vpop.f32.mrb[0].mxu0
      %v387 = vpop.f32.mrb[0].mxu0
      %v388 = vpop.f32.mrb[0].mxu0
      %389 = vdwg.mxu0
      %v390 = vld [vmem:[%s215] sm:$0xff]
      %v391 = vld [vmem:[%s215 + $0x8] sm:$0xff]
      %v392 = vld [vmem:[%s215 + $0x10] sm:$0xf]
      %v393 = vunpack.c.l.bf16 %v390
      %v394 = vunpack.c.h.bf16 %v390
      %v395 = vunpack.c.l.bf16 %v391
      %v396 = vunpack.c.h.bf16 %v391
      %v397 = vunpack.c.l.bf16 %v392
      %v398 = vadd.f32 %v303, %v393
      %v399 = vadd.f32 %v305, %v394
      %v400 = vadd.f32 %v344, %v395
      %v401 = vadd.f32 %v346, %v396
      %v402 = vadd.f32 %v385, %v397
      %v403 = vpack.c.bf16 %v398, %v398
      %v404 = vpack.c.bf16 %v399, %v399
      %v405 = vpack.c.bf16 %v400, %v400
      %v406 = vpack.c.bf16 %v401, %v401
      %v407 = vpack.c.bf16 %v402, %v402
      %v413 = vunpack.c.l.b16 %v403
      %v414 = vunpack.c.l.b16 %v404
      %v415 = vunpack.c.l.b16 %v405
      %v416 = vunpack.c.l.b16 %v406
      %v417 = vunpack.c.l.b16 %v407
      %v418 = vpack.c.b16 %v414, %v413
      %v419 = vpack.c.b16 %v416, %v415
      %v420 = vpack.c.b16 %v417, %v417
      %424 = vst [vmem:[%s221] sm:$0xff] %v418
      %425 = vst [vmem:[%s221 + $0x8] sm:$0xff] %v419
      %426 = vst [vmem:[%s221 + $0x10] sm:$0xf] %v420
      %s427 = smul.u32 5, %s15
      %p428 = scmp.lt.s32.totalorder %s427, 9
      %s429 = scalar_select %p428, %s427, 9
      %s430 = smul.addr %s429, 4
      %s431 = scalar_lea.vmem %s4, %s430
      // Predicated region
      $region37: #{fno_forward.18} parent=35 // pred_check
        %p432 = pneg %p127
      $region38: #{fno_forward.18} parent=35 // pred_check_branch
        %434 = sbr.rel (%p432) target = $region40
      $region39: #{fno_forward.18} parent=35 // pred_region
        %s435 = smul.u32 5, %s15
      $region40: #{fno_forward.18} parent=35 // pred_fallthru
        _
    $region36: #{fno_forward.18} parent=5 // pred_fallthru
      _
    %p436 = scmp.le.s32.totalorder 2, %s10
    // Predicated region
    $region41: #{fno_forward.18} parent=5 // pred_check
      %p437 = pneg %p436
    $region42: #{fno_forward.18} parent=5 // pred_check_branch
      %439 = sbr.rel (%p437) target = $region44
    $region43: #{fno_forward.18} parent=5 // pred_region
      %s440 = ssub.s32 %s10, 2
      // Predicated region
      $region45: #{fno_forward.18} parent=43 // pred_check
        %p441 = pneg %p133
      $region46: #{fno_forward.18} parent=43 // pred_check_branch
        %443 = sbr.rel (%p441) target = $region48
      $region47: #{fno_forward.18} parent=43 // pred_region
        %s444 = smul.u32 5, %s16
        %p445 = scmp.lt.s32.totalorder %s444, 9
        %s446 = scalar_select %p445, %s444, 9
        %s447 = smul.addr %s446, 4
        %s448 = scalar_lea.vmem %s4, %s447
      $region48: #{fno_forward.18} parent=43 // pred_fallthru
        _
    $region44: #{fno_forward.18} parent=5 // pred_fallthru
      _
  $region6: #{fno_forward.18} parent=0 // loop_footer
    %s14 = sadd.s32 1, %s10
  $region7: #{fno_forward.18} parent=0 // loop_footer_branch
    %9 = sbr.rel target = $region3
  $region8: #{fno_forward.18} parent=0 // loop_exit
    _

// kernel: reverse.2
$region0: #{reverse.2}
  %s0 = inlined_call_operand.vmem [shape: f32[2,1,16,7], index: 0, kind: input, shape index: {}]
  %s1 = inlined_call_operand.vmem [shape: f32[2,1,16,7], index: 1, kind: output, shape index: {}]
  $region1: #{reverse.2} parent=0
    #allocation0 [shape = 'u8[16384]{0}', space=vmem, size = 0x4000, scoped, tag = 'operand span for operand 0']
    #allocation1 [shape = 'u8[8192]{0}', space=vmem, size = 0x2000, scoped, tag = 'operand span for operand 1']
    %s2 = scalar_lea.vmem [#allocation0], 8
    // Predicated region
    $region2: #{reverse.2} parent=1 // pred_check
      _
    $region3: #{reverse.2} parent=1 // pred_check_branch
      %4 = sbr.rel (0) target = $region5
    $region4: #{reverse.2} parent=1 // pred_region
      // Predicated region
      $region6: #{reverse.2} parent=4 // pred_check
        _
      $region7: #{reverse.2} parent=4 // pred_check_branch
        %6 = sbr.rel (0) target = $region9
      $region8: #{reverse.2} parent=4 // pred_region
        // Predicated region
        $region21: #{reverse.2} parent=8 // pred_check
          _
        $region22: #{reverse.2} parent=8 // pred_check_branch
          %23 = sbr.rel (0) target = $region24
        $region23: #{reverse.2} parent=8 // pred_region
          loop: start=0, step=1, limit=1
          $region25: #{reverse.2} parent=23 // loop_pre_header
            _
          $region26: #{reverse.2} parent=23 // loop_header
            %s25 = sphi 0, %s29
            %p26 = scmp.ge.s32.totalorder %s25, 1
            %s30 = sphi %s0, %s0
            %s31 = sphi %s2, %s2
          $region27: #{reverse.2} parent=23 // loop_header_branch
            %28 = sbr.rel (%p26) target = $region31
          $region28: #{reverse.2} parent=23 // loop_body
            %v32 = vld [vmem:[%s30] sm:$0xff]
            %33 = vst [vmem:[%s31] sm:$0xff] %v32
            %v34 = vld [vmem:[%s30 + $0x8] sm:$0xff]
            %35 = vst [vmem:[%s31 + $0x10] sm:$0xff] %v34
          $region29: #{reverse.2} parent=23 // loop_footer
            %s29 = sadd.s32 1, %s25
          $region30: #{reverse.2} parent=23 // loop_footer_branch
            %24 = sbr.rel target = $region26
          $region31: #{reverse.2} parent=23 // loop_exit
            _
        $region24: #{reverse.2} parent=8 // pred_fallthru
          _
        // Predicated region
        $region32: #{reverse.2} parent=8 // pred_check
          _
        $region33: #{reverse.2} parent=8 // pred_check_branch
          %37 = sbr.rel target = $region35
        $region34: #{reverse.2} parent=8 // pred_region
          _
        $region35: #{reverse.2} parent=8 // pred_fallthru
          _
      $region9: #{reverse.2} parent=4 // pred_fallthru
        _
      // Predicated region
      $region10: #{reverse.2} parent=4 // pred_check
        _
      $region11: #{reverse.2} parent=4 // pred_check_branch
        %8 = sbr.rel target = $region13
      $region12: #{reverse.2} parent=4 // pred_region
        loop: start=0, step=1, limit=1
        $region14: #{reverse.2} parent=12 // loop_pre_header
          _
        $region15: #{reverse.2} parent=12 // loop_header
          %s11 = sphi 0, %s15
          %p12 = scmp.ge.s32.totalorder %s11, 1
          %s16 = sphi %s0, %s0
          %s17 = sphi %s2, %s2
        $region16: #{reverse.2} parent=12 // loop_header_branch
          %14 = sbr.rel (%p12) target = $region20
        $region17: #{reverse.2} parent=12 // loop_body
          %v18 = vld [vmem:[%s16] sm:$0xff]
          %19 = vst [vmem:[%s17] sm:$0xff] %v18
          %v20 = vld [vmem:[%s16 + $0x8] sm:$0xff]
          %21 = vst [vmem:[%s17 + $0x10] sm:$0xff] %v20
        $region18: #{reverse.2} parent=12 // loop_footer
          %s15 = sadd.s32 1, %s11
        $region19: #{reverse.2} parent=12 // loop_footer_branch
          %10 = sbr.rel target = $region15
        $region20: #{reverse.2} parent=12 // loop_exit
          _
      $region13: #{reverse.2} parent=4 // pred_fallthru
        _
    $region5: #{reverse.2} parent=1 // pred_fallthru
      _
    %38 = vnop
    %s39 = scalar_lea.vmem [#allocation0], 7
    %v40 = vld [vmem:[%s39] ss:$-1 sm:$0xff]
    %v41 = vrot.slane %v40, 1
    %42 = vst [vmem:[#allocation1] sm:$0xff] %v41
    %s43 = scalar_lea.vmem [#allocation0], 8
    %s44 = scalar_lea.vmem %s43, 7 [#allocation0]
    %v45 = vld [vmem:[%s44] ss:$-1 sm:$0xff]
    %v46 = vrot.slane %v45, 1
    %v47 = vlaneseq
    %v48 = vshrl.u32 %v47, 7
    %vm49 = vcmp.lt.s32.totalorder %v48, 7
    %50 = vst.msk [vmem:[#allocation1] sm:$0xff] %vm49, %v46
    %s51 = scalar_lea.vmem [#allocation1], 8
    %s52 = scalar_lea.vmem [#allocation0], 16
    %s53 = scalar_lea.vmem %s52, 7 [#allocation0]
    %v54 = vld [vmem:[%s53] ss:$-1 sm:$0xff]
    %v55 = vrot.slane %v54, 1
    %56 = vst [vmem:[%s51] sm:$0xff] %v55
    %s57 = scalar_lea.vmem %s52, 8 [#allocation0]
    %s58 = scalar_lea.vmem %s57, 7 [#allocation0]
    %v59 = vld [vmem:[%s58] ss:$-1 sm:$0xff]
    %v60 = vrot.slane %v59, 1
    %v61 = vlaneseq
    %v62 = vshrl.u32 %v61, 7
    %vm63 = vcmp.lt.s32.totalorder %v62, 7
    %64 = vst.msk [vmem:[%s51] sm:$0xff] %vm63, %v60
    // Predicated region
    $region36: #{reverse.2} parent=1 // pred_check
      _
    $region37: #{reverse.2} parent=1 // pred_check_branch
      %66 = sbr.rel (0) target = $region39
    $region38: #{reverse.2} parent=1 // pred_region
      // Predicated region
      $region40: #{reverse.2} parent=38 // pred_check
        _
      $region41: #{reverse.2} parent=38 // pred_check_branch
        %68 = sbr.rel (0) target = $region43
      $region42: #{reverse.2} parent=38 // pred_region
        // Predicated region
        $region55: #{reverse.2} parent=42 // pred_check
          _
        $region56: #{reverse.2} parent=42 // pred_check_branch
          %85 = sbr.rel (0) target = $region58
        $region57: #{reverse.2} parent=42 // pred_region
          loop: start=0, step=1, limit=1
          $region59: #{reverse.2} parent=57 // loop_pre_header
            _
          $region60: #{reverse.2} parent=57 // loop_header
            %s87 = sphi 0, %s91
            %p88 = scmp.ge.s32.totalorder %s87, 1
            %s92 = sphi [#allocation1], [#allocation1]
            %s93 = sphi %s1, %s1
          $region61: #{reverse.2} parent=57 // loop_header_branch
            %90 = sbr.rel (%p88) target = $region65
          $region62: #{reverse.2} parent=57 // loop_body
            %v94 = vld [vmem:[%s92] sm:$0xff]
            %95 = vst [vmem:[%s93] sm:$0xff] %v94
            %v96 = vld [vmem:[%s92 + $0x8] sm:$0xff]
            %97 = vst [vmem:[%s93 + $0x8] sm:$0xff] %v96
          $region63: #{reverse.2} parent=57 // loop_footer
            %s91 = sadd.s32 1, %s87
          $region64: #{reverse.2} parent=57 // loop_footer_branch
            %86 = sbr.rel target = $region60
          $region65: #{reverse.2} parent=57 // loop_exit
            _
        $region58: #{reverse.2} parent=42 // pred_fallthru
          _
        // Predicated region
        $region66: #{reverse.2} parent=42 // pred_check
          _
        $region67: #{reverse.2} parent=42 // pred_check_branch
          %99 = sbr.rel target = $region69
        $region68: #{reverse.2} parent=42 // pred_region
          _
        $region69: #{reverse.2} parent=42 // pred_fallthru
          _
      $region43: #{reverse.2} parent=38 // pred_fallthru
        _
      // Predicated region
      $region44: #{reverse.2} parent=38 // pred_check
        _
      $region45: #{reverse.2} parent=38 // pred_check_branch
        %70 = sbr.rel target = $region47
      $region46: #{reverse.2} parent=38 // pred_region
        loop: start=0, step=1, limit=1
        $region48: #{reverse.2} parent=46 // loop_pre_header
          _
        $region49: #{reverse.2} parent=46 // loop_header
          %s73 = sphi 0, %s77
          %p74 = scmp.ge.s32.totalorder %s73, 1
          %s78 = sphi [#allocation1], [#allocation1]
          %s79 = sphi %s1, %s1
        $region50: #{reverse.2} parent=46 // loop_header_branch
          %76 = sbr.rel (%p74) target = $region54
        $region51: #{reverse.2} parent=46 // loop_body
          %v80 = vld [vmem:[%s78] sm:$0xff]
          %81 = vst [vmem:[%s79] sm:$0xff] %v80
          %v82 = vld [vmem:[%s78 + $0x8] sm:$0xff]
          %83 = vst [vmem:[%s79 + $0x8] sm:$0xff] %v82
        $region52: #{reverse.2} parent=46 // loop_footer
          %s77 = sadd.s32 1, %s73
        $region53: #{reverse.2} parent=46 // loop_footer_branch
          %72 = sbr.rel target = $region49
        $region54: #{reverse.2} parent=46 // loop_exit
          _
      $region47: #{reverse.2} parent=38 // pred_fallthru
        _
    $region39: #{reverse.2} parent=1 // pred_fallthru
      _
    %100 = vnop

// kernel: fno_forward.19
$region0: #{fno_forward.19}
  #allocation0 [shape = 'u32[]', space=smem, size = 0x4, offset = 0x4, fixed_abs, tag = 'smem constant byte address 0x4 - core index']
  #allocation1 [shape = 'u32[144,128]{1,0:T(1,128)}', space=vmem, size = 0x12000, scoped, tag = 'internal scratch']
  #allocation2 [shape = 'f32[1,1]{1,0:T(1,128)S(1)}', space=vmem, size = 0x200, scoped, tag = 'scoped memory for fno_forward.19']
  %s0 = inlined_call_operand.vmem [shape: bf16[8,512], index: 0, kind: input, shape index: {}]
  %s1 = inlined_call_operand.vmem [shape: f32[128,8], index: 1, kind: input, shape index: {}]
  %s2 = inlined_call_operand.vmem [shape: f32[128,1], index: 2, kind: input, shape index: {}]
  %s3 = inlined_call_operand.vmem [shape: f32[1,128], index: 3, kind: input, shape index: {}]
  %s4 = inlined_call_operand.<no memory space> [shape: f32[1,1], index: 4, kind: input, shape index: {}]
  %s5 = inlined_call_operand.vmem [shape: f32[1,512], index: 5, kind: input, shape index: {}]
  %s6 = inlined_call_operand.vmem [shape: f32[1,512], index: 6, kind: output, shape index: {}]
  %s7 = sld [smem:[#allocation0]]
  $region57: #{fno_forward.19} parent=0
    _
  %s9 = ssub.s32 1, %s7
  %s10 = scalar_select 0, %s9, %s7
  %v11 = vstv %s4
  %12 = vst [vmem:[#allocation2] sm:$0x1] %v11
  loop: start=0, step=1, limit=4
  $region2: #{fno_forward.19} parent=0 // loop_pre_header
    _
  $region3: #{fno_forward.19} parent=0 // loop_header
    %s14 = sphi 0, %s18
    %p15 = scmp.ge.s32.totalorder %s14, 4
    %s24 = sphi 0, %s26
    %s27 = sphi 0, %s24
    %s28 = sphi 0, %s27
    %s44 = sphi 0, %s28
    %s48 = sphi 0, %s48
    %s50 = sphi 0, %s48
    %s51 = sphi 0, %s50
    %s65 = sphi 0, %s51
    %s69 = sphi 0, %s69
    %s71 = sphi 0, %s69
    %s72 = sphi 0, %s71
    %s86 = sphi 0, %s72
    %s90 = sphi 0, %s90
    %s92 = sphi 0, %s90
    %s93 = sphi 0, %s92
    %s107 = sphi 0, %s93
    %s111 = sphi 0, %s111
    %s113 = sphi 0, %s111
    %s114 = sphi 0, %s113
    %s128 = sphi 0, %s114
    %s134 = sphi 0, %s136
    %s137 = sphi 0, %s134
    %s138 = sphi 0, %s137
    %s154 = sphi 0, %s138
    %s160 = sphi 0, %s162
    %s163 = sphi 0, %s160
    %s164 = sphi 0, %s163
    %s180 = sphi 0, %s164
  $region4: #{fno_forward.19} parent=0 // loop_header_branch
    %17 = sbr.rel (%p15) target = $region8
  $region5: #{fno_forward.19} parent=0 // loop_body
    %s19 = ssub.s32 %s14, 1
    %s20 = ssub.s32 %s14, 2
    %s21 = sadd.s32 %s14, 1
    %s22 = ssub.s32 %s14, %s21
    %p23 = scmp.eq.s32.totalorder %s22, 0
    %s25 = sadd.s32 %s24, 1
    %s26 = scalar_select %p23, %s24, %s25
    %p29 = pneg %p23
    %p30 = scmp.eq.s32.totalorder %s14, 1
    %p31 = por %p29, %p30
    %p32 = scmp.ne.s32.totalorder %s24, %s27
    %p33 = scmp.eq.s32.totalorder %s14, 0
    %p34 = por %p32, %p33
    %p35 = scmp.ne.s32.totalorder %s24, %s27
    %p36 = scmp.eq.s32.totalorder %s19, 1
    %p37 = por %p35, %p36
    %p38 = scmp.ne.s32.totalorder %s27, %s28
    %p39 = scmp.eq.s32.totalorder %s19, 0
    %p40 = por %p38, %p39
    %p41 = scmp.ne.s32.totalorder %s27, %s28
    %p42 = scmp.eq.s32.totalorder %s20, 1
    %p43 = por %p41, %p42
    %p45 = scmp.ne.s32.totalorder %s28, %s44
    %p46 = scmp.eq.s32.totalorder %s20, 0
    %p47 = por %p45, %p46
    %s49 = sadd.s32 %s48, 1
    %p52 = scmp.eq.s32.totalorder %s14, 1
    %p53 = scmp.ne.s32.totalorder %s48, %s50
    %p54 = scmp.eq.s32.totalorder %s14, 0
    %p55 = por %p53, %p54
    %p56 = scmp.ne.s32.totalorder %s48, %s50
    %p57 = scmp.eq.s32.totalorder %s19, 1
    %p58 = por %p56, %p57
    %p59 = scmp.ne.s32.totalorder %s50, %s51
    %p60 = scmp.eq.s32.totalorder %s19, 0
    %p61 = por %p59, %p60
    %p62 = scmp.ne.s32.totalorder %s50, %s51
    %p63 = scmp.eq.s32.totalorder %s20, 1
    %p64 = por %p62, %p63
    %p66 = scmp.ne.s32.totalorder %s51, %s65
    %p67 = scmp.eq.s32.totalorder %s20, 0
    %p68 = por %p66, %p67
    %s70 = sadd.s32 %s69, 1
    %p73 = scmp.eq.s32.totalorder %s14, 1
    %p74 = scmp.ne.s32.totalorder %s69, %s71
    %p75 = scmp.eq.s32.totalorder %s14, 0
    %p76 = por %p74, %p75
    %p77 = scmp.ne.s32.totalorder %s69, %s71
    %p78 = scmp.eq.s32.totalorder %s19, 1
    %p79 = por %p77, %p78
    %p80 = scmp.ne.s32.totalorder %s71, %s72
    %p81 = scmp.eq.s32.totalorder %s19, 0
    %p82 = por %p80, %p81
    %p83 = scmp.ne.s32.totalorder %s71, %s72
    %p84 = scmp.eq.s32.totalorder %s20, 1
    %p85 = por %p83, %p84
    %p87 = scmp.ne.s32.totalorder %s72, %s86
    %p88 = scmp.eq.s32.totalorder %s20, 0
    %p89 = por %p87, %p88
    %s91 = sadd.s32 %s90, 1
    %p94 = scmp.eq.s32.totalorder %s14, 1
    %p95 = scmp.ne.s32.totalorder %s90, %s92
    %p96 = scmp.eq.s32.totalorder %s14, 0
    %p97 = por %p95, %p96
    %p98 = scmp.ne.s32.totalorder %s90, %s92
    %p99 = scmp.eq.s32.totalorder %s19, 1
    %p100 = por %p98, %p99
    %p101 = scmp.ne.s32.totalorder %s92, %s93
    %p102 = scmp.eq.s32.totalorder %s19, 0
    %p103 = por %p101, %p102
    %p104 = scmp.ne.s32.totalorder %s92, %s93
    %p105 = scmp.eq.s32.totalorder %s20, 1
    %p106 = por %p104, %p105
    %p108 = scmp.ne.s32.totalorder %s93, %s107
    %p109 = scmp.eq.s32.totalorder %s20, 0
    %p110 = por %p108, %p109
    %s112 = sadd.s32 %s111, 1
    %p115 = scmp.eq.s32.totalorder %s14, 1
    %p116 = scmp.ne.s32.totalorder %s111, %s113
    %p117 = scmp.eq.s32.totalorder %s14, 0
    %p118 = por %p116, %p117
    %p119 = scmp.ne.s32.totalorder %s111, %s113
    %p120 = scmp.eq.s32.totalorder %s19, 1
    %p121 = por %p119, %p120
    %p122 = scmp.ne.s32.totalorder %s113, %s114
    %p123 = scmp.eq.s32.totalorder %s19, 0
    %p124 = por %p122, %p123
    %p125 = scmp.ne.s32.totalorder %s113, %s114
    %p126 = scmp.eq.s32.totalorder %s20, 1
    %p127 = por %p125, %p126
    %p129 = scmp.ne.s32.totalorder %s114, %s128
    %p130 = scmp.eq.s32.totalorder %s20, 0
    %p131 = por %p129, %p130
    %s132 = ssub.s32 %s14, %s21
    %p133 = scmp.eq.s32.totalorder %s132, 0
    %s135 = sadd.s32 %s134, 1
    %s136 = scalar_select %p133, %s134, %s135
    %p139 = pneg %p133
    %p140 = scmp.eq.s32.totalorder %s14, 1
    %p141 = por %p139, %p140
    %p142 = scmp.ne.s32.totalorder %s134, %s137
    %p143 = scmp.eq.s32.totalorder %s14, 0
    %p144 = por %p142, %p143
    %p145 = scmp.ne.s32.totalorder %s134, %s137
    %p146 = scmp.eq.s32.totalorder %s19, 1
    %p147 = por %p145, %p146
    %p148 = scmp.ne.s32.totalorder %s137, %s138
    %p149 = scmp.eq.s32.totalorder %s19, 0
    %p150 = por %p148, %p149
    %p151 = scmp.ne.s32.totalorder %s137, %s138
    %p152 = scmp.eq.s32.totalorder %s20, 1
    %p153 = por %p151, %p152
    %p155 = scmp.ne.s32.totalorder %s138, %s154
    %p156 = scmp.eq.s32.totalorder %s20, 0
    %p157 = por %p155, %p156
    %s158 = ssub.s32 %s14, %s21
    %p159 = scmp.eq.s32.totalorder %s158, 0
    %s161 = sadd.s32 %s160, 1
    %s162 = scalar_select %p159, %s160, %s161
    %p165 = pneg %p159
    %p166 = scmp.eq.s32.totalorder %s14, 1
    %p167 = por %p165, %p166
    %p168 = scmp.ne.s32.totalorder %s160, %s163
    %p169 = scmp.eq.s32.totalorder %s14, 0
    %p170 = por %p168, %p169
    %p171 = scmp.ne.s32.totalorder %s160, %s163
    %p172 = scmp.eq.s32.totalorder %s19, 1
    %p173 = por %p171, %p172
    %p174 = scmp.ne.s32.totalorder %s163, %s164
    %p175 = scmp.eq.s32.totalorder %s19, 0
    %p176 = por %p174, %p175
    %p177 = scmp.ne.s32.totalorder %s163, %s164
    %p178 = scmp.eq.s32.totalorder %s20, 1
    %p179 = por %p177, %p178
    %p181 = scmp.ne.s32.totalorder %s164, %s180
    %p182 = scmp.eq.s32.totalorder %s20, 0
    %p183 = por %p181, %p182
    %p184 = scmp.le.s32.totalorder 1, %s14
    %p185 = scmp.lt.s32.totalorder %s14, 3
    %p186 = pnand %p184, %p185
    %p187 = pneg %p186
    // Predicated region
    $region9: #{fno_forward.19} parent=5 // pred_check
      _
    $region10: #{fno_forward.19} parent=5 // pred_check_branch
      %189 = sbr.rel (%p186) target = $region12
    $region11: #{fno_forward.19} parent=5 // pred_region
      %s190 = ssub.s32 %s14, 1
      // Predicated region
      $region13: #{fno_forward.19} parent=11 // pred_check
        %p191 = pneg %p61
      $region14: #{fno_forward.19} parent=11 // pred_check_branch
        %193 = sbr.rel (%p191) target = $region16
      $region15: #{fno_forward.19} parent=11 // pred_region
        _
      $region16: #{fno_forward.19} parent=11 // pred_fallthru
        _
      // Predicated region
      $region17: #{fno_forward.19} parent=11 // pred_check
        %p194 = pneg %p82
      $region18: #{fno_forward.19} parent=11 // pred_check_branch
        %196 = sbr.rel (%p194) target = $region20
      $region19: #{fno_forward.19} parent=11 // pred_region
        _
      $region20: #{fno_forward.19} parent=11 // pred_fallthru
        _
      // Predicated region
      $region21: #{fno_forward.19} parent=11 // pred_check
        %p197 = pneg %p103
      $region22: #{fno_forward.19} parent=11 // pred_check_branch
        %199 = sbr.rel (%p197) target = $region24
      $region23: #{fno_forward.19} parent=11 // pred_region
        _
      $region24: #{fno_forward.19} parent=11 // pred_fallthru
        _
      // Predicated region
      $region25: #{fno_forward.19} parent=11 // pred_check
        %p200 = pneg %p124
      $region26: #{fno_forward.19} parent=11 // pred_check_branch
        %202 = sbr.rel (%p200) target = $region28
      $region27: #{fno_forward.19} parent=11 // pred_region
        _
      $region28: #{fno_forward.19} parent=11 // pred_fallthru
        _
    $region12: #{fno_forward.19} parent=5 // pred_fallthru
      _
    %p203 = scmp.lt.s32.totalorder %s14, 2
    // Predicated region
    $region29: #{fno_forward.19} parent=5 // pred_check
      %p204 = pneg %p203
    $region30: #{fno_forward.19} parent=5 // pred_check_branch
      %206 = sbr.rel (%p204) target = $region32
    $region31: #{fno_forward.19} parent=5 // pred_region
      // Predicated region
      $region33: #{fno_forward.19} parent=31 // pred_check
        %p207 = pneg %p34
      $region34: #{fno_forward.19} parent=31 // pred_check_branch
        %209 = sbr.rel (%p207) target = $region36
      $region35: #{fno_forward.19} parent=31 // pred_region
        %s210 = smul.u32 2, %s14
        %p211 = scmp.lt.s32.totalorder %s210, 3
        %s212 = scalar_select %p211, %s210, 3
        %s213 = smul.addr %s212, 4
        %s214 = scalar_lea.vmem %s0, %s213
        %s215 = smul.u32 2, %s14
      $region36: #{fno_forward.19} parent=31 // pred_fallthru
        _
      // Predicated region
      $region37: #{fno_forward.19} parent=31 // pred_check
        %p216 = pneg %p144
      $region38: #{fno_forward.19} parent=31 // pred_check_branch
        %218 = sbr.rel (%p216) target = $region40
      $region39: #{fno_forward.19} parent=31 // pred_region
        %s219 = smul.u32 2, %s14
        %p220 = scmp.lt.s32.totalorder %s219, 3
        %s221 = scalar_select %p220, %s219, 3
        %s222 = scalar_lea.vmem %s5, %s221
        %s223 = smul.u32 2, %s14
      $region40: #{fno_forward.19} parent=31 // pred_fallthru
        _
    $region32: #{fno_forward.19} parent=5 // pred_fallthru
      _
    %p224 = scmp.le.s32.totalorder 1, %s14
    %p225 = scmp.lt.s32.totalorder %s14, 3
    %p226 = pnand %p224, %p225
    %p227 = pneg %p226
    // Predicated region
    $region41: #{fno_forward.19} parent=5 // pred_check
      _
    $region42: #{fno_forward.19} parent=5 // pred_check_branch
      %229 = sbr.rel (%p226) target = $region44
    $region43: #{fno_forward.19} parent=5 // pred_region
      %s230 = ssub.s32 %s14, 1
      %s231 = smul.u32 2, %s19
      %p232 = scmp.lt.s32.totalorder %s231, 3
      %s233 = scalar_select %p232, %s231, 3
      %s234 = smul.addr %s233, 4
      %s235 = scalar_lea.vmem %s0, %s234
      %p236 = pneg %p40
      %p237 = pneg %p37
      %p238 = pneg %p61
      %p239 = pneg %p58
      %p240 = pneg %p82
      %p241 = pneg %p79
      %p242 = pneg %p103
      %p243 = pneg %p100
      %p244 = pneg %p124
      %p245 = pneg %p121
      %s246 = smul.u32 2, %s19
      %p247 = scmp.lt.s32.totalorder %s246, 3
      %s248 = scalar_select %p247, %s246, 3
      %s249 = scalar_lea.vmem %s5, %s248
      %p250 = pneg %p150
      %p251 = pneg %p147
      %p252 = pneg %p176
      %p253 = pneg %p173
      %s254 = smul.u32 2, %s19
      %p255 = scmp.lt.s32.totalorder %s254, 3
      %s256 = scalar_select %p255, %s254, 3
      %s257 = scalar_lea.vmem %s6, %s256
      %s258 = smul.u32 2, %s19
      %p259 = scmp.lt.s32.totalorder %s258, 3
      %s260 = scalar_select %p259, %s258, 3
      %s261 = smul.addr %s260, 4
      %s262 = scalar_lea.vmem %s0, %s261
      %s263 = smul.u32 2, %s19
      %s264 = smul.u32 2, %s19
      %p265 = scmp.lt.s32.totalorder %s264, 3
      %s266 = scalar_select %p265, %s264, 3
      %s267 = scalar_lea.vmem %s5, %s266
      %s268 = smul.u32 2, %s19
      %s269 = smul.u32 2, %s19
      %p270 = scmp.lt.s32.totalorder %s269, 3
      %s271 = scalar_select %p270, %s269, 3
      %s272 = scalar_lea.vmem %s6, %s271
      %s273 = smul.u32 2, %s19
      %v275 = vld [vmem:[%s262] sm:$0xff]
      %v276 = vld [vmem:[%s1] sm:$0xff]
      %v277 = vld [vmem:[%s1 + $0x8] sm:$0xff]
      %v278 = vld [vmem:[%s1 + $0x10] sm:$0xff]
      %v279 = vld [vmem:[%s1 + $0x18] sm:$0xff]
      %v280 = vld [vmem:[%s1 + $0x20] sm:$0xff]
      %v281 = vld [vmem:[%s1 + $0x28] sm:$0xff]
      %v282 = vld [vmem:[%s1 + $0x30] sm:$0xff]
      %v283 = vld [vmem:[%s1 + $0x38] sm:$0xff]
      %v284 = vld [vmem:[%s1 + $0x40] sm:$0xff]
      %v285 = vld [vmem:[%s1 + $0x48] sm:$0xff]
      %v286 = vld [vmem:[%s1 + $0x50] sm:$0xff]
      %v287 = vld [vmem:[%s1 + $0x58] sm:$0xff]
      %v288 = vld [vmem:[%s1 + $0x60] sm:$0xff]
      %v289 = vld [vmem:[%s1 + $0x68] sm:$0xff]
      %v290 = vld [vmem:[%s1 + $0x70] sm:$0xff]
      %v291 = vld [vmem:[%s1 + $0x78] sm:$0xff]
      %v292 = vpack.c.bf16 %v277, %v276
      %v293 = vpack.c.bf16 %v279, %v278
      %v294 = vpack.c.bf16 %v281, %v280
      %v295 = vpack.c.bf16 %v283, %v282
      %v296 = vpack.c.bf16 %v285, %v284
      %v297 = vpack.c.bf16 %v287, %v286
      %v298 = vpack.c.bf16 %v289, %v288
      %v299 = vpack.c.bf16 %v291, %v290
      %v300 = vld [vmem:[%s2] sm:$0xff]
      %v301 = vld [vmem:[%s2 + $0x8] sm:$0xff]
      %v302 = vld [vmem:[%s2 + $0x10] sm:$0xff]
      %v303 = vld [vmem:[%s2 + $0x18] sm:$0xff]
      %v304 = vld [vmem:[%s2 + $0x20] sm:$0xff]
      %v305 = vld [vmem:[%s2 + $0x28] sm:$0xff]
      %v306 = vld [vmem:[%s2 + $0x30] sm:$0xff]
      %v307 = vld [vmem:[%s2 + $0x38] sm:$0xff]
      %v308 = vld [vmem:[%s2 + $0x40] sm:$0xff]
      %v309 = vld [vmem:[%s2 + $0x48] sm:$0xff]
      %v310 = vld [vmem:[%s2 + $0x50] sm:$0xff]
      %v311 = vld [vmem:[%s2 + $0x58] sm:$0xff]
      %v312 = vld [vmem:[%s2 + $0x60] sm:$0xff]
      %v313 = vld [vmem:[%s2 + $0x68] sm:$0xff]
      %v314 = vld [vmem:[%s2 + $0x70] sm:$0xff]
      %v315 = vld [vmem:[%s2 + $0x78] sm:$0xff]
      %317 = vset.pattern.permute.xlu0 0
      %318 = vperm.xlu0 %317, %v300
      %v319 = vpop.permute.xlu0 %318
      %322 = vset.pattern.permute.xlu0 0
      %323 = vperm.xlu0 %322, %v301
      %v324 = vpop.permute.xlu0 %323
      %327 = vset.pattern.permute.xlu0 0
      %328 = vperm.xlu0 %327, %v302
      %v329 = vpop.permute.xlu0 %328
      %332 = vset.pattern.permute.xlu0 0
      %333 = vperm.xlu0 %332, %v303
      %v334 = vpop.permute.xlu0 %333
      %337 = vset.pattern.permute.xlu0 0
      %338 = vperm.xlu0 %337, %v304
      %v339 = vpop.permute.xlu0 %338
      %342 = vset.pattern.permute.xlu0 0
      %343 = vperm.xlu0 %342, %v305
      %v344 = vpop.permute.xlu0 %343
      %347 = vset.pattern.permute.xlu0 0
      %348 = vperm.xlu0 %347, %v306
      %v349 = vpop.permute.xlu0 %348
      %352 = vset.pattern.permute.xlu0 0
      %353 = vperm.xlu0 %352, %v307
      %v354 = vpop.permute.xlu0 %353
      %357 = vset.pattern.permute.xlu0 0
      %358 = vperm.xlu0 %357, %v308
      %v359 = vpop.permute.xlu0 %358
      %362 = vset.pattern.permute.xlu0 0
      %363 = vperm.xlu0 %362, %v309
      %v364 = vpop.permute.xlu0 %363
      %367 = vset.pattern.permute.xlu0 0
      %368 = vperm.xlu0 %367, %v310
      %v369 = vpop.permute.xlu0 %368
      %372 = vset.pattern.permute.xlu0 0
      %373 = vperm.xlu0 %372, %v311
      %v374 = vpop.permute.xlu0 %373
      %377 = vset.pattern.permute.xlu0 0
      %378 = vperm.xlu0 %377, %v312
      %v379 = vpop.permute.xlu0 %378
      %382 = vset.pattern.permute.xlu0 0
      %383 = vperm.xlu0 %382, %v313
      %v384 = vpop.permute.xlu0 %383
      %387 = vset.pattern.permute.xlu0 0
      %388 = vperm.xlu0 %387, %v314
      %v389 = vpop.permute.xlu0 %388
      %392 = vset.pattern.permute.xlu0 0
      %393 = vperm.xlu0 %392, %v315
      %v394 = vpop.permute.xlu0 %393
      %v397 = vunpack.c.l.b16 %v275
      %v398 = vunpack.c.h.b16 %v275
      %v399 = vpack.c.b16 %v397, %v397
      %v400 = vpack.c.b16 %v398, %v398
      %vm401 = vcmask 64512
      %v403 = vsel %vm401, %v292, 0
      %v406 = vsel %vm401, %v293, 0
      %v409 = vsel %vm401, %v294, 0
      %v412 = vsel %vm401, %v295, 0
      %v415 = vsel %vm401, %v296, 0
      %v418 = vsel %vm401, %v297, 0
      %v421 = vsel %vm401, %v298, 0
      %v424 = vsel %vm401, %v299, 0
      %vm426 = vcmask 1043456
      %v428 = vsel %vm426, %v399, 0
      %v431 = vsel %vm426, %v400, 0
      %433 = vmatprep.subr.bf16.mxu0 %v431
      %434 = vmatpush1.bf16.msra.mxu0 %v428
      %435 = vmatprep.subr.bf16.mxu0 0
      %436 = vmatpush1.bf16.msra.mxu0 0
      %437 = vmatprep.subr.bf16.mxu0 0
      %438 = vmatpush1.bf16.msra.mxu0 0
      %439 = vmatprep.subr.bf16.mxu0 0
      %440 = vmatpush1.bf16.msra.mxu0 0
      %441 = vmatprep.subr.bf16.mxu0 0
      %442 = vmatpush1.bf16.msra.mxu0 0
      %443 = vmatprep.subr.bf16.mxu0 0
      %444 = vmatpush1.bf16.msra.mxu0 0
      %445 = vmatprep.subr.bf16.mxu0 0
      %446 = vmatpush1.bf16.msra.mxu0 0
      %447 = vmatprep.subr.bf16.mxu0 0
      %448 = vmatpush1.bf16.msra.mxu0 0
      %449 = vmatprep.subr.bf16.mxu0 0
      %450 = vmatpush1.bf16.msra.mxu0 0
      %451 = vmatprep.subr.bf16.mxu0 0
      %452 = vmatpush1.bf16.msra.mxu0 0
      %453 = vmatprep.subr.bf16.mxu0 0
      %454 = vmatpush1.bf16.msra.mxu0 0
      %455 = vmatprep.subr.bf16.mxu0 0
      %456 = vmatpush1.bf16.msra.mxu0 0
      %457 = vmatprep.subr.bf16.mxu0 0
      %458 = vmatpush1.bf16.msra.mxu0 0
      %459 = vmatprep.subr.bf16.mxu0 0
      %460 = vmatpush1.bf16.msra.mxu0 0
      %461 = vmatprep.subr.bf16.mxu0 0
      %462 = vmatpush1.bf16.msra.mxu0 0
      %463 = vmatprep.subr.bf16.mxu0 0
      %464 = vmatpush1.bf16.msra.mxu0 0
      %465 = vmatprep.mubr.bf16.mxu0 0
      %466 = vmatmul.mubr.bf16.gmra.mrb[0].mxu0 %v403
      %v467 = vpop.f32.mrb[0].mxu0
      %v468 = vadd.f32 %v319, %v467
      %v469 = vpop.f32.mrb[0].mxu0
      %v470 = vadd.f32 %v319, %v469
      %v471 = vpop.f32.mrb[0].mxu0
      %v472 = vadd.f32 %v324, %v471
      %v473 = vpop.f32.mrb[0].mxu0
      %v474 = vadd.f32 %v324, %v473
      %475 = vmatprep.mubr.bf16.mxu0 0
      %476 = vmatmul.mubr.bf16.gmra.mrb[0].mxu0 %v406
      %v477 = vpop.f32.mrb[0].mxu0
      %v478 = vadd.f32 %v329, %v477
      %v479 = vpop.f32.mrb[0].mxu0
      %v480 = vadd.f32 %v329, %v479
      %v481 = vpop.f32.mrb[0].mxu0
      %v482 = vadd.f32 %v334, %v481
      %v483 = vpop.f32.mrb[0].mxu0
      %v484 = vadd.f32 %v334, %v483
      %485 = vmatprep.mubr.bf16.mxu0 0
      %486 = vmatmul.mubr.bf16.gmra.mrb[0].mxu0 %v409
      %v487 = vpop.f32.mrb[0].mxu0
      %v488 = vadd.f32 %v339, %v487
      %v489 = vpop.f32.mrb[0].mxu0
      %v490 = vadd.f32 %v339, %v489
      %v491 = vpop.f32.mrb[0].mxu0
      %v492 = vadd.f32 %v344, %v491
      %v493 = vpop.f32.mrb[0].mxu0
      %v494 = vadd.f32 %v344, %v493
      %495 = vmatprep.mubr.bf16.mxu0 0
      %496 = vmatmul.mubr.bf16.gmra.mrb[0].mxu0 %v412
      %v497 = vpop.f32.mrb[0].mxu0
      %v498 = vadd.f32 %v349, %v497
      %v499 = vpop.f32.mrb[0].mxu0
      %v500 = vadd.f32 %v349, %v499
      %v501 = vpop.f32.mrb[0].mxu0
      %v502 = vadd.f32 %v354, %v501
      %v503 = vpop.f32.mrb[0].mxu0
      %v504 = vadd.f32 %v354, %v503
      %505 = vmatprep.mubr.bf16.mxu0 0
      %506 = vmatmul.mubr.bf16.gmra.mrb[0].mxu0 %v415
      %v507 = vpop.f32.mrb[0].mxu0
      %v508 = vadd.f32 %v359, %v507
      %v509 = vpop.f32.mrb[0].mxu0
      %v510 = vadd.f32 %v359, %v509
      %v511 = vpop.f32.mrb[0].mxu0
      %v512 = vadd.f32 %v364, %v511
      %v513 = vpop.f32.mrb[0].mxu0
      %v514 = vadd.f32 %v364, %v513
      %515 = vmatprep.mubr.bf16.mxu0 0
      %516 = vmatmul.mubr.bf16.gmra.mrb[0].mxu0 %v418
      %v517 = vpop.f32.mrb[0].mxu0
      %v518 = vadd.f32 %v369, %v517
      %v519 = vpop.f32.mrb[0].mxu0
      %v520 = vadd.f32 %v369, %v519
      %v521 = vpop.f32.mrb[0].mxu0
      %v522 = vadd.f32 %v374, %v521
      %v523 = vpop.f32.mrb[0].mxu0
      %v524 = vadd.f32 %v374, %v523
      %525 = vmatprep.mubr.bf16.mxu0 0
      %526 = vmatmul.mubr.bf16.gmra.mrb[0].mxu0 %v421
      %v527 = vpop.f32.mrb[0].mxu0
      %v528 = vadd.f32 %v379, %v527
      %v529 = vpop.f32.mrb[0].mxu0
      %v530 = vadd.f32 %v379, %v529
      %v531 = vpop.f32.mrb[0].mxu0
      %v532 = vadd.f32 %v384, %v531
      %v533 = vpop.f32.mrb[0].mxu0
      %v534 = vadd.f32 %v384, %v533
      %535 = vmatprep.mubr.bf16.mxu0 0
      %536 = vmatmul.mubr.bf16.gmra.mrb[0].mxu0 %v424
      %v537 = vpop.f32.mrb[0].mxu0
      %v538 = vadd.f32 %v389, %v537
      %v539 = vpop.f32.mrb[0].mxu0
      %v540 = vadd.f32 %v389, %v539
      %v541 = vpop.f32.mrb[0].mxu0
      %v542 = vadd.f32 %v394, %v541
      %v543 = vpop.f32.mrb[0].mxu0
      %v544 = vadd.f32 %v394, %v543
      %545 = vdwg.mxu0
      %v546 = vmul.f32 %v468, 0.5
      %v547 = vmul.f32 %v470, 0.5
      %v548 = vmul.f32 %v472, 0.5
      %v549 = vmul.f32 %v474, 0.5
      %v550 = vmul.f32 %v478, 0.5
      %v551 = vmul.f32 %v480, 0.5
      %v552 = vmul.f32 %v482, 0.5
      %v553 = vmul.f32 %v484, 0.5
      %v554 = vmul.f32 %v488, 0.5
      %v555 = vmul.f32 %v490, 0.5
      %v556 = vmul.f32 %v492, 0.5
      %v557 = vmul.f32 %v494, 0.5
      %v558 = vmul.f32 %v498, 0.5
      %v559 = vmul.f32 %v500, 0.5
      %v560 = vmul.f32 %v502, 0.5
      %v561 = vmul.f32 %v504, 0.5
      %v562 = vmul.f32 %v508, 0.5
      %v563 = vmul.f32 %v510, 0.5
      %v564 = vmul.f32 %v512, 0.5
      %v565 = vmul.f32 %v514, 0.5
      %v566 = vmul.f32 %v518, 0.5
      %v567 = vmul.f32 %v520, 0.5
      %v568 = vmul.f32 %v522, 0.5
      %v569 = vmul.f32 %v524, 0.5
      %v570 = vmul.f32 %v528, 0.5
      %v571 = vmul.f32 %v530, 0.5
      %v572 = vmul.f32 %v532, 0.5
      %v573 = vmul.f32 %v534, 0.5
      %v574 = vmul.f32 %v538, 0.5
      %v575 = vmul.f32 %v540, 0.5
      %v576 = vmul.f32 %v542, 0.5
      %v577 = vmul.f32 %v544, 0.5
      %v578 = vmul.f32 %v468, 0.044715
      %v579 = vmul.f32 %v470, 0.044715
      %v580 = vmul.f32 %v472, 0.044715
      %v581 = vmul.f32 %v474, 0.044715
      %v582 = vmul.f32 %v478, 0.044715
      %v583 = vmul.f32 %v480, 0.044715
      %v584 = vmul.f32 %v482, 0.044715
      %v585 = vmul.f32 %v484, 0.044715
      %v586 = vmul.f32 %v488, 0.044715
      %v587 = vmul.f32 %v490, 0.044715
      %v588 = vmul.f32 %v492, 0.044715
      %v589 = vmul.f32 %v494, 0.044715
      %v590 = vmul.f32 %v498, 0.044715
      %v591 = vmul.f32 %v500, 0.044715
      %v592 = vmul.f32 %v502, 0.044715
      %v593 = vmul.f32 %v504, 0.044715
      %v594 = vmul.f32 %v508, 0.044715
      %v595 = vmul.f32 %v510, 0.044715
      %v596 = vmul.f32 %v512, 0.044715
      %v597 = vmul.f32 %v514, 0.044715
      %v598 = vmul.f32 %v518, 0.044715
      %v599 = vmul.f32 %v520, 0.044715
      %v600 = vmul.f32 %v522, 0.044715
      %v601 = vmul.f32 %v524, 0.044715
      %v602 = vmul.f32 %v528, 0.044715
      %v603 = vmul.f32 %v530, 0.044715
      %v604 = vmul.f32 %v532, 0.044715
      %v605 = vmul.f32 %v534, 0.044715
      %v606 = vmul.f32 %v538, 0.044715
      %v607 = vmul.f32 %v540, 0.044715
      %v608 = vmul.f32 %v542, 0.044715
      %v609 = vmul.f32 %v544, 0.044715
      %v610 = vmul.f32 %v578, %v468
      %v611 = vmul.f32 %v579, %v470
      %v612 = vmul.f32 %v580, %v472
      %v613 = vmul.f32 %v581, %v474
      %v614 = vmul.f32 %v582, %v478
      %v615 = vmul.f32 %v583, %v480
      %v616 = vmul.f32 %v584, %v482
      %v617 = vmul.f32 %v585, %v484
      %v618 = vmul.f32 %v586, %v488
      %v619 = vmul.f32 %v587, %v490
      %v620 = vmul.f32 %v588, %v492
      %v621 = vmul.f32 %v589, %v494
      %v622 = vmul.f32 %v590, %v498
      %v623 = vmul.f32 %v591, %v500
      %v624 = vmul.f32 %v592, %v502
      %v625 = vmul.f32 %v593, %v504
      %v626 = vmul.f32 %v594, %v508
      %v627 = vmul.f32 %v595, %v510
      %v628 = vmul.f32 %v596, %v512
      %v629 = vmul.f32 %v597, %v514
      %v630 = vmul.f32 %v598, %v518
      %v631 = vmul.f32 %v599, %v520
      %v632 = vmul.f32 %v600, %v522
      %v633 = vmul.f32 %v601, %v524
      %v634 = vmul.f32 %v602, %v528
      %v635 = vmul.f32 %v603, %v530
      %v636 = vmul.f32 %v604, %v532
      %v637 = vmul.f32 %v605, %v534
      %v638 = vmul.f32 %v606, %v538
      %v639 = vmul.f32 %v607, %v540
      %v640 = vmul.f32 %v608, %v542
      %v641 = vmul.f32 %v609, %v544
      %v642 = vmul.f32 %v610, %v468
      %v643 = vmul.f32 %v611, %v470
      %v644 = vmul.f32 %v612, %v472
      %v645 = vmul.f32 %v613, %v474
      %v646 = vmul.f32 %v614, %v478
      %v647 = vmul.f32 %v615, %v480
      %v648 = vmul.f32 %v616, %v482
      %v649 = vmul.f32 %v617, %v484
      %v650 = vmul.f32 %v618, %v488
      %v651 = vmul.f32 %v619, %v490
      %v652 = vmul.f32 %v620, %v492
      %v653 = vmul.f32 %v621, %v494
      %v654 = vmul.f32 %v622, %v498
      %v655 = vmul.f32 %v623, %v500
      %v656 = vmul.f32 %v624, %v502
      %v657 = vmul.f32 %v625, %v504
      %v658 = vmul.f32 %v626, %v508
      %v659 = vmul.f32 %v627, %v510
      %v660 = vmul.f32 %v628, %v512
      %v661 = vmul.f32 %v629, %v514
      %v662 = vmul.f32 %v630, %v518
      %v663 = vmul.f32 %v631, %v520
      %v664 = vmul.f32 %v632, %v522
      %v665 = vmul.f32 %v633, %v524
      %v666 = vmul.f32 %v634, %v528
      %v667 = vmul.f32 %v635, %v530
      %v668 = vmul.f32 %v636, %v532
      %v669 = vmul.f32 %v637, %v534
      %v670 = vmul.f32 %v638, %v538
      %v671 = vmul.f32 %v639, %v540
      %v672 = vmul.f32 %v640, %v542
      %v673 = vmul.f32 %v641, %v544
      %v674 = vadd.f32 %v468, %v642
      %v675 = vadd.f32 %v470, %v643
      %v676 = vadd.f32 %v472, %v644
      %v677 = vadd.f32 %v474, %v645
      %v678 = vadd.f32 %v478, %v646
      %v679 = vadd.f32 %v480, %v647
      %v680 = vadd.f32 %v482, %v648
      %v681 = vadd.f32 %v484, %v649
      %v682 = vadd.f32 %v488, %v650
      %v683 = vadd.f32 %v490, %v651
      %v684 = vadd.f32 %v492, %v652
      %v685 = vadd.f32 %v494, %v653
      %v686 = vadd.f32 %v498, %v654
      %v687 = vadd.f32 %v500, %v655
      %v688 = vadd.f32 %v502, %v656
      %v689 = vadd.f32 %v504, %v657
      %v690 = vadd.f32 %v508, %v658
      %v691 = vadd.f32 %v510, %v659
      %v692 = vadd.f32 %v512, %v660
      %v693 = vadd.f32 %v514, %v661
      %v694 = vadd.f32 %v518, %v662
      %v695 = vadd.f32 %v520, %v663
      %v696 = vadd.f32 %v522, %v664
      %v697 = vadd.f32 %v524, %v665
      %v698 = vadd.f32 %v528, %v666
      %v699 = vadd.f32 %v530, %v667
      %v700 = vadd.f32 %v532, %v668
      %v701 = vadd.f32 %v534, %v669
      %v702 = vadd.f32 %v538, %v670
      %v703 = vadd.f32 %v540, %v671
      %v704 = vadd.f32 %v542, %v672
      %v705 = vadd.f32 %v544, %v673
      %v706 = vmul.f32 %v674, 0.7978846
      %v707 = vmul.f32 %v675, 0.7978846
      %v708 = vmul.f32 %v676, 0.7978846
      %v709 = vmul.f32 %v677, 0.7978846
      %v710 = vmul.f32 %v678, 0.7978846
      %v711 = vmul.f32 %v679, 0.7978846
      %v712 = vmul.f32 %v680, 0.7978846
      %v713 = vmul.f32 %v681, 0.7978846
      %v714 = vmul.f32 %v682, 0.7978846
      %v715 = vmul.f32 %v683, 0.7978846
      %v716 = vmul.f32 %v684, 0.7978846
      %v717 = vmul.f32 %v685, 0.7978846
      %v718 = vmul.f32 %v686, 0.7978846
      %v719 = vmul.f32 %v687, 0.7978846
      %v720 = vmul.f32 %v688, 0.7978846
      %v721 = vmul.f32 %v689, 0.7978846
      %v722 = vmul.f32 %v690, 0.7978846
      %v723 = vmul.f32 %v691, 0.7978846
      %v724 = vmul.f32 %v692, 0.7978846
      %v725 = vmul.f32 %v693, 0.7978846
      %v726 = vmul.f32 %v694, 0.7978846
      %v727 = vmul.f32 %v695, 0.7978846
      %v728 = vmul.f32 %v696, 0.7978846
      %v729 = vmul.f32 %v697, 0.7978846
      %v730 = vmul.f32 %v698, 0.7978846
      %v731 = vmul.f32 %v699, 0.7978846
      %v732 = vmul.f32 %v700, 0.7978846
      %v733 = vmul.f32 %v701, 0.7978846
      %v734 = vmul.f32 %v702, 0.7978846
      %v735 = vmul.f32 %v703, 0.7978846
      %v736 = vmul.f32 %v704, 0.7978846
      %v737 = vmul.f32 %v705, 0.7978846
      %v738 = vtanh.pop %v706
      %v739 = vtanh.pop %v707
      %v740 = vtanh.pop %v708
      %v741 = vtanh.pop %v709
      %v742 = vtanh.pop %v710
      %v743 = vtanh.pop %v711
      %v744 = vtanh.pop %v712
      %v745 = vtanh.pop %v713
      %v746 = vtanh.pop %v714
      %v747 = vtanh.pop %v715
      %v748 = vtanh.pop %v716
      %v749 = vtanh.pop %v717
      %v750 = vtanh.pop %v718
      %v751 = vtanh.pop %v719
      %v752 = vtanh.pop %v720
      %v753 = vtanh.pop %v721
      %v754 = vtanh.pop %v722
      %v755 = vtanh.pop %v723
      %v756 = vtanh.pop %v724
      %v757 = vtanh.pop %v725
      %v758 = vtanh.pop %v726
      %v759 = vtanh.pop %v727
      %v760 = vtanh.pop %v728
      %v761 = vtanh.pop %v729
      %v762 = vtanh.pop %v730
      %v763 = vtanh.pop %v731
      %v764 = vtanh.pop %v732
      %v765 = vtanh.pop %v733
      %v766 = vtanh.pop %v734
      %v767 = vtanh.pop %v735
      %v768 = vtanh.pop %v736
      %v769 = vtanh.pop %v737
      %v770 = vadd.f32 %v738, 1.0
      %v771 = vadd.f32 %v739, 1.0
      %v772 = vadd.f32 %v740, 1.0
      %v773 = vadd.f32 %v741, 1.0
      %v774 = vadd.f32 %v742, 1.0
      %v775 = vadd.f32 %v743, 1.0
      %v776 = vadd.f32 %v744, 1.0
      %v777 = vadd.f32 %v745, 1.0
      %v778 = vadd.f32 %v746, 1.0
      %v779 = vadd.f32 %v747, 1.0
      %v780 = vadd.f32 %v748, 1.0
      %v781 = vadd.f32 %v749, 1.0
      %v782 = vadd.f32 %v750, 1.0
      %v783 = vadd.f32 %v751, 1.0
      %v784 = vadd.f32 %v752, 1.0
      %v785 = vadd.f32 %v753, 1.0
      %v786 = vadd.f32 %v754, 1.0
      %v787 = vadd.f32 %v755, 1.0
      %v788 = vadd.f32 %v756, 1.0
      %v789 = vadd.f32 %v757, 1.0
      %v790 = vadd.f32 %v758, 1.0
      %v791 = vadd.f32 %v759, 1.0
      %v792 = vadd.f32 %v760, 1.0
      %v793 = vadd.f32 %v761, 1.0
      %v794 = vadd.f32 %v762, 1.0
      %v795 = vadd.f32 %v763, 1.0
      %v796 = vadd.f32 %v764, 1.0
      %v797 = vadd.f32 %v765, 1.0
      %v798 = vadd.f32 %v766, 1.0
      %v799 = vadd.f32 %v767, 1.0
      %v800 = vadd.f32 %v768, 1.0
      %v801 = vadd.f32 %v769, 1.0
      %v802 = vmul.f32 %v546, %v770
      %v803 = vmul.f32 %v547, %v771
      %v804 = vmul.f32 %v548, %v772
      %v805 = vmul.f32 %v549, %v773
      %v806 = vmul.f32 %v550, %v774
      %v807 = vmul.f32 %v551, %v775
      %v808 = vmul.f32 %v552, %v776
      %v809 = vmul.f32 %v553, %v777
      %v810 = vmul.f32 %v554, %v778
      %v811 = vmul.f32 %v555, %v779
      %v812 = vmul.f32 %v556, %v780
      %v813 = vmul.f32 %v557, %v781
      %v814 = vmul.f32 %v558, %v782
      %v815 = vmul.f32 %v559, %v783
      %v816 = vmul.f32 %v560, %v784
      %v817 = vmul.f32 %v561, %v785
      %v818 = vmul.f32 %v562, %v786
      %v819 = vmul.f32 %v563, %v787
      %v820 = vmul.f32 %v564, %v788
      %v821 = vmul.f32 %v565, %v789
      %v822 = vmul.f32 %v566, %v790
      %v823 = vmul.f32 %v567, %v791
      %v824 = vmul.f32 %v568, %v792
      %v825 = vmul.f32 %v569, %v793
      %v826 = vmul.f32 %v570, %v794
      %v827 = vmul.f32 %v571, %v795
      %v828 = vmul.f32 %v572, %v796
      %v829 = vmul.f32 %v573, %v797
      %v830 = vmul.f32 %v574, %v798
      %v831 = vmul.f32 %v575, %v799
      %v832 = vmul.f32 %v576, %v800
      %v833 = vmul.f32 %v577, %v801
      %v834 = vld [vmem:[%s3] sm:$0x1]
      %v835 = vpack.c.bf16 %v834, %v834
      %v836 = vpack.c.bf16 %v804, %v802
      %v837 = vpack.c.bf16 %v805, %v803
      %v838 = vpack.c.bf16 %v808, %v806
      %v839 = vpack.c.bf16 %v809, %v807
      %v840 = vpack.c.bf16 %v812, %v810
      %v841 = vpack.c.bf16 %v813, %v811
      %v842 = vpack.c.bf16 %v816, %v814
      %v843 = vpack.c.bf16 %v817, %v815
      %v844 = vpack.c.bf16 %v820, %v818
      %v845 = vpack.c.bf16 %v821, %v819
      %v846 = vpack.c.bf16 %v824, %v822
      %v847 = vpack.c.bf16 %v825, %v823
      %v848 = vpack.c.bf16 %v828, %v826
      %v849 = vpack.c.bf16 %v829, %v827
      %v850 = vpack.c.bf16 %v832, %v830
      %v851 = vpack.c.bf16 %v833, %v831
      %v852 = vld [vmem:[#allocation2] sm:$0x1]
      %854 = vset.pattern.permute.xlu0 0
      %855 = vperm.xlu0 %854, %v852
      %v856 = vpop.permute.xlu0 %855
      %v858 = vlaneseq
      %v859 = vshrl.u32 %v858, 7
      %v860 = vsub.s32 0, %v859
      %v861 = vrot.slane %v856, %v860
      %862 = vmatprep.subr.bf16.mxu0 %v837
      %863 = vmatpush1.bf16.msra.mxu0 %v836
      %864 = vmatprep.subr.bf16.mxu0 %v839
      %865 = vmatpush1.bf16.msra.mxu0 %v838
      %866 = vmatprep.subr.bf16.mxu0 %v841
      %867 = vmatpush1.bf16.msra.mxu0 %v840
      %868 = vmatprep.subr.bf16.mxu0 %v843
      %869 = vmatpush1.bf16.msra.mxu0 %v842
      %870 = vmatprep.subr.bf16.mxu0 %v845
      %871 = vmatpush1.bf16.msra.mxu0 %v844
      %872 = vmatprep.subr.bf16.mxu0 %v847
      %873 = vmatpush1.bf16.msra.mxu0 %v846
      %874 = vmatprep.subr.bf16.mxu0 %v849
      %875 = vmatpush1.bf16.msra.mxu0 %v848
      %876 = vmatprep.subr.bf16.mxu0 %v851
      %877 = vmatpush1.bf16.msra.mxu0 %v850
      %878 = vmatprep.subr.bf16.mxu0 0
      %879 = vmatpush1.bf16.msra.mxu0 0
      %880 = vmatprep.subr.bf16.mxu0 0
      %881 = vmatpush1.bf16.msra.mxu0 0
      %882 = vmatprep.subr.bf16.mxu0 0
      %883 = vmatpush1.bf16.msra.mxu0 0
      %884 = vmatprep.subr.bf16.mxu0 0
      %885 = vmatpush1.bf16.msra.mxu0 0
      %886 = vmatprep.subr.bf16.mxu0 0
      %887 = vmatpush1.bf16.msra.mxu0 0
      %888 = vmatprep.subr.bf16.mxu0 0
      %889 = vmatpush1.bf16.msra.mxu0 0
      %890 = vmatprep.subr.bf16.mxu0 0
      %891 = vmatpush1.bf16.msra.mxu0 0
      %892 = vmatprep.subr.bf16.mxu0 0
      %893 = vmatpush1.bf16.msra.mxu0 0
      %894 = vmatprep.mubr.bf16.mxu0 0
      %895 = vmatmul.mubr.bf16.gmra.mrb[0].mxu0 %v835
      %v896 = vpop.f32.mrb[0].mxu0
      %v897 = vadd.f32 %v861, %v896
      %v898 = vpop.f32.mrb[0].mxu0
      %v899 = vadd.f32 %v861, %v898
      %v900 = vpop.f32.mrb[0].mxu0
      %v901 = vpop.f32.mrb[0].mxu0
      %902 = vdwg.mxu0
      %v903 = vld [vmem:[%s267] sm:$0x3]
      %v905 = vlaneseq
      %v906 = vshrl.u32 %v905, 7
      %v907 = vsub.s32 0, %v906
      %v908 = vrot.slane %v903, %v907
      %v909 = vlaneseq
      %v910 = vshrl.u32 %v909, 7
      %v911 = vsub.s32 1, %v910
      %v912 = vrot.slane %v903, %v911
      %v915 = vadd.f32 %v897, %v908
      %v916 = vadd.f32 %v899, %v912
      %v919 = vcombine.low %v915, %v916
      %v921 = vunpack.c.l.s4 1966171168
      %v922 = vunpack.c.0.s8 %v921
      %v923 = vlaneseq
      %v924 = vshrl.u32 %v923, 7
      %v925 = vsub.s32 %v922, %v924
      %v926 = vrot.slane %v919, %v925
      %v928 = vunpack.c.l.s4 1966171168
      %v929 = vunpack.c.0.s8 %v928
      %v930 = vlaneseq
      %v931 = vshrl.u32 %v930, 7
      %v932 = vsub.s32 %v929, %v931
      %v933 = vrot.slane %v926, %v932
      %v935 = vlaneseq
      %vm936 = vcmp.ge.s32.totalorder %v935, 0
      %vm937 = vcmp.lt.s32.totalorder %v935, 256
      %vm938 = vmand %vm936, %vm937
      %939 = vst.msk [vmem:[%s272] sm:$0x3] %vm938, %v933
      %s940 = smul.u32 2, %s19
      %p941 = scmp.lt.s32.totalorder %s940, 3
      %s942 = scalar_select %p941, %s940, 3
      %s943 = scalar_lea.vmem %s6, %s942
      // Predicated region
      $region45: #{fno_forward.19} parent=43 // pred_check
        %p944 = pneg %p173
      $region46: #{fno_forward.19} parent=43 // pred_check_branch
        %946 = sbr.rel (%p944) target = $region48
      $region47: #{fno_forward.19} parent=43 // pred_region
        %s947 = smul.u32 2, %s19
      $region48: #{fno_forward.19} parent=43 // pred_fallthru
        _
    $region44: #{fno_forward.19} parent=5 // pred_fallthru
      _
    %p948 = scmp.le.s32.totalorder 2, %s14
    // Predicated region
    $region49: #{fno_forward.19} parent=5 // pred_check
      %p949 = pneg %p948
    $region50: #{fno_forward.19} parent=5 // pred_check_branch
      %951 = sbr.rel (%p949) target = $region52
    $region51: #{fno_forward.19} parent=5 // pred_region
      %s952 = ssub.s32 %s14, 2
      // Predicated region
      $region53: #{fno_forward.19} parent=51 // pred_check
        %p953 = pneg %p179
      $region54: #{fno_forward.19} parent=51 // pred_check_branch
        %955 = sbr.rel (%p953) target = $region56
      $region55: #{fno_forward.19} parent=51 // pred_region
        %s956 = smul.u32 2, %s20
        %p957 = scmp.lt.s32.totalorder %s956, 3
        %s958 = scalar_select %p957, %s956, 3
        %s959 = scalar_lea.vmem %s6, %s958
      $region56: #{fno_forward.19} parent=51 // pred_fallthru
        _
    $region52: #{fno_forward.19} parent=5 // pred_fallthru
      _
  $region6: #{fno_forward.19} parent=0 // loop_footer
    %s18 = sadd.s32 1, %s14
  $region7: #{fno_forward.19} parent=0 // loop_footer_branch
    %13 = sbr.rel target = $region3
  $region8: #{fno_forward.19} parent=0 // loop_exit
    _

</llo_original>
